<compile_context>
chip_gen: v5e
topology: v5e:2x2
jax: 0.10.0
libtpu: 0.0.40
codegen_flags: <defaults>
</compile_context>

<pallas_src>
import functools
import math

import jax
import jax.numpy as jnp
from jax import lax
from jax.experimental import pallas as pl
from jax.experimental.pallas import tpu as pltpu


def _round_up(x, m):
    return (x + m - 1) // m * m


def _conv_block_kernel(x_hbm, w1_ref, b1_ref, w2_ref, b2_ref, o_ref,
                       xbuf, mid_ref, *, W, TH, WC1, slope):
    # x_hbm  : (N, H+4, WP, Cin_p)   zero-padded NHWC image, bf16, resident in HBM
    # w1_ref : (3, 3*Cin_p, Cmid_p)  conv1 weights (dy, dx*Cin_p+c, o), WS scale folded, bf16
    # b1_ref : (1, Cmid_p)           conv1 bias, f32
    # w2_ref : (3, 3*Cmid_p, Cout_p) conv2 weights, WS scale folded, bf16
    # b2_ref : (1, Cout_p)           conv2 bias, f32
    # o_ref  : (TH, W, Cout_p)       output row tile
    # xbuf   : (TH+4, WP, Cin_p)     VMEM scratch for the halo'd input row window, bf16
    # mid_ref: (TH+2, WC1, Cmid_p)   VMEM scratch for the conv1 activation (+halo), bf16
    n = pl.program_id(0)
    t = pl.program_id(1)
    r1 = TH + 2                           # conv1 rows incl. 1-row halo for conv2
    k1 = w1_ref.shape[1]
    cmid = w1_ref.shape[2]
    k2 = w2_ref.shape[1]
    cout = w2_ref.shape[2]

    # ---- halo'd row window: DMA (TH+4) input rows of image n into VMEM.
    # TODO(synk): double-buffer this DMA across grid steps (pattern P4) to hide the
    # input fetch; with both grid axes "parallel" the priming step is core-dependent,
    # so we keep a simple blocking copy here.
    r0 = pl.multiple_of(t * TH, TH)
    pltpu.sync_copy(x_hbm.at[n, pl.ds(r0, TH + 4)], xbuf)

    # ---- conv1: width-im2col (K = 3*Cin_p) + 3 accumulated MXU matmuls over dy.
    xcat = jnp.concatenate(
        [xbuf[:, 0:WC1, :], xbuf[:, 1:WC1 + 1, :], xbuf[:, 2:WC1 + 2, :]], axis=-1)
    xflat = xcat.reshape((TH + 4) * WC1, k1)
    acc1 = jnp.dot(xflat[0:r1 * WC1], w1_ref[0],
                   preferred_element_type=jnp.float32)
    acc1 = acc1 + jnp.dot(xflat[WC1:WC1 + r1 * WC1], w1_ref[1],
                          preferred_element_type=jnp.float32)
    acc1 = acc1 + jnp.dot(xflat[2 * WC1:2 * WC1 + r1 * WC1], w1_ref[2],
                          preferred_element_type=jnp.float32)
    mid = acc1 + b1_ref[...]
    mid = jnp.maximum(mid, slope * mid)                       # LeakyReLU
    mid_ref[...] = mid.reshape(r1, WC1, cmid).astype(mid_ref.dtype)

    # ---- conv2 zero padding: only the boundary slices (O(halo), not O(tile)).
    # Columns 0 and W+1 are conv2's left/right padding (columns >= W+2 are never read).
    mid_ref[:, 0:1, :] = jnp.zeros((r1, 1, cmid), mid_ref.dtype)
    mid_ref[:, W + 1:W + 2, :] = jnp.zeros((r1, 1, cmid), mid_ref.dtype)

    @pl.when(t == 0)
    def _():  # top padding row of the whole image
        mid_ref[0:1, :, :] = jnp.zeros((1, WC1, cmid), mid_ref.dtype)

    @pl.when(t == pl.num_programs(1) - 1)
    def _():  # bottom padding row of the whole image
        mid_ref[r1 - 1:r1, :, :] = jnp.zeros((1, WC1, cmid), mid_ref.dtype)

    # ---- conv2: width-im2col on the VMEM-resident activation + 3 matmuls over dy.
    mcat = jnp.concatenate(
        [mid_ref[:, 0:W, :], mid_ref[:, 1:W + 1, :], mid_ref[:, 2:W + 2, :]], axis=-1)
    mflat = mcat.reshape(r1 * W, k2)
    acc2 = jnp.dot(mflat[0:TH * W], w2_ref[0],
                   preferred_element_type=jnp.float32)
    acc2 = acc2 + jnp.dot(mflat[W:W + TH * W], w2_ref[1],
                          preferred_element_type=jnp.float32)
    acc2 = acc2 + jnp.dot(mflat[2 * W:2 * W + TH * W], w2_ref[2],
                          preferred_element_type=jnp.float32)
    y = acc2 + b2_ref[...]
    y = jnp.maximum(y, slope * y)                             # LeakyReLU
    o_ref[...] = y.reshape(TH, W, cout).astype(o_ref.dtype)


def conv_block_forward(x_nchw, w1, b1, w2, b2, s1, s2, *, slope=0.2, tile_h=32):
    """Fused WSConv2d->LeakyReLU->WSConv2d->LeakyReLU (3x3, stride 1, pad 1), NCHW in/out."""
    N, Cin, H, W = x_nchw.shape
    Cmid = w1.shape[0]
    Cout = w2.shape[0]
    Cin_p = _round_up(Cin, 128)            # lane-dense contraction dim (conv1 K = 3*Cin_p)
    Cmid_p = _round_up(Cmid, 128)          # lane-dense intermediate channels
    Cout_p = _round_up(Cout, 128)          # lane-dense output store

    # Row-tile height: prefer a multiple of 8 that divides H (sublane-aligned slices,
    # MXU M = TH*W). Falls back to any divisor only when H itself is not 8-aligned.
    th = max(1, min(tile_h, H))
    if H % 8 == 0:
        th = max(8, (th // 8) * 8)
        while H % th:
            th -= 8
    else:
        while H % th:
            th -= 1
    T = H // th

    WC1 = _round_up(W + 2, 8)              # conv1-extended width (8-aligned reshapes)
    WP = _round_up(WC1 + 2, 8)             # padded input width

    # NCHW -> NHWC, pad 2 rows top/bottom, 2+extra cols, channels to Cin_p; bf16 HBM reads.
    x = jnp.transpose(x_nchw, (0, 2, 3, 1))
    x = jnp.pad(x, ((0, 0), (2, 2), (2, WP - W - 2), (0, Cin_p - Cin)))
    x = x.astype(jnp.bfloat16)

    # Weights: fold WS scale, OIHW -> (ky, kx, I, O) -> pad -> (3, 3*I_p, O_p), bf16.
    def prep_w(w, s, cin, cin_p, cout, cout_p):
        wt = jnp.transpose(w * s, (2, 3, 1, 0))                         # (3,3,I,O)
        wt = jnp.pad(wt, ((0, 0), (0, 0), (0, cin_p - cin), (0, cout_p - cout)))
        return wt.reshape(3, 3 * cin_p, cout_p).astype(jnp.bfloat16)

    w1c = prep_w(w1, s1, Cin, Cin_p, Cmid, Cmid_p)
    w2c = prep_w(w2, s2, Cmid, Cmid_p, Cout, Cout_p)
    b1p = jnp.pad(b1, (0, Cmid_p - Cmid)).reshape(1, Cmid_p).astype(jnp.float32)
    b2p = jnp.pad(b2, (0, Cout_p - Cout)).reshape(1, Cout_p).astype(jnp.float32)

    K1, K2 = 3 * Cin_p, 3 * Cmid_p
    out_itemsize = jnp.dtype(x_nchw.dtype).itemsize

    # Explicit VMEM budget (review: set vmem_limit_bytes; defaults differ per chip).
    est = ((th + 4) * WP * Cin_p * 2                 # xbuf scratch (bf16)
           + (th + 2) * WC1 * Cmid_p * 2             # mid scratch (bf16)
           + (th + 4) * WC1 * K1 * 2                 # in-kernel width-im2col (bf16)
           + (th + 2) * WC1 * Cmid_p * 4             # conv1 f32 accumulator
           + th * W * Cout_p * 4                     # conv2 f32 accumulator
           + (3 * K1 * Cmid_p + 3 * K2 * Cout_p) * 2 # weights (single-buffered)
           + 2 * th * W * Cout_p * out_itemsize)     # double-buffered output tile
    vmem_limit = int(min(max(2 * est, 32 * 1024 * 1024), 56 * 1024 * 1024))

    kernel = functools.partial(_conv_block_kernel,
                               W=W, TH=th, WC1=WC1, slope=slope)
    out = pl.pallas_call(
        kernel,
        out_shape=jax.ShapeDtypeStruct((N, H, W, Cout_p), x_nchw.dtype),
        grid=(N, T),
        in_specs=[
            # Input stays in HBM; the kernel DMAs a halo'd (TH+4)-row window per step.
            pl.BlockSpec(memory_space=pl.ANY),
            # Constant-index operands: single-buffered (no point double-buffering).
            pl.BlockSpec((3, K1, Cmid_p), lambda n, t: (0, 0, 0),
                         pipeline_mode=pl.Buffered(1)),
            pl.BlockSpec((1, Cmid_p), lambda n, t: (0, 0),
                         pipeline_mode=pl.Buffered(1)),
            pl.BlockSpec((3, K2, Cout_p), lambda n, t: (0, 0, 0),
                         pipeline_mode=pl.Buffered(1)),
            pl.BlockSpec((1, Cout_p), lambda n, t: (0, 0),
                         pipeline_mode=pl.Buffered(1)),
        ],
        out_specs=pl.BlockSpec((None, th, W, Cout_p), lambda n, t: (n, t, 0, 0)),
        scratch_shapes=[
            pltpu.VMEM((th + 4, WP, Cin_p), jnp.bfloat16),    # halo'd input window
            pltpu.VMEM((th + 2, WC1, Cmid_p), jnp.bfloat16),  # conv1 activation (+halo)
        ],
        compiler_params=pltpu.CompilerParams(
            dimension_semantics=("parallel", "parallel"),
            vmem_limit_bytes=vmem_limit),
    )(x, w1c, b1p, w2c, b2p)

    out = out[..., :Cout]                                     # drop lane padding
    return jnp.transpose(out, (0, 3, 1, 2))                   # NHWC -> NCHW


class ConvBlockPallas:
    """JAX/Pallas equivalent of CStyleGAN ConvBlock(in_channels, out_channels)."""

    def __init__(self, in_channels, out_channels, key):
        k1, k2 = jax.random.split(key)
        # nn.init.normal_ on conv weights (OIHW), zero bias.
        self.w1 = jax.random.normal(k1, (out_channels, in_channels, 3, 3), jnp.float32)
        self.b1 = jnp.zeros((out_channels,), jnp.float32)
        self.w2 = jax.random.normal(k2, (out_channels, out_channels, 3, 3), jnp.float32)
        self.b2 = jnp.zeros((out_channels,), jnp.float32)
        self.s1 = math.sqrt(2.0 / (in_channels * 3 ** 2))
        self.s2 = math.sqrt(2.0 / (out_channels * 3 ** 2))

    def __call__(self, x_nchw):
        return conv_block_forward(x_nchw, self.w1, self.b1, self.w2, self.b2,
                                  self.s1, self.s2)


def _reference_conv_block(x_nchw, w1, b1, w2, b2, s1, s2, slope=0.2):
    """Pure-JAX (lax.conv) f32 reference for validation."""
    def wsconv(x, w, b, s):
        y = lax.conv_general_dilated(
            x * s, w, window_strides=(1, 1), padding=((1, 1), (1, 1)),
            dimension_numbers=("NCHW", "OIHW", "NCHW"))
        return y + b.reshape(1, -1, 1, 1)

    def leaky(v):
        return jnp.where(v >= 0.0, v, slope * v)

    y = leaky(wsconv(x_nchw, w1, b1, s1))
    y = leaky(wsconv(y, w2, b2, s2))
    return y


if __name__ == "__main__":
    key = jax.random.PRNGKey(0)
    k_x, k_p = jax.random.split(key)

    # Small shapes consistent with ConvBlock's forward (NCHW input).
    N, Cin, Hdim, Wdim = 2, 4, 16, 16
    Cout = 8
    x = jax.random.normal(k_x, (N, Cin, Hdim, Wdim), jnp.float32)

    block = ConvBlockPallas(Cin, Cout, k_p)
    out = jax.block_until_ready(block(x))

    ref = _reference_conv_block(x, block.w1, block.b1, block.w2, block.b2,
                                block.s1, block.s2)
    assert out.shape == (N, Cout, Hdim, Wdim)
    # bf16 MXU operands / bf16 intermediate vs. f32 reference -> loose tolerance.
    assert jnp.allclose(out, ref, atol=5e-2, rtol=5e-2), "mismatch vs JAX reference"

    print("KERNEL_OK")
</pallas_src>

<mosaic_0001>
module attributes {stable_mosaic.version = 11 : i64} {
  func.func @_conv_block_kernel(%arg0: i32, %arg1: i32, %arg2: memref<2x20x32x128xbf16, #tpu.memory_space<any>>, %arg3: memref<3x384x128xbf16, #tpu.memory_space<vmem>>, %arg4: memref<1x128xf32, #tpu.memory_space<vmem>>, %arg5: memref<3x384x128xbf16, #tpu.memory_space<vmem>>, %arg6: memref<1x128xf32, #tpu.memory_space<vmem>>, %arg7: memref<1x16x16x128xf32, #tpu.memory_space<vmem>>, %arg8: memref<20x32x128xbf16, #tpu.memory_space<vmem>>, %arg9: memref<18x24x128xbf16, #tpu.memory_space<vmem>>) attributes {dimension_semantics = [#tpu.dimension_semantics<parallel>, #tpu.dimension_semantics<parallel>], iteration_bounds = array<i64: 2, 1>, scalar_prefetch = 0 : i64, scratch_operands = 2 : i64, tpu.core_type = #tpu.core_type<tc>, window_params = [{}, {pipeline_mode = #tpu.pipeline_mode<synchronous>, transform_indices = @transform_1, window_bounds = array<i64: 3, 384, 128>}, {pipeline_mode = #tpu.pipeline_mode<synchronous>, transform_indices = @transform_2, window_bounds = array<i64: 1, 128>}, {pipeline_mode = #tpu.pipeline_mode<synchronous>, transform_indices = @transform_3, window_bounds = array<i64: 3, 384, 128>}, {pipeline_mode = #tpu.pipeline_mode<synchronous>, transform_indices = @transform_4, window_bounds = array<i64: 1, 128>}, {transform_indices = @transform_5, window_bounds = array<i64: 1, 16, 16, 128>}]} {
    %c16_i32 = arith.constant 16 : i32
    %0 = arith.muli %arg1, %c16_i32 : i32
    %1 = tpu.assume_multiple %0, 16 : i32
    "tpu.region"() ({
      %69 = tpu.sem_alloc : memref<!tpu.dma_semaphore, #tpu.memory_space<semaphore_mem>>
      %c0_i32_61 = arith.constant 0 : i32
      %c0_i32_62 = arith.constant 0 : i32
      %70 = tpu.memref_slice %arg2[%arg0, %1, %c0_i32_61, %c0_i32_62] : memref<2x20x32x128xbf16, #tpu.memory_space<any>> -> memref<1x20x32x128xbf16, #tpu.memory_space<any>>
      %71 = tpu.memref_squeeze %70 : memref<1x20x32x128xbf16, #tpu.memory_space<any>> -> memref<20x32x128xbf16, #tpu.memory_space<any>>
      tpu.enqueue_dma source(%71 : memref<20x32x128xbf16, #tpu.memory_space<any>>) target(%arg8 : memref<20x32x128xbf16, #tpu.memory_space<vmem>>) target_semaphore(%69 : memref<!tpu.dma_semaphore, #tpu.memory_space<semaphore_mem>>)
      %c0_i32_63 = arith.constant 0 : i32
      %c0_i32_64 = arith.constant 0 : i32
      %72 = tpu.memref_slice %arg2[%arg0, %1, %c0_i32_63, %c0_i32_64] : memref<2x20x32x128xbf16, #tpu.memory_space<any>> -> memref<1x20x32x128xbf16, #tpu.memory_space<any>>
      %73 = tpu.memref_squeeze %72 : memref<1x20x32x128xbf16, #tpu.memory_space<any>> -> memref<20x32x128xbf16, #tpu.memory_space<any>>
      tpu.wait_dma2 semaphore(%69 : memref<!tpu.dma_semaphore, #tpu.memory_space<semaphore_mem>>) src(%73 : memref<20x32x128xbf16, #tpu.memory_space<any>>) dst(%arg8 : memref<20x32x128xbf16, #tpu.memory_space<vmem>>)
      tpu.yield
    }) : () -> ()
    %c0 = arith.constant 0 : index
    %c0_0 = arith.constant 0 : index
    %c0_1 = arith.constant 0 : index
    %2 = vector.load %arg8[%c0, %c0_0, %c0_1] : memref<20x32x128xbf16, #tpu.memory_space<vmem>>, vector<20x24x128xbf16>
    %c0_2 = arith.constant 0 : index
    %c1 = arith.constant 1 : index
    %c0_3 = arith.constant 0 : index
    %3 = vector.load %arg8[%c0_2, %c1, %c0_3] : memref<20x32x128xbf16, #tpu.memory_space<vmem>>, vector<20x24x128xbf16>
    %c0_4 = arith.constant 0 : index
    %c2 = arith.constant 2 : index
    %c0_5 = arith.constant 0 : index
    %4 = vector.load %arg8[%c0_4, %c2, %c0_5] : memref<20x32x128xbf16, #tpu.memory_space<vmem>>, vector<20x24x128xbf16>
    %5 = tpu.concatenate %2, %3, %4 in 2 : vector<20x24x128xbf16>, vector<20x24x128xbf16>, vector<20x24x128xbf16> -> vector<20x24x384xbf16>
    %6 = vector.shape_cast %5 : vector<20x24x384xbf16> to vector<480x384xbf16>
    %7 = vector.extract_strided_slice %6 {offsets = [0, 0], sizes = [432, 384], strides = [1, 1]} : vector<480x384xbf16> to vector<432x384xbf16>
    %c0_6 = arith.constant 0 : index
    %c0_7 = arith.constant 0 : index
    %c0_8 = arith.constant 0 : index
    %8 = vector.load %arg3[%c0_6, %c0_7, %c0_8] : memref<3x384x128xbf16, #tpu.memory_space<vmem>>, vector<1x384x128xbf16>
    %9 = vector.shape_cast %8 : vector<1x384x128xbf16> to vector<384x128xbf16>
    %cst = arith.constant dense<0.000000e+00> : vector<432x128xf32>
    %10 = tpu.matmul %7, %9, %cst {dimension_numbers = #tpu.dot_dimension_numbers<[1], [0], [0], [1], [0, 0, 1, 1], [], []>} : vector<432x384xbf16>, vector<384x128xbf16>, vector<432x128xf32> -> vector<432x128xf32>
    %11 = vector.extract_strided_slice %6 {offsets = [24, 0], sizes = [432, 384], strides = [1, 1]} : vector<480x384xbf16> to vector<432x384xbf16>
    %c1_9 = arith.constant 1 : index
    %c0_10 = arith.constant 0 : index
    %c0_11 = arith.constant 0 : index
    %12 = vector.load %arg3[%c1_9, %c0_10, %c0_11] : memref<3x384x128xbf16, #tpu.memory_space<vmem>>, vector<1x384x128xbf16>
    %13 = vector.shape_cast %12 : vector<1x384x128xbf16> to vector<384x128xbf16>
    %cst_12 = arith.constant dense<0.000000e+00> : vector<432x128xf32>
    %14 = tpu.matmul %11, %13, %cst_12 {dimension_numbers = #tpu.dot_dimension_numbers<[1], [0], [0], [1], [0, 0, 1, 1], [], []>} : vector<432x384xbf16>, vector<384x128xbf16>, vector<432x128xf32> -> vector<432x128xf32>
    %15 = arith.addf %10, %14 : vector<432x128xf32>
    %16 = vector.extract_strided_slice %6 {offsets = [48, 0], sizes = [432, 384], strides = [1, 1]} : vector<480x384xbf16> to vector<432x384xbf16>
    %c2_13 = arith.constant 2 : index
    %c0_14 = arith.constant 0 : index
    %c0_15 = arith.constant 0 : index
    %17 = vector.load %arg3[%c2_13, %c0_14, %c0_15] : memref<3x384x128xbf16, #tpu.memory_space<vmem>>, vector<1x384x128xbf16>
    %18 = vector.shape_cast %17 : vector<1x384x128xbf16> to vector<384x128xbf16>
    %cst_16 = arith.constant dense<0.000000e+00> : vector<432x128xf32>
    %19 = tpu.matmul %16, %18, %cst_16 {dimension_numbers = #tpu.dot_dimension_numbers<[1], [0], [0], [1], [0, 0, 1, 1], [], []>} : vector<432x384xbf16>, vector<384x128xbf16>, vector<432x128xf32> -> vector<432x128xf32>
    %20 = arith.addf %15, %19 : vector<432x128xf32>
    %c0_17 = arith.constant 0 : index
    %c0_18 = arith.constant 0 : index
    %21 = vector.load %arg4[%c0_17, %c0_18] : memref<1x128xf32, #tpu.memory_space<vmem>>, vector<1x128xf32>
    %22 = vector.broadcast %21 : vector<1x128xf32> to vector<432x128xf32>
    %23 = arith.addf %20, %22 : vector<432x128xf32>
    %cst_19 = arith.constant 2.000000e-01 : f32
    %24 = vector.broadcast %cst_19 : f32 to vector<432x128xf32>
    %25 = arith.mulf %24, %23 : vector<432x128xf32>
    %26 = arith.maximumf %23, %25 : vector<432x128xf32>
    %27 = vector.shape_cast %26 : vector<432x128xf32> to vector<18x24x128xf32>
    %28 = arith.truncf %27 : vector<18x24x128xf32> to vector<18x24x128xbf16>
    %c0_20 = arith.constant 0 : index
    %c0_21 = arith.constant 0 : index
    %c0_22 = arith.constant 0 : index
    %29 = vector.load %arg9[%c0_20, %c0_21, %c0_22] : memref<18x24x128xbf16, #tpu.memory_space<vmem>>, vector<18x24x128xbf16>
    tpu.vector_store %arg9[%c0_20, %c0_21, %c0_22], %28 {strides = array<i32>} : memref<18x24x128xbf16, #tpu.memory_space<vmem>>, vector<18x24x128xbf16>,
    %cst_23 = arith.constant 0.000000e+00 : bf16
    %30 = vector.broadcast %cst_23 : bf16 to vector<18x1x128xbf16>
    %c0_24 = arith.constant 0 : index
    %c0_25 = arith.constant 0 : index
    %c0_26 = arith.constant 0 : index
    %31 = vector.load %arg9[%c0_24, %c0_25, %c0_26] : memref<18x24x128xbf16, #tpu.memory_space<vmem>>, vector<18x1x128xbf16>
    tpu.vector_store %arg9[%c0_24, %c0_25, %c0_26], %30 {strides = array<i32>} : memref<18x24x128xbf16, #tpu.memory_space<vmem>>, vector<18x1x128xbf16>,
    %cst_27 = arith.constant 0.000000e+00 : bf16
    %32 = vector.broadcast %cst_27 : bf16 to vector<18x1x128xbf16>
    %c0_28 = arith.constant 0 : index
    %c17 = arith.constant 17 : index
    %c0_29 = arith.constant 0 : index
    %33 = vector.load %arg9[%c0_28, %c17, %c0_29] : memref<18x24x128xbf16, #tpu.memory_space<vmem>>, vector<18x1x128xbf16>
    tpu.vector_store %arg9[%c0_28, %c17, %c0_29], %32 {strides = array<i32>} : memref<18x24x128xbf16, #tpu.memory_space<vmem>>, vector<18x1x128xbf16>,
    %c0_i32 = arith.constant 0 : i32
    %34 = arith.cmpi eq, %arg1, %c0_i32 : i32
    %35 = arith.extui %34 : i1 to i32
    %c0_i32_30 = arith.constant 0 : i32
    %36 = arith.cmpi ne, %35, %c0_i32_30 : i32
    scf.if %36 {
      %cst_61 = arith.constant 0.000000e+00 : bf16
      %69 = vector.broadcast %cst_61 : bf16 to vector<1x24x128xbf16>
      %c0_62 = arith.constant 0 : index
      %c0_63 = arith.constant 0 : index
      %c0_64 = arith.constant 0 : index
      %70 = vector.load %arg9[%c0_62, %c0_63, %c0_64] : memref<18x24x128xbf16, #tpu.memory_space<vmem>>, vector<1x24x128xbf16>
      tpu.vector_store %arg9[%c0_62, %c0_63, %c0_64], %69 {strides = array<i32>} : memref<18x24x128xbf16, #tpu.memory_space<vmem>>, vector<1x24x128xbf16>,
    } else {
    }
    %c0_i32_31 = arith.constant 0 : i32
    %37 = arith.cmpi eq, %arg1, %c0_i32_31 : i32
    %38 = arith.extui %37 : i1 to i32
    %c0_i32_32 = arith.constant 0 : i32
    %39 = arith.cmpi ne, %38, %c0_i32_32 : i32
    scf.if %39 {
      %cst_61 = arith.constant 0.000000e+00 : bf16
      %69 = vector.broadcast %cst_61 : bf16 to vector<1x24x128xbf16>
      %c17_62 = arith.constant 17 : index
      %c0_63 = arith.constant 0 : index
      %c0_64 = arith.constant 0 : index
      %70 = vector.load %arg9[%c17_62, %c0_63, %c0_64] : memref<18x24x128xbf16, #tpu.memory_space<vmem>>, vector<1x24x128xbf16>
      tpu.vector_store %arg9[%c17_62, %c0_63, %c0_64], %69 {strides = array<i32>} : memref<18x24x128xbf16, #tpu.memory_space<vmem>>, vector<1x24x128xbf16>,
    } else {
    }
    %c0_33 = arith.constant 0 : index
    %c0_34 = arith.constant 0 : index
    %c0_35 = arith.constant 0 : index
    %40 = vector.load %arg9[%c0_33, %c0_34, %c0_35] : memref<18x24x128xbf16, #tpu.memory_space<vmem>>, vector<18x16x128xbf16>
    %c0_36 = arith.constant 0 : index
    %c1_37 = arith.constant 1 : index
    %c0_38 = arith.constant 0 : index
    %41 = vector.load %arg9[%c0_36, %c1_37, %c0_38] : memref<18x24x128xbf16, #tpu.memory_space<vmem>>, vector<18x16x128xbf16>
    %c0_39 = arith.constant 0 : index
    %c2_40 = arith.constant 2 : index
    %c0_41 = arith.constant 0 : index
    %42 = vector.load %arg9[%c0_39, %c2_40, %c0_41] : memref<18x24x128xbf16, #tpu.memory_space<vmem>>, vector<18x16x128xbf16>
    %43 = tpu.concatenate %40, %41, %42 in 2 : vector<18x16x128xbf16>, vector<18x16x128xbf16>, vector<18x16x128xbf16> -> vector<18x16x384xbf16>
    %44 = vector.shape_cast %43 : vector<18x16x384xbf16> to vector<288x384xbf16>
    %45 = vector.extract_strided_slice %44 {offsets = [0, 0], sizes = [256, 384], strides = [1, 1]} : vector<288x384xbf16> to vector<256x384xbf16>
    %c0_42 = arith.constant 0 : index
    %c0_43 = arith.constant 0 : index
    %c0_44 = arith.constant 0 : index
    %46 = vector.load %arg5[%c0_42, %c0_43, %c0_44] : memref<3x384x128xbf16, #tpu.memory_space<vmem>>, vector<1x384x128xbf16>
    %47 = vector.shape_cast %46 : vector<1x384x128xbf16> to vector<384x128xbf16>
    %cst_45 = arith.constant dense<0.000000e+00> : vector<256x128xf32>
    %48 = tpu.matmul %45, %47, %cst_45 {dimension_numbers = #tpu.dot_dimension_numbers<[1], [0], [0], [1], [0, 0, 1, 1], [], []>} : vector<256x384xbf16>, vector<384x128xbf16>, vector<256x128xf32> -> vector<256x128xf32>
    %49 = vector.extract_strided_slice %44 {offsets = [16, 0], sizes = [256, 384], strides = [1, 1]} : vector<288x384xbf16> to vector<256x384xbf16>
    %c1_46 = arith.constant 1 : index
    %c0_47 = arith.constant 0 : index
    %c0_48 = arith.constant 0 : index
    %50 = vector.load %arg5[%c1_46, %c0_47, %c0_48] : memref<3x384x128xbf16, #tpu.memory_space<vmem>>, vector<1x384x128xbf16>
    %51 = vector.shape_cast %50 : vector<1x384x128xbf16> to vector<384x128xbf16>
    %cst_49 = arith.constant dense<0.000000e+00> : vector<256x128xf32>
    %52 = tpu.matmul %49, %51, %cst_49 {dimension_numbers = #tpu.dot_dimension_numbers<[1], [0], [0], [1], [0, 0, 1, 1], [], []>} : vector<256x384xbf16>, vector<384x128xbf16>, vector<256x128xf32> -> vector<256x128xf32>
    %53 = arith.addf %48, %52 : vector<256x128xf32>
    %54 = vector.extract_strided_slice %44 {offsets = [32, 0], sizes = [256, 384], strides = [1, 1]} : vector<288x384xbf16> to vector<256x384xbf16>
    %c2_50 = arith.constant 2 : index
    %c0_51 = arith.constant 0 : index
    %c0_52 = arith.constant 0 : index
    %55 = vector.load %arg5[%c2_50, %c0_51, %c0_52] : memref<3x384x128xbf16, #tpu.memory_space<vmem>>, vector<1x384x128xbf16>
    %56 = vector.shape_cast %55 : vector<1x384x128xbf16> to vector<384x128xbf16>
    %cst_53 = arith.constant dense<0.000000e+00> : vector<256x128xf32>
    %57 = tpu.matmul %54, %56, %cst_53 {dimension_numbers = #tpu.dot_dimension_numbers<[1], [0], [0], [1], [0, 0, 1, 1], [], []>} : vector<256x384xbf16>, vector<384x128xbf16>, vector<256x128xf32> -> vector<256x128xf32>
    %58 = arith.addf %53, %57 : vector<256x128xf32>
    %c0_54 = arith.constant 0 : index
    %c0_55 = arith.constant 0 : index
    %59 = vector.load %arg6[%c0_54, %c0_55] : memref<1x128xf32, #tpu.memory_space<vmem>>, vector<1x128xf32>
    %60 = vector.broadcast %59 : vector<1x128xf32> to vector<256x128xf32>
    %61 = arith.addf %58, %60 : vector<256x128xf32>
    %cst_56 = arith.constant 2.000000e-01 : f32
    %62 = vector.broadcast %cst_56 : f32 to vector<256x128xf32>
    %63 = arith.mulf %62, %61 : vector<256x128xf32>
    %64 = arith.maximumf %61, %63 : vector<256x128xf32>
    %65 = vector.shape_cast %64 : vector<256x128xf32> to vector<16x16x128xf32>
    %c0_57 = arith.constant 0 : index
    %c0_58 = arith.constant 0 : index
    %c0_59 = arith.constant 0 : index
    %c0_60 = arith.constant 0 : index
    %66 = vector.load %arg7[%c0_57, %c0_58, %c0_59, %c0_60] : memref<1x16x16x128xf32, #tpu.memory_space<vmem>>, vector<1x16x16x128xf32>
    %67 = vector.shape_cast %66 : vector<1x16x16x128xf32> to vector<16x16x128xf32>
    %68 = vector.shape_cast %65 : vector<16x16x128xf32> to vector<1x16x16x128xf32>
    tpu.vector_store %arg7[%c0_57, %c0_58, %c0_59, %c0_60], %68 {strides = array<i32>} : memref<1x16x16x128xf32, #tpu.memory_space<vmem>>, vector<1x16x16x128xf32>,
    return
  }
  func.func @transform_1(%arg0: i32, %arg1: i32) -> (i32, i32, i32) {
    %c0_i32 = arith.constant 0 : i32
    %c0_i32_0 = arith.constant 0 : i32
    %c0_i32_1 = arith.constant 0 : i32
    %c0_i32_2 = arith.constant 0 : i32
    return %c0_i32, %c0_i32_0, %c0_i32_1 : i32, i32, i32
  }
  func.func @transform_2(%arg0: i32, %arg1: i32) -> (i32, i32) {
    %c0_i32 = arith.constant 0 : i32
    %c0_i32_0 = arith.constant 0 : i32
    %c0_i32_1 = arith.constant 0 : i32
    return %c0_i32, %c0_i32_0 : i32, i32
  }
  func.func @transform_3(%arg0: i32, %arg1: i32) -> (i32, i32, i32) {
    %c0_i32 = arith.constant 0 : i32
    %c0_i32_0 = arith.constant 0 : i32
    %c0_i32_1 = arith.constant 0 : i32
    %c0_i32_2 = arith.constant 0 : i32
    return %c0_i32, %c0_i32_0, %c0_i32_1 : i32, i32, i32
  }
  func.func @transform_4(%arg0: i32, %arg1: i32) -> (i32, i32) {
    %c0_i32 = arith.constant 0 : i32
    %c0_i32_0 = arith.constant 0 : i32
    %c0_i32_1 = arith.constant 0 : i32
    return %c0_i32, %c0_i32_0 : i32, i32
  }
  func.func @transform_5(%arg0: i32, %arg1: i32) -> (i32, i32, i32, i32) {
    %c0_i32 = arith.constant 0 : i32
    %c0_i32_0 = arith.constant 0 : i32
    %c0_i32_1 = arith.constant 0 : i32
    return %arg0, %arg1, %c0_i32, %c0_i32_0 : i32, i32, i32, i32
  }
}

</mosaic_0001>

<llo_original>
// kernel: tpu_custom_call.1
$region0: #{tpu_custom_call.1}
  #allocation0 [shape = 'u32[]', space=smem, size = 0x4, offset = 0x4, fixed_abs, tag = 'smem constant byte address 0x4 - core index']
  #allocation1 [shape = 'u32[72,128]{1,0:T(1,128)}', space=vmem, size = 0x9000, scoped, tag = 'internal scratch']
  #allocation2 [shape = 'bf16[20,32,128]{2,1,0:T(8,128)(2,1)}', space=vmem, size = 0x28000, scoped, tag = 'scratch operand']
  #allocation3 [shape = 'bf16[18,24,128]{2,1,0:T(8,128)(2,1)}', space=vmem, size = 0x1b000, scoped, tag = 'scratch operand']
  #allocation11 [shape = 's32[]', space=sflag, size = 0x4, offset = 0, fixed_abs, tag = 'sflag constant byte address 0x0 - dummy sync flag']
  #allocation12 [shape = 's32[]', space=sflag, size = 0x4, offset = 0, fixed_abs, tag = 'sflag constant byte address 0x0 - dummy sync flag']
  #allocation13 [shape = 'u32[]', space=smem, size = 0x4, offset = 0x44, fixed_abs, tag = 'smem constant byte address 0x44 - assertion arg 0']
  #allocation14 [shape = 'u32[]', space=smem, size = 0x4, offset = 0x48, fixed_abs, tag = 'smem constant byte address 0x48 - assertion arg 1']
  %s0 = inlined_call_operand.hbm [shape: bf16[2,20,32,128], index: 0, kind: input, shape index: {}]
  %s1 = inlined_call_operand.hbm [shape: bf16[3,384,128], index: 1, kind: input, shape index: {}]
  %s2 = inlined_call_operand.vmem [shape: f32[1,128], index: 2, kind: input, shape index: {}]
  %s3 = inlined_call_operand.hbm [shape: bf16[3,384,128], index: 3, kind: input, shape index: {}]
  %s4 = inlined_call_operand.vmem [shape: f32[1,128], index: 4, kind: input, shape index: {}]
  %s5 = inlined_call_operand.hbm [shape: f32[2,16,16,128], index: 5, kind: output, shape index: {}]
  %s6 = sld [smem:[#allocation0]]
  $region66: #{tpu_custom_call.1} parent=0
    _
  %s8 = ssub.s32 1, %s6
  %s9 = scalar_select 0, %s8, %s6
  $region1: #{tpu_custom_call.1} parent=0
    #allocation4 [shape = 'u8[294912]{0}', space=vmem, size = 0x48000, scoped, tag = 'input window, operand 1, single buffered']
    #allocation5 [shape = 's32[2]{0}', space=sflag, size = 0x8, scoped, tag = 'scoped memory for tpu_custom_call.1']
    #allocation6 [shape = 's32[2]{0}', space=sflag, size = 0x8, scoped, tag = 'scoped memory for tpu_custom_call.1']
    #allocation7 [shape = 'u8[294912]{0}', space=vmem, size = 0x48000, scoped, tag = 'input window, operand 3, single buffered']
    #allocation8 [shape = 's32[1]{0}', space=sflag, size = 0x4, scoped, tag = 'scoped memory for tpu_custom_call.1']
    #allocation9 [shape = 'u8[262144]{0}', space=vmem, size = 0x40000, scoped, tag = 'output window, operand 0']
    %10 = vsyncpa [#allocation5], 0
    %11 = vsyncpa [#allocation8], 0
    %12 = vsyncpa [#allocation6], 0
    %s13 = scalar_lea.sflag [#allocation6], 1
    %14 = vsyncpa %s13, 0
    loop: start=0, step=1, limit=4
    $region2: #{tpu_custom_call.1} parent=1 // loop_pre_header
      _
    $region3: #{tpu_custom_call.1} parent=1 // loop_header
      %s16 = sphi 0, %s20
      %p17 = scmp.ge.s32.totalorder %s16, 4
      %s23 = sphi 0, %s35
      %s24 = sphi 0, %s31
      %s25 = sphi 0, %s23
      %s26 = sphi 0, %s24
      %s27 = sphi 0, %s25
      %s28 = sphi 0, %s26
      %s36 = sphi 0, %s36
      %s38 = sphi 0, %s36
      %s39 = sphi 0, %s38
      %s53 = sphi 0, %s39
      %s57 = sphi 0, %s57
      %s59 = sphi 0, %s57
      %s60 = sphi 0, %s59
      %s74 = sphi 0, %s60
      %s78 = sphi 0, %s78
      %s80 = sphi 0, %s78
      %s81 = sphi 0, %s80
      %s95 = sphi 0, %s81
      %s99 = sphi 0, %s99
      %s101 = sphi 0, %s99
      %s102 = sphi 0, %s101
      %s116 = sphi 0, %s102
      %s124 = sphi 0, %s126
      %s127 = sphi 0, %s124
      %s128 = sphi 0, %s127
      %s144 = sphi 0, %s128
    $region4: #{tpu_custom_call.1} parent=1 // loop_header_branch
      %19 = sbr.rel (%p17) target = $region8
    $region5: #{tpu_custom_call.1} parent=1 // loop_body
      %s21 = ssub.s32 %s16, 1
      %s22 = ssub.s32 %s16, 2
      %s29 = sadd.s32 1, %s24
      %p30 = scmp.ge.s32.totalorder %s29, 1
      %s31 = scalar_select %p30, 0, %s29
      %s32 = sadd.s32 1, %s23
      %s33 = scalar_select %p30, %s32, %s23
      %p34 = scmp.ge.s32.totalorder %s33, 2
      %s35 = scalar_select %p34, 0, %s33
      %s37 = sadd.s32 %s36, 1
      %p40 = scmp.eq.s32.totalorder %s16, 1
      %p41 = scmp.ne.s32.totalorder %s36, %s38
      %p42 = scmp.eq.s32.totalorder %s16, 0
      %p43 = por %p41, %p42
      %p44 = scmp.ne.s32.totalorder %s36, %s38
      %p45 = scmp.eq.s32.totalorder %s21, 1
      %p46 = por %p44, %p45
      %p47 = scmp.ne.s32.totalorder %s38, %s39
      %p48 = scmp.eq.s32.totalorder %s21, 0
      %p49 = por %p47, %p48
      %p50 = scmp.ne.s32.totalorder %s38, %s39
      %p51 = scmp.eq.s32.totalorder %s22, 1
      %p52 = por %p50, %p51
      %p54 = scmp.ne.s32.totalorder %s39, %s53
      %p55 = scmp.eq.s32.totalorder %s22, 0
      %p56 = por %p54, %p55
      %s58 = sadd.s32 %s57, 1
      %p61 = scmp.eq.s32.totalorder %s16, 1
      %p62 = scmp.ne.s32.totalorder %s57, %s59
      %p63 = scmp.eq.s32.totalorder %s16, 0
      %p64 = por %p62, %p63
      %p65 = scmp.ne.s32.totalorder %s57, %s59
      %p66 = scmp.eq.s32.totalorder %s21, 1
      %p67 = por %p65, %p66
      %p68 = scmp.ne.s32.totalorder %s59, %s60
      %p69 = scmp.eq.s32.totalorder %s21, 0
      %p70 = por %p68, %p69
      %p71 = scmp.ne.s32.totalorder %s59, %s60
      %p72 = scmp.eq.s32.totalorder %s22, 1
      %p73 = por %p71, %p72
      %p75 = scmp.ne.s32.totalorder %s60, %s74
      %p76 = scmp.eq.s32.totalorder %s22, 0
      %p77 = por %p75, %p76
      %s79 = sadd.s32 %s78, 1
      %p82 = scmp.eq.s32.totalorder %s16, 1
      %p83 = scmp.ne.s32.totalorder %s78, %s80
      %p84 = scmp.eq.s32.totalorder %s16, 0
      %p85 = por %p83, %p84
      %p86 = scmp.ne.s32.totalorder %s78, %s80
      %p87 = scmp.eq.s32.totalorder %s21, 1
      %p88 = por %p86, %p87
      %p89 = scmp.ne.s32.totalorder %s80, %s81
      %p90 = scmp.eq.s32.totalorder %s21, 0
      %p91 = por %p89, %p90
      %p92 = scmp.ne.s32.totalorder %s80, %s81
      %p93 = scmp.eq.s32.totalorder %s22, 1
      %p94 = por %p92, %p93
      %p96 = scmp.ne.s32.totalorder %s81, %s95
      %p97 = scmp.eq.s32.totalorder %s22, 0
      %p98 = por %p96, %p97
      %s100 = sadd.s32 %s99, 1
      %p103 = scmp.eq.s32.totalorder %s16, 1
      %p104 = scmp.ne.s32.totalorder %s99, %s101
      %p105 = scmp.eq.s32.totalorder %s16, 0
      %p106 = por %p104, %p105
      %p107 = scmp.ne.s32.totalorder %s99, %s101
      %p108 = scmp.eq.s32.totalorder %s21, 1
      %p109 = por %p107, %p108
      %p110 = scmp.ne.s32.totalorder %s101, %s102
      %p111 = scmp.eq.s32.totalorder %s21, 0
      %p112 = por %p110, %p111
      %p113 = scmp.ne.s32.totalorder %s101, %s102
      %p114 = scmp.eq.s32.totalorder %s22, 1
      %p115 = por %p113, %p114
      %p117 = scmp.ne.s32.totalorder %s102, %s116
      %p118 = scmp.eq.s32.totalorder %s22, 0
      %p119 = por %p117, %p118
      %s120 = ssub.s32 %s23, %s35
      %s121 = ssub.s32 %s24, %s31
      %s122 = sor.u32 %s120, %s121
      %p123 = scmp.eq.s32.totalorder %s122, 0
      %s125 = sadd.s32 %s124, 1
      %s126 = scalar_select %p123, %s124, %s125
      %p129 = pneg %p123
      %p130 = scmp.eq.s32.totalorder %s16, 1
      %p131 = por %p129, %p130
      %p132 = scmp.ne.s32.totalorder %s124, %s127
      %p133 = scmp.eq.s32.totalorder %s16, 0
      %p134 = por %p132, %p133
      %p135 = scmp.ne.s32.totalorder %s124, %s127
      %p136 = scmp.eq.s32.totalorder %s21, 1
      %p137 = por %p135, %p136
      %p138 = scmp.ne.s32.totalorder %s127, %s128
      %p139 = scmp.eq.s32.totalorder %s21, 0
      %p140 = por %p138, %p139
      %p141 = scmp.ne.s32.totalorder %s127, %s128
      %p142 = scmp.eq.s32.totalorder %s22, 1
      %p143 = por %p141, %p142
      %p145 = scmp.ne.s32.totalorder %s128, %s144
      %p146 = scmp.eq.s32.totalorder %s22, 0
      %p147 = por %p145, %p146
      %p148 = scmp.le.s32.totalorder 1, %s16
      %p149 = scmp.lt.s32.totalorder %s16, 3
      %p150 = pnand %p148, %p149
      %p151 = pneg %p150
      // Predicated region
      $region9: #{tpu_custom_call.1} parent=5 // pred_check
        _
      $region10: #{tpu_custom_call.1} parent=5 // pred_check_branch
        %153 = sbr.rel (%p150) target = $region12
      $region11: #{tpu_custom_call.1} parent=5 // pred_region
        %s154 = ssub.s32 %s16, 1
        // Predicated region
        $region13: #{tpu_custom_call.1} parent=11 // pred_check
          %p155 = pneg %p49
        $region14: #{tpu_custom_call.1} parent=11 // pred_check_branch
          %157 = sbr.rel (%p155) target = $region16
        $region15: #{tpu_custom_call.1} parent=11 // pred_region
          %159 = vsyncadd [#allocation5], 0
          %s160 = sshll.u32 %s1, 4
          %s161 = int_to_ptr.hbm [resolvable:$true] %s160
          %s162 = sshll.u32 [#allocation4], 4
          %s163 = int_to_ptr.vmem [resolvable:$true] %s162
          %168 = dma.hbm_to_vmem [thread:$0]  %s161, 9216, %s163, [#allocation5], 64, 64, 4
        $region16: #{tpu_custom_call.1} parent=11 // pred_fallthru
          _
        // Predicated region
        $region17: #{tpu_custom_call.1} parent=11 // pred_check
          %p169 = pneg %p70
        $region18: #{tpu_custom_call.1} parent=11 // pred_check_branch
          %171 = sbr.rel (%p169) target = $region20
        $region19: #{tpu_custom_call.1} parent=11 // pred_region
          _
        $region20: #{tpu_custom_call.1} parent=11 // pred_fallthru
          _
        // Predicated region
        $region21: #{tpu_custom_call.1} parent=11 // pred_check
          %p172 = pneg %p91
        $region22: #{tpu_custom_call.1} parent=11 // pred_check_branch
          %174 = sbr.rel (%p172) target = $region24
        $region23: #{tpu_custom_call.1} parent=11 // pred_region
          %176 = vsyncadd [#allocation8], 0
          %s177 = sshll.u32 %s3, 4
          %s178 = int_to_ptr.hbm [resolvable:$true] %s177
          %s179 = sshll.u32 [#allocation7], 4
          %s180 = int_to_ptr.vmem [resolvable:$true] %s179
          %185 = dma.hbm_to_vmem [thread:$0]  %s178, 9216, %s180, [#allocation8], 64, 64, 4
        $region24: #{tpu_custom_call.1} parent=11 // pred_fallthru
          _
        // Predicated region
        $region25: #{tpu_custom_call.1} parent=11 // pred_check
          %p186 = pneg %p112
        $region26: #{tpu_custom_call.1} parent=11 // pred_check_branch
          %188 = sbr.rel (%p186) target = $region28
        $region27: #{tpu_custom_call.1} parent=11 // pred_region
          _
        $region28: #{tpu_custom_call.1} parent=11 // pred_fallthru
          _
      $region12: #{tpu_custom_call.1} parent=5 // pred_fallthru
        _
      %p189 = scmp.lt.s32.totalorder %s16, 2
      // Predicated region
      $region29: #{tpu_custom_call.1} parent=5 // pred_check
        %p190 = pneg %p189
      $region30: #{tpu_custom_call.1} parent=5 // pred_check_branch
        %192 = sbr.rel (%p190) target = $region32
      $region31: #{tpu_custom_call.1} parent=5 // pred_region
        _
      $region32: #{tpu_custom_call.1} parent=5 // pred_fallthru
        _
      %p193 = scmp.le.s32.totalorder 1, %s16
      %p194 = scmp.lt.s32.totalorder %s16, 3
      %p195 = pnand %p193, %p194
      %p196 = pneg %p195
      // Predicated region
      $region33: #{tpu_custom_call.1} parent=5 // pred_check
        _
      $region34: #{tpu_custom_call.1} parent=5 // pred_check_branch
        %198 = sbr.rel (%p195) target = $region36
      $region35: #{tpu_custom_call.1} parent=5 // pred_region
        %s199 = ssub.s32 %s16, 1
        // Predicated region
        $region37: #{tpu_custom_call.1} parent=35 // pred_check
          %p200 = pneg %p49
        $region38: #{tpu_custom_call.1} parent=35 // pred_check_branch
          %202 = sbr.rel (%p200) target = $region40
        $region39: #{tpu_custom_call.1} parent=35 // pred_region
          %204 = dma.done [#allocation5], 9216
        $region40: #{tpu_custom_call.1} parent=35 // pred_fallthru
          _
        // Predicated region
        $region41: #{tpu_custom_call.1} parent=35 // pred_check
          %p205 = pneg %p91
        $region42: #{tpu_custom_call.1} parent=35 // pred_check_branch
          %207 = sbr.rel (%p205) target = $region44
        $region43: #{tpu_custom_call.1} parent=35 // pred_region
          %209 = dma.done [#allocation8], 9216
        $region44: #{tpu_custom_call.1} parent=35 // pred_fallthru
          _
        %p210 = pneg %p49
        %p211 = pneg %p46
        %p212 = pneg %p70
        %p213 = pneg %p67
        %p214 = pneg %p91
        %p215 = pneg %p88
        %p216 = pneg %p112
        %p217 = pneg %p109
        %p218 = pneg %p140
        %p219 = pneg %p137
        %s220 = sand.u32 %s127, 1
        %s221 = scalar_lea.sflag [#allocation6], %s220
        %s222 = sand.u32 %s127, 1
        %s223 = smul.addr %s222, 256
        %s224 = scalar_lea.vmem [#allocation9], %s223
        %s225 = smul.u32 16, %s26
        %s227 = smul.u32 %s26, 16
        $region45: #{tpu_custom_call.1} parent=35
          #allocation10 [shape = 's32[1]{0}', space=sflag, size = 0x4, scoped, tag = 'scoped memory for tpu_custom_call.1']
          %s228 = smul.u32 %s227, 4
          %s229 = smul.u32 %s25, 80
          %s230 = sadd.s32 %s228, %s229
          %s231 = smul.addr %s230, 4
          %s232 = scalar_lea.hbm %s0, %s231
          // Predicated region
          $region46: #{tpu_custom_call.1} parent=45 // pred_check
            _
          $region47: #{tpu_custom_call.1} parent=45 // pred_check_branch
            %234 = sbr.rel target = $region49
          $region48: #{tpu_custom_call.1} parent=45 // pred_region
            %235 = sst [smem:[#allocation13]] [#allocation12]
            %236 = sst [smem:[#allocation14]] [#allocation11]
          $region49: #{tpu_custom_call.1} parent=45 // pred_fallthru
            _
          %238 = shalt.err (0)
          %s240 = sshll.u32 %s232, 4
          %s241 = int_to_ptr.hbm [resolvable:$true] %s240
          %s242 = sshll.u32 [#allocation2], 4
          %s243 = int_to_ptr.vmem [resolvable:$true] %s242
          %245 = dma.hbm_to_vmem [thread:$0]  %s241, 5120, %s243, [#allocation10]
          %s246 = smul.u32 4, 20
          %s247 = smul.u32 %s246, 4
          %s248 = smul.u32 %s247, 1
          %s249 = sshll.u32 %s248, 4
          %250 = dma.done [#allocation10], %s249
        %v251 = vld [vmem:[#allocation2] sm:$0xf]
        %v252 = vld [vmem:[#allocation2 + $0x4] sm:$0xf]
        %v253 = vld [vmem:[#allocation2 + $0x8] sm:$0xf]
        %v254 = vld [vmem:[#allocation2 + $0x10] sm:$0xf]
        %v255 = vld [vmem:[#allocation2 + $0x14] sm:$0xf]
        %v256 = vld [vmem:[#allocation2 + $0x18] sm:$0xf]
        %v257 = vld [vmem:[#allocation2 + $0x20] sm:$0xf]
        %v258 = vld [vmem:[#allocation2 + $0x24] sm:$0xf]
        %v259 = vld [vmem:[#allocation2 + $0x28] sm:$0xf]
        %v260 = vld [vmem:[#allocation2 + $0x30] sm:$0xf]
        %v261 = vld [vmem:[#allocation2 + $0x34] sm:$0xf]
        %v262 = vld [vmem:[#allocation2 + $0x38] sm:$0xf]
        %v263 = vld [vmem:[#allocation2 + $0x40] sm:$0xf]
        %v264 = vld [vmem:[#allocation2 + $0x44] sm:$0xf]
        %v265 = vld [vmem:[#allocation2 + $0x48] sm:$0xf]
        %v266 = vld [vmem:[#allocation2 + $0x50] sm:$0xf]
        %v267 = vld [vmem:[#allocation2 + $0x54] sm:$0xf]
        %v268 = vld [vmem:[#allocation2 + $0x58] sm:$0xf]
        %v269 = vld [vmem:[#allocation2 + $0x60] sm:$0xf]
        %v270 = vld [vmem:[#allocation2 + $0x64] sm:$0xf]
        %v271 = vld [vmem:[#allocation2 + $0x68] sm:$0xf]
        %v272 = vld [vmem:[#allocation2 + $0x70] sm:$0xf]
        %v273 = vld [vmem:[#allocation2 + $0x74] sm:$0xf]
        %v274 = vld [vmem:[#allocation2 + $0x78] sm:$0xf]
        %v275 = vld [vmem:[#allocation2 + $0x80] sm:$0xf]
        %v276 = vld [vmem:[#allocation2 + $0x84] sm:$0xf]
        %v277 = vld [vmem:[#allocation2 + $0x88] sm:$0xf]
        %v278 = vld [vmem:[#allocation2 + $0x90] sm:$0xf]
        %v279 = vld [vmem:[#allocation2 + $0x94] sm:$0xf]
        %v280 = vld [vmem:[#allocation2 + $0x98] sm:$0xf]
        %v281 = vld [vmem:[#allocation2 + $0xa0] sm:$0xf]
        %v282 = vld [vmem:[#allocation2 + $0xa4] sm:$0xf]
        %v283 = vld [vmem:[#allocation2 + $0xa8] sm:$0xf]
        %v284 = vld [vmem:[#allocation2 + $0xb0] sm:$0xf]
        %v285 = vld [vmem:[#allocation2 + $0xb4] sm:$0xf]
        %v286 = vld [vmem:[#allocation2 + $0xb8] sm:$0xf]
        %v287 = vld [vmem:[#allocation2 + $0xc0] sm:$0xf]
        %v288 = vld [vmem:[#allocation2 + $0xc4] sm:$0xf]
        %v289 = vld [vmem:[#allocation2 + $0xc8] sm:$0xf]
        %v290 = vld [vmem:[#allocation2 + $0xd0] sm:$0xf]
        %v291 = vld [vmem:[#allocation2 + $0xd4] sm:$0xf]
        %v292 = vld [vmem:[#allocation2 + $0xd8] sm:$0xf]
        %v293 = vld [vmem:[#allocation2 + $0xe0] sm:$0xf]
        %v294 = vld [vmem:[#allocation2 + $0xe4] sm:$0xf]
        %v295 = vld [vmem:[#allocation2 + $0xe8] sm:$0xf]
        %v296 = vld [vmem:[#allocation2 + $0xf0] sm:$0xf]
        %v297 = vld [vmem:[#allocation2 + $0xf4] sm:$0xf]
        %v298 = vld [vmem:[#allocation2 + $0xf8] sm:$0xf]
        %v299 = vld [vmem:[#allocation2 + $0x100] sm:$0xf]
        %v300 = vld [vmem:[#allocation2 + $0x104] sm:$0xf]
        %v301 = vld [vmem:[#allocation2 + $0x108] sm:$0xf]
        %v302 = vld [vmem:[#allocation2 + $0x110] sm:$0xf]
        %v303 = vld [vmem:[#allocation2 + $0x114] sm:$0xf]
        %v304 = vld [vmem:[#allocation2 + $0x118] sm:$0xf]
        %v305 = vld [vmem:[#allocation2 + $0x120] sm:$0xf]
        %v306 = vld [vmem:[#allocation2 + $0x124] sm:$0xf]
        %v307 = vld [vmem:[#allocation2 + $0x128] sm:$0xf]
        %v308 = vld [vmem:[#allocation2 + $0x130] sm:$0xf]
        %v309 = vld [vmem:[#allocation2 + $0x134] sm:$0xf]
        %v310 = vld [vmem:[#allocation2 + $0x138] sm:$0xf]
        %v311 = vld [vmem:[#allocation2] sm:$0xf]
        %v312 = vld [vmem:[#allocation2 + $0x4] sm:$0xf]
        %v313 = vld [vmem:[#allocation2 + $0x8] sm:$0xf]
        %v314 = vld [vmem:[#allocation2 + $0xc] sm:$0x1]
        %v315 = vld [vmem:[#allocation2 + $0x10] sm:$0xf]
        %v316 = vld [vmem:[#allocation2 + $0x14] sm:$0xf]
        %v317 = vld [vmem:[#allocation2 + $0x18] sm:$0xf]
        %v318 = vld [vmem:[#allocation2 + $0x1c] sm:$0x1]
        %v319 = vld [vmem:[#allocation2 + $0x20] sm:$0xf]
        %v320 = vld [vmem:[#allocation2 + $0x24] sm:$0xf]
        %v321 = vld [vmem:[#allocation2 + $0x28] sm:$0xf]
        %v322 = vld [vmem:[#allocation2 + $0x2c] sm:$0x1]
        %v323 = vld [vmem:[#allocation2 + $0x30] sm:$0xf]
        %v324 = vld [vmem:[#allocation2 + $0x34] sm:$0xf]
        %v325 = vld [vmem:[#allocation2 + $0x38] sm:$0xf]
        %v326 = vld [vmem:[#allocation2 + $0x3c] sm:$0x1]
        %v327 = vld [vmem:[#allocation2 + $0x40] sm:$0xf]
        %v328 = vld [vmem:[#allocation2 + $0x44] sm:$0xf]
        %v329 = vld [vmem:[#allocation2 + $0x48] sm:$0xf]
        %v330 = vld [vmem:[#allocation2 + $0x4c] sm:$0x1]
        %v331 = vld [vmem:[#allocation2 + $0x50] sm:$0xf]
        %v332 = vld [vmem:[#allocation2 + $0x54] sm:$0xf]
        %v333 = vld [vmem:[#allocation2 + $0x58] sm:$0xf]
        %v334 = vld [vmem:[#allocation2 + $0x5c] sm:$0x1]
        %v335 = vld [vmem:[#allocation2 + $0x60] sm:$0xf]
        %v336 = vld [vmem:[#allocation2 + $0x64] sm:$0xf]
        %v337 = vld [vmem:[#allocation2 + $0x68] sm:$0xf]
        %v338 = vld [vmem:[#allocation2 + $0x6c] sm:$0x1]
        %v339 = vld [vmem:[#allocation2 + $0x70] sm:$0xf]
        %v340 = vld [vmem:[#allocation2 + $0x74] sm:$0xf]
        %v341 = vld [vmem:[#allocation2 + $0x78] sm:$0xf]
        %v342 = vld [vmem:[#allocation2 + $0x7c] sm:$0x1]
        %v343 = vld [vmem:[#allocation2 + $0x80] sm:$0xf]
        %v344 = vld [vmem:[#allocation2 + $0x84] sm:$0xf]
        %v345 = vld [vmem:[#allocation2 + $0x88] sm:$0xf]
        %v346 = vld [vmem:[#allocation2 + $0x8c] sm:$0x1]
        %v347 = vld [vmem:[#allocation2 + $0x90] sm:$0xf]
        %v348 = vld [vmem:[#allocation2 + $0x94] sm:$0xf]
        %v349 = vld [vmem:[#allocation2 + $0x98] sm:$0xf]
        %v350 = vld [vmem:[#allocation2 + $0x9c] sm:$0x1]
        %v351 = vld [vmem:[#allocation2 + $0xa0] sm:$0xf]
        %v352 = vld [vmem:[#allocation2 + $0xa4] sm:$0xf]
        %v353 = vld [vmem:[#allocation2 + $0xa8] sm:$0xf]
        %v354 = vld [vmem:[#allocation2 + $0xac] sm:$0x1]
        %v355 = vld [vmem:[#allocation2 + $0xb0] sm:$0xf]
        %v356 = vld [vmem:[#allocation2 + $0xb4] sm:$0xf]
        %v357 = vld [vmem:[#allocation2 + $0xb8] sm:$0xf]
        %v358 = vld [vmem:[#allocation2 + $0xbc] sm:$0x1]
        %v359 = vld [vmem:[#allocation2 + $0xc0] sm:$0xf]
        %v360 = vld [vmem:[#allocation2 + $0xc4] sm:$0xf]
        %v361 = vld [vmem:[#allocation2 + $0xc8] sm:$0xf]
        %v362 = vld [vmem:[#allocation2 + $0xcc] sm:$0x1]
        %v363 = vld [vmem:[#allocation2 + $0xd0] sm:$0xf]
        %v364 = vld [vmem:[#allocation2 + $0xd4] sm:$0xf]
        %v365 = vld [vmem:[#allocation2 + $0xd8] sm:$0xf]
        %v366 = vld [vmem:[#allocation2 + $0xdc] sm:$0x1]
        %v367 = vld [vmem:[#allocation2 + $0xe0] sm:$0xf]
        %v368 = vld [vmem:[#allocation2 + $0xe4] sm:$0xf]
        %v369 = vld [vmem:[#allocation2 + $0xe8] sm:$0xf]
        %v370 = vld [vmem:[#allocation2 + $0xec] sm:$0x1]
        %v371 = vld [vmem:[#allocation2 + $0xf0] sm:$0xf]
        %v372 = vld [vmem:[#allocation2 + $0xf4] sm:$0xf]
        %v373 = vld [vmem:[#allocation2 + $0xf8] sm:$0xf]
        %v374 = vld [vmem:[#allocation2 + $0xfc] sm:$0x1]
        %v375 = vld [vmem:[#allocation2 + $0x100] sm:$0xf]
        %v376 = vld [vmem:[#allocation2 + $0x104] sm:$0xf]
        %v377 = vld [vmem:[#allocation2 + $0x108] sm:$0xf]
        %v378 = vld [vmem:[#allocation2 + $0x10c] sm:$0x1]
        %v379 = vld [vmem:[#allocation2 + $0x110] sm:$0xf]
        %v380 = vld [vmem:[#allocation2 + $0x114] sm:$0xf]
        %v381 = vld [vmem:[#allocation2 + $0x118] sm:$0xf]
        %v382 = vld [vmem:[#allocation2 + $0x11c] sm:$0x1]
        %v383 = vld [vmem:[#allocation2 + $0x120] sm:$0xf]
        %v384 = vld [vmem:[#allocation2 + $0x124] sm:$0xf]
        %v385 = vld [vmem:[#allocation2 + $0x128] sm:$0xf]
        %v386 = vld [vmem:[#allocation2 + $0x12c] sm:$0x1]
        %v387 = vld [vmem:[#allocation2 + $0x130] sm:$0xf]
        %v388 = vld [vmem:[#allocation2 + $0x134] sm:$0xf]
        %v389 = vld [vmem:[#allocation2 + $0x138] sm:$0xf]
        %v390 = vld [vmem:[#allocation2 + $0x13c] sm:$0x1]
        %v391 = vld [vmem:[#allocation2] sm:$0xe]
        %v392 = vld [vmem:[#allocation2 + $0x10] sm:$0xe]
        %v393 = vld [vmem:[#allocation2 + $0x20] sm:$0xe]
        %v394 = vld [vmem:[#allocation2 + $0x30] sm:$0xe]
        %v395 = vld [vmem:[#allocation2 + $0x40] sm:$0xe]
        %v396 = vld [vmem:[#allocation2 + $0x50] sm:$0xe]
        %v397 = vld [vmem:[#allocation2 + $0x60] sm:$0xe]
        %v398 = vld [vmem:[#allocation2 + $0x70] sm:$0xe]
        %v399 = vld [vmem:[#allocation2 + $0x80] sm:$0xe]
        %v400 = vld [vmem:[#allocation2 + $0x90] sm:$0xe]
        %v401 = vld [vmem:[#allocation2 + $0xa0] sm:$0xe]
        %v402 = vld [vmem:[#allocation2 + $0xb0] sm:$0xe]
        %v403 = vld [vmem:[#allocation2 + $0xc0] sm:$0xe]
        %v404 = vld [vmem:[#allocation2 + $0xd0] sm:$0xe]
        %v405 = vld [vmem:[#allocation2 + $0xe0] sm:$0xe]
        %v406 = vld [vmem:[#allocation2 + $0xf0] sm:$0xe]
        %v407 = vld [vmem:[#allocation2 + $0x100] sm:$0xe]
        %v408 = vld [vmem:[#allocation2 + $0x110] sm:$0xe]
        %v409 = vld [vmem:[#allocation2 + $0x120] sm:$0xe]
        %v410 = vld [vmem:[#allocation2 + $0x130] sm:$0xe]
        %v471 = vunpack.c.l.b16 %v251
        %v472 = vunpack.c.l.b16 %v252
        %v473 = vunpack.c.l.b16 %v253
        %v474 = vunpack.c.l.b16 %v254
        %v475 = vunpack.c.l.b16 %v255
        %v476 = vunpack.c.l.b16 %v256
        %v477 = vunpack.c.l.b16 %v257
        %v478 = vunpack.c.l.b16 %v258
        %v479 = vunpack.c.l.b16 %v259
        %v480 = vunpack.c.l.b16 %v260
        %v481 = vunpack.c.l.b16 %v261
        %v482 = vunpack.c.l.b16 %v262
        %v483 = vunpack.c.l.b16 %v263
        %v484 = vunpack.c.l.b16 %v264
        %v485 = vunpack.c.l.b16 %v265
        %v486 = vunpack.c.l.b16 %v266
        %v487 = vunpack.c.l.b16 %v267
        %v488 = vunpack.c.l.b16 %v268
        %v489 = vunpack.c.l.b16 %v269
        %v490 = vunpack.c.l.b16 %v270
        %v491 = vunpack.c.l.b16 %v271
        %v492 = vunpack.c.l.b16 %v272
        %v493 = vunpack.c.l.b16 %v273
        %v494 = vunpack.c.l.b16 %v274
        %v495 = vunpack.c.l.b16 %v275
        %v496 = vunpack.c.l.b16 %v276
        %v497 = vunpack.c.l.b16 %v277
        %v498 = vunpack.c.l.b16 %v278
        %v499 = vunpack.c.l.b16 %v279
        %v500 = vunpack.c.l.b16 %v280
        %v501 = vunpack.c.l.b16 %v281
        %v502 = vunpack.c.l.b16 %v282
        %v503 = vunpack.c.l.b16 %v283
        %v504 = vunpack.c.l.b16 %v284
        %v505 = vunpack.c.l.b16 %v285
        %v506 = vunpack.c.l.b16 %v286
        %v507 = vunpack.c.l.b16 %v287
        %v508 = vunpack.c.l.b16 %v288
        %v509 = vunpack.c.l.b16 %v289
        %v510 = vunpack.c.l.b16 %v290
        %v511 = vunpack.c.l.b16 %v291
        %v512 = vunpack.c.l.b16 %v292
        %v513 = vunpack.c.l.b16 %v293
        %v514 = vunpack.c.l.b16 %v294
        %v515 = vunpack.c.l.b16 %v295
        %v516 = vunpack.c.l.b16 %v296
        %v517 = vunpack.c.l.b16 %v297
        %v518 = vunpack.c.l.b16 %v298
        %v519 = vunpack.c.l.b16 %v299
        %v520 = vunpack.c.l.b16 %v300
        %v521 = vunpack.c.l.b16 %v301
        %v522 = vunpack.c.l.b16 %v302
        %v523 = vunpack.c.l.b16 %v303
        %v524 = vunpack.c.l.b16 %v304
        %v525 = vunpack.c.l.b16 %v305
        %v526 = vunpack.c.l.b16 %v306
        %v527 = vunpack.c.l.b16 %v307
        %v528 = vunpack.c.l.b16 %v308
        %v529 = vunpack.c.l.b16 %v309
        %v530 = vunpack.c.l.b16 %v310
        %v611 = vunpack.c.l.b16 %v311
        %v612 = vunpack.c.l.b16 %v312
        %v613 = vunpack.c.l.b16 %v313
        %v614 = vunpack.c.l.b16 %v314
        %v615 = vunpack.c.l.b16 %v315
        %v616 = vunpack.c.l.b16 %v316
        %v617 = vunpack.c.l.b16 %v317
        %v618 = vunpack.c.l.b16 %v318
        %v619 = vunpack.c.l.b16 %v319
        %v620 = vunpack.c.l.b16 %v320
        %v621 = vunpack.c.l.b16 %v321
        %v622 = vunpack.c.l.b16 %v322
        %v623 = vunpack.c.l.b16 %v323
        %v624 = vunpack.c.l.b16 %v324
        %v625 = vunpack.c.l.b16 %v325
        %v626 = vunpack.c.l.b16 %v326
        %v627 = vunpack.c.l.b16 %v327
        %v628 = vunpack.c.l.b16 %v328
        %v629 = vunpack.c.l.b16 %v329
        %v630 = vunpack.c.l.b16 %v330
        %v631 = vunpack.c.l.b16 %v331
        %v632 = vunpack.c.l.b16 %v332
        %v633 = vunpack.c.l.b16 %v333
        %v634 = vunpack.c.l.b16 %v334
        %v635 = vunpack.c.l.b16 %v335
        %v636 = vunpack.c.l.b16 %v336
        %v637 = vunpack.c.l.b16 %v337
        %v638 = vunpack.c.l.b16 %v338
        %v639 = vunpack.c.l.b16 %v339
        %v640 = vunpack.c.l.b16 %v340
        %v641 = vunpack.c.l.b16 %v341
        %v642 = vunpack.c.l.b16 %v342
        %v643 = vunpack.c.l.b16 %v343
        %v644 = vunpack.c.l.b16 %v344
        %v645 = vunpack.c.l.b16 %v345
        %v646 = vunpack.c.l.b16 %v346
        %v647 = vunpack.c.l.b16 %v347
        %v648 = vunpack.c.l.b16 %v348
        %v649 = vunpack.c.l.b16 %v349
        %v650 = vunpack.c.l.b16 %v350
        %v651 = vunpack.c.l.b16 %v351
        %v652 = vunpack.c.l.b16 %v352
        %v653 = vunpack.c.l.b16 %v353
        %v654 = vunpack.c.l.b16 %v354
        %v655 = vunpack.c.l.b16 %v355
        %v656 = vunpack.c.l.b16 %v356
        %v657 = vunpack.c.l.b16 %v357
        %v658 = vunpack.c.l.b16 %v358
        %v659 = vunpack.c.l.b16 %v359
        %v660 = vunpack.c.l.b16 %v360
        %v661 = vunpack.c.l.b16 %v361
        %v662 = vunpack.c.l.b16 %v362
        %v663 = vunpack.c.l.b16 %v363
        %v664 = vunpack.c.l.b16 %v364
        %v665 = vunpack.c.l.b16 %v365
        %v666 = vunpack.c.l.b16 %v366
        %v667 = vunpack.c.l.b16 %v367
        %v668 = vunpack.c.l.b16 %v368
        %v669 = vunpack.c.l.b16 %v369
        %v670 = vunpack.c.l.b16 %v370
        %v671 = vunpack.c.l.b16 %v371
        %v672 = vunpack.c.l.b16 %v372
        %v673 = vunpack.c.l.b16 %v373
        %v674 = vunpack.c.l.b16 %v374
        %v675 = vunpack.c.l.b16 %v375
        %v676 = vunpack.c.l.b16 %v376
        %v677 = vunpack.c.l.b16 %v377
        %v678 = vunpack.c.l.b16 %v378
        %v679 = vunpack.c.l.b16 %v379
        %v680 = vunpack.c.l.b16 %v380
        %v681 = vunpack.c.l.b16 %v381
        %v682 = vunpack.c.l.b16 %v382
        %v683 = vunpack.c.l.b16 %v383
        %v684 = vunpack.c.l.b16 %v384
        %v685 = vunpack.c.l.b16 %v385
        %v686 = vunpack.c.l.b16 %v386
        %v687 = vunpack.c.l.b16 %v387
        %v688 = vunpack.c.l.b16 %v388
        %v689 = vunpack.c.l.b16 %v389
        %v690 = vunpack.c.l.b16 %v390
        %v691 = vpack.c.b16 %v612, %v611
        %v692 = vpack.c.b16 %v614, %v613
        %v693 = vpack.c.b16 %v616, %v615
        %v694 = vpack.c.b16 %v618, %v617
        %v695 = vpack.c.b16 %v620, %v619
        %v696 = vpack.c.b16 %v622, %v621
        %v697 = vpack.c.b16 %v624, %v623
        %v698 = vpack.c.b16 %v626, %v625
        %v699 = vpack.c.b16 %v628, %v627
        %v700 = vpack.c.b16 %v630, %v629
        %v701 = vpack.c.b16 %v632, %v631
        %v702 = vpack.c.b16 %v634, %v633
        %v703 = vpack.c.b16 %v636, %v635
        %v704 = vpack.c.b16 %v638, %v637
        %v705 = vpack.c.b16 %v640, %v639
        %v706 = vpack.c.b16 %v642, %v641
        %v707 = vpack.c.b16 %v644, %v643
        %v708 = vpack.c.b16 %v646, %v645
        %v709 = vpack.c.b16 %v648, %v647
        %v710 = vpack.c.b16 %v650, %v649
        %v711 = vpack.c.b16 %v652, %v651
        %v712 = vpack.c.b16 %v654, %v653
        %v713 = vpack.c.b16 %v656, %v655
        %v714 = vpack.c.b16 %v658, %v657
        %v715 = vpack.c.b16 %v660, %v659
        %v716 = vpack.c.b16 %v662, %v661
        %v717 = vpack.c.b16 %v664, %v663
        %v718 = vpack.c.b16 %v666, %v665
        %v719 = vpack.c.b16 %v668, %v667
        %v720 = vpack.c.b16 %v670, %v669
        %v721 = vpack.c.b16 %v672, %v671
        %v722 = vpack.c.b16 %v674, %v673
        %v723 = vpack.c.b16 %v676, %v675
        %v724 = vpack.c.b16 %v678, %v677
        %v725 = vpack.c.b16 %v680, %v679
        %v726 = vpack.c.b16 %v682, %v681
        %v727 = vpack.c.b16 %v684, %v683
        %v728 = vpack.c.b16 %v686, %v685
        %v729 = vpack.c.b16 %v688, %v687
        %v730 = vpack.c.b16 %v690, %v689
        %vm731 = vsmask.f32 7424
        %v733 = vshrl.u32 %v691, 16
        %v735 = vshll.u32 %v691, 16
        %v737 = vrot.slane %v735, 1
        %v738 = vor.u32 %v733, %v737
        %v740 = vshll.u32 %v692, 16
        %v742 = vrot.slane %v740, 1
        %v743 = vsel %vm731, %v738, %v742
        %v744 = vshrl.u32 %v692, 16
        %v746 = vor.u32 %v744, %v742
        %v748 = vshrl.u32 %v693, 16
        %v750 = vshll.u32 %v693, 16
        %v752 = vrot.slane %v750, 1
        %v753 = vor.u32 %v748, %v752
        %v755 = vshll.u32 %v694, 16
        %v757 = vrot.slane %v755, 1
        %v758 = vsel %vm731, %v753, %v757
        %v759 = vshrl.u32 %v694, 16
        %v761 = vor.u32 %v759, %v757
        %v763 = vshrl.u32 %v695, 16
        %v765 = vshll.u32 %v695, 16
        %v767 = vrot.slane %v765, 1
        %v768 = vor.u32 %v763, %v767
        %v770 = vshll.u32 %v696, 16
        %v772 = vrot.slane %v770, 1
        %v773 = vsel %vm731, %v768, %v772
        %v774 = vshrl.u32 %v696, 16
        %v776 = vor.u32 %v774, %v772
        %v778 = vshrl.u32 %v697, 16
        %v780 = vshll.u32 %v697, 16
        %v782 = vrot.slane %v780, 1
        %v783 = vor.u32 %v778, %v782
        %v785 = vshll.u32 %v698, 16
        %v787 = vrot.slane %v785, 1
        %v788 = vsel %vm731, %v783, %v787
        %v789 = vshrl.u32 %v698, 16
        %v791 = vor.u32 %v789, %v787
        %v793 = vshrl.u32 %v699, 16
        %v795 = vshll.u32 %v699, 16
        %v797 = vrot.slane %v795, 1
        %v798 = vor.u32 %v793, %v797
        %v800 = vshll.u32 %v700, 16
        %v802 = vrot.slane %v800, 1
        %v803 = vsel %vm731, %v798, %v802
        %v804 = vshrl.u32 %v700, 16
        %v806 = vor.u32 %v804, %v802
        %v808 = vshrl.u32 %v701, 16
        %v810 = vshll.u32 %v701, 16
        %v812 = vrot.slane %v810, 1
        %v813 = vor.u32 %v808, %v812
        %v815 = vshll.u32 %v702, 16
        %v817 = vrot.slane %v815, 1
        %v818 = vsel %vm731, %v813, %v817
        %v819 = vshrl.u32 %v702, 16
        %v821 = vor.u32 %v819, %v817
        %v823 = vshrl.u32 %v703, 16
        %v825 = vshll.u32 %v703, 16
        %v827 = vrot.slane %v825, 1
        %v828 = vor.u32 %v823, %v827
        %v830 = vshll.u32 %v704, 16
        %v832 = vrot.slane %v830, 1
        %v833 = vsel %vm731, %v828, %v832
        %v834 = vshrl.u32 %v704, 16
        %v836 = vor.u32 %v834, %v832
        %v838 = vshrl.u32 %v705, 16
        %v840 = vshll.u32 %v705, 16
        %v842 = vrot.slane %v840, 1
        %v843 = vor.u32 %v838, %v842
        %v845 = vshll.u32 %v706, 16
        %v847 = vrot.slane %v845, 1
        %v848 = vsel %vm731, %v843, %v847
        %v849 = vshrl.u32 %v706, 16
        %v851 = vor.u32 %v849, %v847
        %v853 = vshrl.u32 %v707, 16
        %v855 = vshll.u32 %v707, 16
        %v857 = vrot.slane %v855, 1
        %v858 = vor.u32 %v853, %v857
        %v860 = vshll.u32 %v708, 16
        %v862 = vrot.slane %v860, 1
        %v863 = vsel %vm731, %v858, %v862
        %v864 = vshrl.u32 %v708, 16
        %v866 = vor.u32 %v864, %v862
        %v868 = vshrl.u32 %v709, 16
        %v870 = vshll.u32 %v709, 16
        %v872 = vrot.slane %v870, 1
        %v873 = vor.u32 %v868, %v872
        %v875 = vshll.u32 %v710, 16
        %v877 = vrot.slane %v875, 1
        %v878 = vsel %vm731, %v873, %v877
        %v879 = vshrl.u32 %v710, 16
        %v881 = vor.u32 %v879, %v877
        %v883 = vshrl.u32 %v711, 16
        %v885 = vshll.u32 %v711, 16
        %v887 = vrot.slane %v885, 1
        %v888 = vor.u32 %v883, %v887
        %v890 = vshll.u32 %v712, 16
        %v892 = vrot.slane %v890, 1
        %v893 = vsel %vm731, %v888, %v892
        %v894 = vshrl.u32 %v712, 16
        %v896 = vor.u32 %v894, %v892
        %v898 = vshrl.u32 %v713, 16
        %v900 = vshll.u32 %v713, 16
        %v902 = vrot.slane %v900, 1
        %v903 = vor.u32 %v898, %v902
        %v905 = vshll.u32 %v714, 16
        %v907 = vrot.slane %v905, 1
        %v908 = vsel %vm731, %v903, %v907
        %v909 = vshrl.u32 %v714, 16
        %v911 = vor.u32 %v909, %v907
        %v913 = vshrl.u32 %v715, 16
        %v915 = vshll.u32 %v715, 16
        %v917 = vrot.slane %v915, 1
        %v918 = vor.u32 %v913, %v917
        %v920 = vshll.u32 %v716, 16
        %v922 = vrot.slane %v920, 1
        %v923 = vsel %vm731, %v918, %v922
        %v924 = vshrl.u32 %v716, 16
        %v926 = vor.u32 %v924, %v922
        %v928 = vshrl.u32 %v717, 16
        %v930 = vshll.u32 %v717, 16
        %v932 = vrot.slane %v930, 1
        %v933 = vor.u32 %v928, %v932
        %v935 = vshll.u32 %v718, 16
        %v937 = vrot.slane %v935, 1
        %v938 = vsel %vm731, %v933, %v937
        %v939 = vshrl.u32 %v718, 16
        %v941 = vor.u32 %v939, %v937
        %v943 = vshrl.u32 %v719, 16
        %v945 = vshll.u32 %v719, 16
        %v947 = vrot.slane %v945, 1
        %v948 = vor.u32 %v943, %v947
        %v950 = vshll.u32 %v720, 16
        %v952 = vrot.slane %v950, 1
        %v953 = vsel %vm731, %v948, %v952
        %v954 = vshrl.u32 %v720, 16
        %v956 = vor.u32 %v954, %v952
        %v958 = vshrl.u32 %v721, 16
        %v960 = vshll.u32 %v721, 16
        %v962 = vrot.slane %v960, 1
        %v963 = vor.u32 %v958, %v962
        %v965 = vshll.u32 %v722, 16
        %v967 = vrot.slane %v965, 1
        %v968 = vsel %vm731, %v963, %v967
        %v969 = vshrl.u32 %v722, 16
        %v971 = vor.u32 %v969, %v967
        %v973 = vshrl.u32 %v723, 16
        %v975 = vshll.u32 %v723, 16
        %v977 = vrot.slane %v975, 1
        %v978 = vor.u32 %v973, %v977
        %v980 = vshll.u32 %v724, 16
        %v982 = vrot.slane %v980, 1
        %v983 = vsel %vm731, %v978, %v982
        %v984 = vshrl.u32 %v724, 16
        %v986 = vor.u32 %v984, %v982
        %v988 = vshrl.u32 %v725, 16
        %v990 = vshll.u32 %v725, 16
        %v992 = vrot.slane %v990, 1
        %v993 = vor.u32 %v988, %v992
        %v995 = vshll.u32 %v726, 16
        %v997 = vrot.slane %v995, 1
        %v998 = vsel %vm731, %v993, %v997
        %v999 = vshrl.u32 %v726, 16
        %v1001 = vor.u32 %v999, %v997
        %v1003 = vshrl.u32 %v727, 16
        %v1005 = vshll.u32 %v727, 16
        %v1007 = vrot.slane %v1005, 1
        %v1008 = vor.u32 %v1003, %v1007
        %v1010 = vshll.u32 %v728, 16
        %v1012 = vrot.slane %v1010, 1
        %v1013 = vsel %vm731, %v1008, %v1012
        %v1014 = vshrl.u32 %v728, 16
        %v1016 = vor.u32 %v1014, %v1012
        %v1018 = vshrl.u32 %v729, 16
        %v1020 = vshll.u32 %v729, 16
        %v1022 = vrot.slane %v1020, 1
        %v1023 = vor.u32 %v1018, %v1022
        %v1025 = vshll.u32 %v730, 16
        %v1027 = vrot.slane %v1025, 1
        %v1028 = vsel %vm731, %v1023, %v1027
        %v1029 = vshrl.u32 %v730, 16
        %v1031 = vor.u32 %v1029, %v1027
        %v1052 = vunpack.c.l.b16 %v391
        %v1053 = vunpack.c.l.b16 %v392
        %v1054 = vunpack.c.l.b16 %v393
        %v1055 = vunpack.c.l.b16 %v394
        %v1056 = vunpack.c.l.b16 %v395
        %v1057 = vunpack.c.l.b16 %v396
        %v1058 = vunpack.c.l.b16 %v397
        %v1059 = vunpack.c.l.b16 %v398
        %v1060 = vunpack.c.l.b16 %v399
        %v1061 = vunpack.c.l.b16 %v400
        %v1062 = vunpack.c.l.b16 %v401
        %v1063 = vunpack.c.l.b16 %v402
        %v1064 = vunpack.c.l.b16 %v403
        %v1065 = vunpack.c.l.b16 %v404
        %v1066 = vunpack.c.l.b16 %v405
        %v1067 = vunpack.c.l.b16 %v406
        %v1068 = vunpack.c.l.b16 %v407
        %v1069 = vunpack.c.l.b16 %v408
        %v1070 = vunpack.c.l.b16 %v409
        %v1071 = vunpack.c.l.b16 %v410
        %v1072 = vpack.c.b16 %v612, %v1052
        %v1073 = vpack.c.b16 %v616, %v1053
        %v1074 = vpack.c.b16 %v620, %v1054
        %v1075 = vpack.c.b16 %v624, %v1055
        %v1076 = vpack.c.b16 %v628, %v1056
        %v1077 = vpack.c.b16 %v632, %v1057
        %v1078 = vpack.c.b16 %v636, %v1058
        %v1079 = vpack.c.b16 %v640, %v1059
        %v1080 = vpack.c.b16 %v644, %v1060
        %v1081 = vpack.c.b16 %v648, %v1061
        %v1082 = vpack.c.b16 %v652, %v1062
        %v1083 = vpack.c.b16 %v656, %v1063
        %v1084 = vpack.c.b16 %v660, %v1064
        %v1085 = vpack.c.b16 %v664, %v1065
        %v1086 = vpack.c.b16 %v668, %v1066
        %v1087 = vpack.c.b16 %v672, %v1067
        %v1088 = vpack.c.b16 %v676, %v1068
        %v1089 = vpack.c.b16 %v680, %v1069
        %v1090 = vpack.c.b16 %v684, %v1070
        %v1091 = vpack.c.b16 %v688, %v1071
        %vm1092 = vcmask 1046528
        %v1093 = vrot.slane %v1072, 1
        %v1094 = vrot.slane %v692, 1
        %v1095 = vsel %vm1092, %v1093, %v1094
        %v1096 = vrot.slane %v1073, 1
        %v1097 = vrot.slane %v694, 1
        %v1098 = vsel %vm1092, %v1096, %v1097
        %v1099 = vrot.slane %v1074, 1
        %v1100 = vrot.slane %v696, 1
        %v1101 = vsel %vm1092, %v1099, %v1100
        %v1102 = vrot.slane %v1075, 1
        %v1103 = vrot.slane %v698, 1
        %v1104 = vsel %vm1092, %v1102, %v1103
        %v1105 = vrot.slane %v1076, 1
        %v1106 = vrot.slane %v700, 1
        %v1107 = vsel %vm1092, %v1105, %v1106
        %v1108 = vrot.slane %v1077, 1
        %v1109 = vrot.slane %v702, 1
        %v1110 = vsel %vm1092, %v1108, %v1109
        %v1111 = vrot.slane %v1078, 1
        %v1112 = vrot.slane %v704, 1
        %v1113 = vsel %vm1092, %v1111, %v1112
        %v1114 = vrot.slane %v1079, 1
        %v1115 = vrot.slane %v706, 1
        %v1116 = vsel %vm1092, %v1114, %v1115
        %v1117 = vrot.slane %v1080, 1
        %v1118 = vrot.slane %v708, 1
        %v1119 = vsel %vm1092, %v1117, %v1118
        %v1120 = vrot.slane %v1081, 1
        %v1121 = vrot.slane %v710, 1
        %v1122 = vsel %vm1092, %v1120, %v1121
        %v1123 = vrot.slane %v1082, 1
        %v1124 = vrot.slane %v712, 1
        %v1125 = vsel %vm1092, %v1123, %v1124
        %v1126 = vrot.slane %v1083, 1
        %v1127 = vrot.slane %v714, 1
        %v1128 = vsel %vm1092, %v1126, %v1127
        %v1129 = vrot.slane %v1084, 1
        %v1130 = vrot.slane %v716, 1
        %v1131 = vsel %vm1092, %v1129, %v1130
        %v1132 = vrot.slane %v1085, 1
        %v1133 = vrot.slane %v718, 1
        %v1134 = vsel %vm1092, %v1132, %v1133
        %v1135 = vrot.slane %v1086, 1
        %v1136 = vrot.slane %v720, 1
        %v1137 = vsel %vm1092, %v1135, %v1136
        %v1138 = vrot.slane %v1087, 1
        %v1139 = vrot.slane %v722, 1
        %v1140 = vsel %vm1092, %v1138, %v1139
        %v1141 = vrot.slane %v1088, 1
        %v1142 = vrot.slane %v724, 1
        %v1143 = vsel %vm1092, %v1141, %v1142
        %v1144 = vrot.slane %v1089, 1
        %v1145 = vrot.slane %v726, 1
        %v1146 = vsel %vm1092, %v1144, %v1145
        %v1147 = vrot.slane %v1090, 1
        %v1148 = vrot.slane %v728, 1
        %v1149 = vsel %vm1092, %v1147, %v1148
        %v1150 = vrot.slane %v1091, 1
        %v1151 = vrot.slane %v730, 1
        %v1152 = vsel %vm1092, %v1150, %v1151
        %v1153 = vunpack.c.l.b16 %v743
        %v1154 = vunpack.c.l.b16 %v1095
        %v1155 = vunpack.c.h.b16 %v743
        %v1156 = vunpack.c.h.b16 %v1095
        %v1157 = vunpack.c.l.b16 %v746
        %v1158 = vunpack.c.l.b16 %v1094
        %v1159 = vunpack.c.l.b16 %v758
        %v1160 = vunpack.c.l.b16 %v1098
        %v1161 = vunpack.c.h.b16 %v758
        %v1162 = vunpack.c.h.b16 %v1098
        %v1163 = vunpack.c.l.b16 %v761
        %v1164 = vunpack.c.l.b16 %v1097
        %v1165 = vunpack.c.l.b16 %v773
        %v1166 = vunpack.c.l.b16 %v1101
        %v1167 = vunpack.c.h.b16 %v773
        %v1168 = vunpack.c.h.b16 %v1101
        %v1169 = vunpack.c.l.b16 %v776
        %v1170 = vunpack.c.l.b16 %v1100
        %v1171 = vunpack.c.l.b16 %v788
        %v1172 = vunpack.c.l.b16 %v1104
        %v1173 = vunpack.c.h.b16 %v788
        %v1174 = vunpack.c.h.b16 %v1104
        %v1175 = vunpack.c.l.b16 %v791
        %v1176 = vunpack.c.l.b16 %v1103
        %v1177 = vunpack.c.l.b16 %v803
        %v1178 = vunpack.c.l.b16 %v1107
        %v1179 = vunpack.c.h.b16 %v803
        %v1180 = vunpack.c.h.b16 %v1107
        %v1181 = vunpack.c.l.b16 %v806
        %v1182 = vunpack.c.l.b16 %v1106
        %v1183 = vunpack.c.l.b16 %v818
        %v1184 = vunpack.c.l.b16 %v1110
        %v1185 = vunpack.c.h.b16 %v818
        %v1186 = vunpack.c.h.b16 %v1110
        %v1187 = vunpack.c.l.b16 %v821
        %v1188 = vunpack.c.l.b16 %v1109
        %v1189 = vunpack.c.l.b16 %v833
        %v1190 = vunpack.c.l.b16 %v1113
        %v1191 = vunpack.c.h.b16 %v833
        %v1192 = vunpack.c.h.b16 %v1113
        %v1193 = vunpack.c.l.b16 %v836
        %v1194 = vunpack.c.l.b16 %v1112
        %v1195 = vunpack.c.l.b16 %v848
        %v1196 = vunpack.c.l.b16 %v1116
        %v1197 = vunpack.c.h.b16 %v848
        %v1198 = vunpack.c.h.b16 %v1116
        %v1199 = vunpack.c.l.b16 %v851
        %v1200 = vunpack.c.l.b16 %v1115
        %v1201 = vunpack.c.l.b16 %v863
        %v1202 = vunpack.c.l.b16 %v1119
        %v1203 = vunpack.c.h.b16 %v863
        %v1204 = vunpack.c.h.b16 %v1119
        %v1205 = vunpack.c.l.b16 %v866
        %v1206 = vunpack.c.l.b16 %v1118
        %v1207 = vunpack.c.l.b16 %v878
        %v1208 = vunpack.c.l.b16 %v1122
        %v1209 = vunpack.c.h.b16 %v878
        %v1210 = vunpack.c.h.b16 %v1122
        %v1211 = vunpack.c.l.b16 %v881
        %v1212 = vunpack.c.l.b16 %v1121
        %v1213 = vunpack.c.l.b16 %v893
        %v1214 = vunpack.c.l.b16 %v1125
        %v1215 = vunpack.c.h.b16 %v893
        %v1216 = vunpack.c.h.b16 %v1125
        %v1217 = vunpack.c.l.b16 %v896
        %v1218 = vunpack.c.l.b16 %v1124
        %v1219 = vunpack.c.l.b16 %v908
        %v1220 = vunpack.c.l.b16 %v1128
        %v1221 = vunpack.c.h.b16 %v908
        %v1222 = vunpack.c.h.b16 %v1128
        %v1223 = vunpack.c.l.b16 %v911
        %v1224 = vunpack.c.l.b16 %v1127
        %v1225 = vunpack.c.l.b16 %v923
        %v1226 = vunpack.c.l.b16 %v1131
        %v1227 = vunpack.c.h.b16 %v923
        %v1228 = vunpack.c.h.b16 %v1131
        %v1229 = vunpack.c.l.b16 %v926
        %v1230 = vunpack.c.l.b16 %v1130
        %v1231 = vunpack.c.l.b16 %v938
        %v1232 = vunpack.c.l.b16 %v1134
        %v1233 = vunpack.c.h.b16 %v938
        %v1234 = vunpack.c.h.b16 %v1134
        %v1235 = vunpack.c.l.b16 %v941
        %v1236 = vunpack.c.l.b16 %v1133
        %v1237 = vunpack.c.l.b16 %v953
        %v1238 = vunpack.c.l.b16 %v1137
        %v1239 = vunpack.c.h.b16 %v953
        %v1240 = vunpack.c.h.b16 %v1137
        %v1241 = vunpack.c.l.b16 %v956
        %v1242 = vunpack.c.l.b16 %v1136
        %v1243 = vunpack.c.l.b16 %v968
        %v1244 = vunpack.c.l.b16 %v1140
        %v1245 = vunpack.c.h.b16 %v968
        %v1246 = vunpack.c.h.b16 %v1140
        %v1247 = vunpack.c.l.b16 %v971
        %v1248 = vunpack.c.l.b16 %v1139
        %v1249 = vunpack.c.l.b16 %v983
        %v1250 = vunpack.c.l.b16 %v1143
        %v1251 = vunpack.c.h.b16 %v983
        %v1252 = vunpack.c.h.b16 %v1143
        %v1253 = vunpack.c.l.b16 %v986
        %v1254 = vunpack.c.l.b16 %v1142
        %v1255 = vunpack.c.l.b16 %v998
        %v1256 = vunpack.c.l.b16 %v1146
        %v1257 = vunpack.c.h.b16 %v998
        %v1258 = vunpack.c.h.b16 %v1146
        %v1259 = vunpack.c.l.b16 %v1001
        %v1260 = vunpack.c.l.b16 %v1145
        %v1261 = vunpack.c.l.b16 %v1013
        %v1262 = vunpack.c.l.b16 %v1149
        %v1263 = vunpack.c.h.b16 %v1013
        %v1264 = vunpack.c.h.b16 %v1149
        %v1265 = vunpack.c.l.b16 %v1016
        %v1266 = vunpack.c.l.b16 %v1148
        %v1267 = vunpack.c.l.b16 %v1028
        %v1268 = vunpack.c.l.b16 %v1152
        %v1269 = vunpack.c.h.b16 %v1028
        %v1270 = vunpack.c.h.b16 %v1152
        %v1271 = vunpack.c.l.b16 %v1031
        %v1272 = vunpack.c.l.b16 %v1151
        %v1273 = vld [vmem:[#allocation4] sm:$0xf]
        %v1274 = vld [vmem:[#allocation4 + $0x4] sm:$0xf]
        %v1275 = vld [vmem:[#allocation4 + $0x8] sm:$0xf]
        %v1276 = vld [vmem:[#allocation4 + $0xc] sm:$0xf]
        %v1277 = vld [vmem:[#allocation4 + $0x10] sm:$0xf]
        %v1278 = vld [vmem:[#allocation4 + $0x14] sm:$0xf]
        %v1279 = vld [vmem:[#allocation4 + $0x18] sm:$0xf]
        %v1280 = vld [vmem:[#allocation4 + $0x1c] sm:$0xf]
        %v1281 = vld [vmem:[#allocation4 + $0x20] sm:$0xf]
        %v1282 = vld [vmem:[#allocation4 + $0x24] sm:$0xf]
        %v1283 = vld [vmem:[#allocation4 + $0x28] sm:$0xf]
        %v1284 = vld [vmem:[#allocation4 + $0x2c] sm:$0xf]
        %v1285 = vld [vmem:[#allocation4 + $0x30] sm:$0xf]
        %v1286 = vld [vmem:[#allocation4 + $0x34] sm:$0xf]
        %v1287 = vld [vmem:[#allocation4 + $0x38] sm:$0xf]
        %v1288 = vld [vmem:[#allocation4 + $0x3c] sm:$0xf]
        %v1289 = vld [vmem:[#allocation4 + $0x40] sm:$0xf]
        %v1290 = vld [vmem:[#allocation4 + $0x44] sm:$0xf]
        %v1291 = vld [vmem:[#allocation4 + $0x48] sm:$0xf]
        %v1292 = vld [vmem:[#allocation4 + $0x4c] sm:$0xf]
        %v1293 = vld [vmem:[#allocation4 + $0x50] sm:$0xf]
        %v1294 = vld [vmem:[#allocation4 + $0x54] sm:$0xf]
        %v1295 = vld [vmem:[#allocation4 + $0x58] sm:$0xf]
        %v1296 = vld [vmem:[#allocation4 + $0x5c] sm:$0xf]
        %v1297 = vld [vmem:[#allocation4 + $0x60] sm:$0xf]
        %v1298 = vld [vmem:[#allocation4 + $0x64] sm:$0xf]
        %v1299 = vld [vmem:[#allocation4 + $0x68] sm:$0xf]
        %v1300 = vld [vmem:[#allocation4 + $0x6c] sm:$0xf]
        %v1301 = vld [vmem:[#allocation4 + $0x70] sm:$0xf]
        %v1302 = vld [vmem:[#allocation4 + $0x74] sm:$0xf]
        %v1303 = vld [vmem:[#allocation4 + $0x78] sm:$0xf]
        %v1304 = vld [vmem:[#allocation4 + $0x7c] sm:$0xf]
        %v1305 = vld [vmem:[#allocation4 + $0x80] sm:$0xf]
        %v1306 = vld [vmem:[#allocation4 + $0x84] sm:$0xf]
        %v1307 = vld [vmem:[#allocation4 + $0x88] sm:$0xf]
        %v1308 = vld [vmem:[#allocation4 + $0x8c] sm:$0xf]
        %v1309 = vld [vmem:[#allocation4 + $0x90] sm:$0xf]
        %v1310 = vld [vmem:[#allocation4 + $0x94] sm:$0xf]
        %v1311 = vld [vmem:[#allocation4 + $0x98] sm:$0xf]
        %v1312 = vld [vmem:[#allocation4 + $0x9c] sm:$0xf]
        %v1313 = vld [vmem:[#allocation4 + $0xa0] sm:$0xf]
        %v1314 = vld [vmem:[#allocation4 + $0xa4] sm:$0xf]
        %v1315 = vld [vmem:[#allocation4 + $0xa8] sm:$0xf]
        %v1316 = vld [vmem:[#allocation4 + $0xac] sm:$0xf]
        %v1317 = vld [vmem:[#allocation4 + $0xb0] sm:$0xf]
        %v1318 = vld [vmem:[#allocation4 + $0xb4] sm:$0xf]
        %v1319 = vld [vmem:[#allocation4 + $0xb8] sm:$0xf]
        %v1320 = vld [vmem:[#allocation4 + $0xbc] sm:$0xf]
        %s1321 = scalar_lea.vmem [#allocation4], 192
        %v1322 = vld [vmem:[%s1321] sm:$0xf]
        %v1323 = vld [vmem:[%s1321 + $0x4] sm:$0xf]
        %v1324 = vld [vmem:[%s1321 + $0x8] sm:$0xf]
        %v1325 = vld [vmem:[%s1321 + $0xc] sm:$0xf]
        %v1326 = vld [vmem:[%s1321 + $0x10] sm:$0xf]
        %v1327 = vld [vmem:[%s1321 + $0x14] sm:$0xf]
        %v1328 = vld [vmem:[%s1321 + $0x18] sm:$0xf]
        %v1329 = vld [vmem:[%s1321 + $0x1c] sm:$0xf]
        %v1330 = vld [vmem:[%s1321 + $0x20] sm:$0xf]
        %v1331 = vld [vmem:[%s1321 + $0x24] sm:$0xf]
        %v1332 = vld [vmem:[%s1321 + $0x28] sm:$0xf]
        %v1333 = vld [vmem:[%s1321 + $0x2c] sm:$0xf]
        %v1334 = vld [vmem:[%s1321 + $0x30] sm:$0xf]
        %v1335 = vld [vmem:[%s1321 + $0x34] sm:$0xf]
        %v1336 = vld [vmem:[%s1321 + $0x38] sm:$0xf]
        %v1337 = vld [vmem:[%s1321 + $0x3c] sm:$0xf]
        %v1338 = vld [vmem:[%s1321 + $0x40] sm:$0xf]
        %v1339 = vld [vmem:[%s1321 + $0x44] sm:$0xf]
        %v1340 = vld [vmem:[%s1321 + $0x48] sm:$0xf]
        %v1341 = vld [vmem:[%s1321 + $0x4c] sm:$0xf]
        %v1342 = vld [vmem:[%s1321 + $0x50] sm:$0xf]
        %v1343 = vld [vmem:[%s1321 + $0x54] sm:$0xf]
        %v1344 = vld [vmem:[%s1321 + $0x58] sm:$0xf]
        %v1345 = vld [vmem:[%s1321 + $0x5c] sm:$0xf]
        %v1346 = vld [vmem:[%s1321 + $0x60] sm:$0xf]
        %v1347 = vld [vmem:[%s1321 + $0x64] sm:$0xf]
        %v1348 = vld [vmem:[%s1321 + $0x68] sm:$0xf]
        %v1349 = vld [vmem:[%s1321 + $0x6c] sm:$0xf]
        %v1350 = vld [vmem:[%s1321 + $0x70] sm:$0xf]
        %v1351 = vld [vmem:[%s1321 + $0x74] sm:$0xf]
        %v1352 = vld [vmem:[%s1321 + $0x78] sm:$0xf]
        %v1353 = vld [vmem:[%s1321 + $0x7c] sm:$0xf]
        %v1354 = vld [vmem:[%s1321 + $0x80] sm:$0xf]
        %v1355 = vld [vmem:[%s1321 + $0x84] sm:$0xf]
        %v1356 = vld [vmem:[%s1321 + $0x88] sm:$0xf]
        %v1357 = vld [vmem:[%s1321 + $0x8c] sm:$0xf]
        %v1358 = vld [vmem:[%s1321 + $0x90] sm:$0xf]
        %v1359 = vld [vmem:[%s1321 + $0x94] sm:$0xf]
        %v1360 = vld [vmem:[%s1321 + $0x98] sm:$0xf]
        %v1361 = vld [vmem:[%s1321 + $0x9c] sm:$0xf]
        %v1362 = vld [vmem:[%s1321 + $0xa0] sm:$0xf]
        %v1363 = vld [vmem:[%s1321 + $0xa4] sm:$0xf]
        %v1364 = vld [vmem:[%s1321 + $0xa8] sm:$0xf]
        %v1365 = vld [vmem:[%s1321 + $0xac] sm:$0xf]
        %v1366 = vld [vmem:[%s1321 + $0xb0] sm:$0xf]
        %v1367 = vld [vmem:[%s1321 + $0xb4] sm:$0xf]
        %v1368 = vld [vmem:[%s1321 + $0xb8] sm:$0xf]
        %v1369 = vld [vmem:[%s1321 + $0xbc] sm:$0xf]
        %v1370 = vpack.c.b16 %v475, %v474
        %v1371 = vpack.c.b16 %v1161, %v1159
        %v1372 = vpack.c.b16 %v1162, %v1160
        %v1373 = vpack.c.b16 %v477, %v476
        %v1374 = vpack.c.b16 %v1165, %v1163
        %v1375 = vpack.c.b16 %v1166, %v1164
        %v1376 = vpack.c.b16 %v479, %v478
        %v1377 = vpack.c.b16 %v1169, %v1167
        %v1378 = vpack.c.b16 %v1170, %v1168
        %v1379 = vpack.c.b16 %v481, %v480
        %v1380 = vpack.c.b16 %v1173, %v1171
        %v1381 = vpack.c.b16 %v1174, %v1172
        %v1382 = vpack.c.b16 %v483, %v482
        %v1383 = vpack.c.b16 %v1177, %v1175
        %v1384 = vpack.c.b16 %v1178, %v1176
        %v1385 = vpack.c.b16 %v485, %v484
        %v1386 = vpack.c.b16 %v1181, %v1179
        %v1387 = vpack.c.b16 %v1182, %v1180
        %v1388 = vpack.c.b16 %v487, %v486
        %v1389 = vpack.c.b16 %v1185, %v1183
        %v1390 = vpack.c.b16 %v1186, %v1184
        %v1391 = vpack.c.b16 %v489, %v488
        %v1392 = vpack.c.b16 %v1189, %v1187
        %v1393 = vpack.c.b16 %v1190, %v1188
        %v1394 = vpack.c.b16 %v491, %v490
        %v1395 = vpack.c.b16 %v1193, %v1191
        %v1396 = vpack.c.b16 %v1194, %v1192
        %v1397 = vpack.c.b16 %v493, %v492
        %v1398 = vpack.c.b16 %v1197, %v1195
        %v1399 = vpack.c.b16 %v1198, %v1196
        %v1400 = vpack.c.b16 %v495, %v494
        %v1401 = vpack.c.b16 %v1201, %v1199
        %v1402 = vpack.c.b16 %v1202, %v1200
        %v1403 = vpack.c.b16 %v497, %v496
        %v1404 = vpack.c.b16 %v1205, %v1203
        %v1405 = vpack.c.b16 %v1206, %v1204
        %v1406 = vpack.c.b16 %v499, %v498
        %v1407 = vpack.c.b16 %v1209, %v1207
        %v1408 = vpack.c.b16 %v1210, %v1208
        %v1409 = vpack.c.b16 %v501, %v500
        %v1410 = vpack.c.b16 %v1213, %v1211
        %v1411 = vpack.c.b16 %v1214, %v1212
        %v1412 = vpack.c.b16 %v503, %v502
        %v1413 = vpack.c.b16 %v1217, %v1215
        %v1414 = vpack.c.b16 %v1218, %v1216
        %v1415 = vpack.c.b16 %v505, %v504
        %v1416 = vpack.c.b16 %v1221, %v1219
        %v1417 = vpack.c.b16 %v1222, %v1220
        %v1418 = vpack.c.b16 %v507, %v506
        %v1419 = vpack.c.b16 %v1225, %v1223
        %v1420 = vpack.c.b16 %v1226, %v1224
        %v1421 = vpack.c.b16 %v509, %v508
        %v1422 = vpack.c.b16 %v1229, %v1227
        %v1423 = vpack.c.b16 %v1230, %v1228
        %v1424 = vpack.c.b16 %v511, %v510
        %v1425 = vpack.c.b16 %v1233, %v1231
        %v1426 = vpack.c.b16 %v1234, %v1232
        %v1427 = vpack.c.b16 %v513, %v512
        %v1428 = vpack.c.b16 %v1237, %v1235
        %v1429 = vpack.c.b16 %v1238, %v1236
        %v1430 = vpack.c.b16 %v515, %v514
        %v1431 = vpack.c.b16 %v1241, %v1239
        %v1432 = vpack.c.b16 %v1242, %v1240
        %v1433 = vpack.c.b16 %v517, %v516
        %v1434 = vpack.c.b16 %v1245, %v1243
        %v1435 = vpack.c.b16 %v1246, %v1244
        %v1436 = vpack.c.b16 %v519, %v518
        %v1437 = vpack.c.b16 %v1249, %v1247
        %v1438 = vpack.c.b16 %v1250, %v1248
        %v1439 = vpack.c.b16 %v521, %v520
        %v1440 = vpack.c.b16 %v1253, %v1251
        %v1441 = vpack.c.b16 %v1254, %v1252
        %v1442 = vpack.c.b16 %v523, %v522
        %v1443 = vpack.c.b16 %v1257, %v1255
        %v1444 = vpack.c.b16 %v1258, %v1256
        %v1445 = vpack.c.b16 %v525, %v524
        %v1446 = vpack.c.b16 %v1261, %v1259
        %v1447 = vpack.c.b16 %v1262, %v1260
        %v1448 = vpack.c.b16 %v527, %v526
        %v1449 = vpack.c.b16 %v1265, %v1263
        %v1450 = vpack.c.b16 %v1266, %v1264
        %v1580 = vunpack.c.l.b16 %v1322
        %v1581 = vunpack.c.l.b16 %v1323
        %v1582 = vunpack.c.l.b16 %v1324
        %v1583 = vunpack.c.l.b16 %v1325
        %v1584 = vunpack.c.l.b16 %v1326
        %v1585 = vunpack.c.l.b16 %v1327
        %v1586 = vunpack.c.l.b16 %v1328
        %v1587 = vunpack.c.l.b16 %v1329
        %v1588 = vunpack.c.l.b16 %v1330
        %v1589 = vunpack.c.l.b16 %v1331
        %v1590 = vunpack.c.l.b16 %v1332
        %v1591 = vunpack.c.l.b16 %v1333
        %v1592 = vunpack.c.l.b16 %v1334
        %v1593 = vunpack.c.l.b16 %v1335
        %v1594 = vunpack.c.l.b16 %v1336
        %v1595 = vunpack.c.l.b16 %v1337
        %v1596 = vunpack.c.l.b16 %v1338
        %v1597 = vunpack.c.l.b16 %v1339
        %v1598 = vunpack.c.l.b16 %v1340
        %v1599 = vunpack.c.l.b16 %v1341
        %v1600 = vunpack.c.l.b16 %v1342
        %v1601 = vunpack.c.l.b16 %v1343
        %v1602 = vunpack.c.l.b16 %v1344
        %v1603 = vunpack.c.l.b16 %v1345
        %v1604 = vunpack.c.l.b16 %v1346
        %v1605 = vunpack.c.l.b16 %v1347
        %v1606 = vunpack.c.l.b16 %v1348
        %v1607 = vunpack.c.l.b16 %v1349
        %v1608 = vunpack.c.l.b16 %v1350
        %v1609 = vunpack.c.l.b16 %v1351
        %v1610 = vunpack.c.l.b16 %v1352
        %v1611 = vunpack.c.l.b16 %v1353
        %v1612 = vunpack.c.l.b16 %v1354
        %v1613 = vunpack.c.l.b16 %v1355
        %v1614 = vunpack.c.l.b16 %v1356
        %v1615 = vunpack.c.l.b16 %v1357
        %v1616 = vunpack.c.l.b16 %v1358
        %v1617 = vunpack.c.l.b16 %v1359
        %v1618 = vunpack.c.l.b16 %v1360
        %v1619 = vunpack.c.l.b16 %v1361
        %v1620 = vunpack.c.l.b16 %v1362
        %v1621 = vunpack.c.l.b16 %v1363
        %v1622 = vunpack.c.l.b16 %v1364
        %v1623 = vunpack.c.l.b16 %v1365
        %v1624 = vunpack.c.l.b16 %v1366
        %v1625 = vunpack.c.l.b16 %v1367
        %v1626 = vunpack.c.l.b16 %v1368
        %v1627 = vunpack.c.l.b16 %v1369
        %v1628 = vpack.c.b16 %v1581, %v1580
        %v1629 = vpack.c.b16 %v1583, %v1582
        %v1630 = vpack.c.b16 %v1585, %v1584
        %v1631 = vpack.c.b16 %v1587, %v1586
        %v1632 = vpack.c.b16 %v1589, %v1588
        %v1633 = vpack.c.b16 %v1591, %v1590
        %v1634 = vpack.c.b16 %v1593, %v1592
        %v1635 = vpack.c.b16 %v1595, %v1594
        %v1636 = vpack.c.b16 %v1597, %v1596
        %v1637 = vpack.c.b16 %v1599, %v1598
        %v1638 = vpack.c.b16 %v1601, %v1600
        %v1639 = vpack.c.b16 %v1603, %v1602
        %v1640 = vpack.c.b16 %v1605, %v1604
        %v1641 = vpack.c.b16 %v1607, %v1606
        %v1642 = vpack.c.b16 %v1609, %v1608
        %v1643 = vpack.c.b16 %v1611, %v1610
        %v1644 = vpack.c.b16 %v1613, %v1612
        %v1645 = vpack.c.b16 %v1615, %v1614
        %v1646 = vpack.c.b16 %v1617, %v1616
        %v1647 = vpack.c.b16 %v1619, %v1618
        %v1648 = vpack.c.b16 %v1621, %v1620
        %v1649 = vpack.c.b16 %v1623, %v1622
        %v1650 = vpack.c.b16 %v1625, %v1624
        %v1651 = vpack.c.b16 %v1627, %v1626
        %1676 = vmatpush.bf16.msra.mxu0 %v1635
        %1677 = vmatpush.bf16.msra.mxu0 %v1634
        %1678 = vmatpush.bf16.msra.mxu0 %v1633
        %1679 = vmatpush.bf16.msra.mxu0 %v1632
        %1680 = vmatpush.bf16.msra.mxu0 %v1631
        %1681 = vmatpush.bf16.msra.mxu0 %v1630
        %1682 = vmatpush.bf16.msra.mxu0 %v1629
        %1683 = vmatpush.bf16.msra.mxu0 %v1628
        %1684 = vmatmul.bf16.gmra.mxu0 %v1370
        %v1685 = vpop.f32.mrf.mxu0
        %v1686 = vadd.f32 0.0, %v1685
        %v1687 = vpop.f32.mrf.mxu0
        %v1688 = vadd.f32 0.0, %v1687
        %1689 = vmatmul.bf16.gmra.mxu0 %v1373
        %v1690 = vpop.f32.mrf.mxu0
        %v1691 = vadd.f32 0.0, %v1690
        %v1692 = vpop.f32.mrf.mxu0
        %v1693 = vadd.f32 0.0, %v1692
        %1694 = vmatmul.bf16.gmra.mxu0 %v1376
        %v1695 = vpop.f32.mrf.mxu0
        %v1696 = vadd.f32 0.0, %v1695
        %v1697 = vpop.f32.mrf.mxu0
        %v1698 = vadd.f32 0.0, %v1697
        %1699 = vmatmul.bf16.gmra.mxu0 %v1379
        %v1700 = vpop.f32.mrf.mxu0
        %v1701 = vadd.f32 0.0, %v1700
        %v1702 = vpop.f32.mrf.mxu0
        %v1703 = vadd.f32 0.0, %v1702
        %1704 = vmatmul.bf16.gmra.mxu0 %v1382
        %v1705 = vpop.f32.mrf.mxu0
        %v1706 = vadd.f32 0.0, %v1705
        %v1707 = vpop.f32.mrf.mxu0
        %v1708 = vadd.f32 0.0, %v1707
        %1709 = vmatmul.bf16.gmra.mxu0 %v1385
        %v1710 = vpop.f32.mrf.mxu0
        %v1711 = vadd.f32 0.0, %v1710
        %v1712 = vpop.f32.mrf.mxu0
        %v1713 = vadd.f32 0.0, %v1712
        %1714 = vmatmul.bf16.gmra.mxu0 %v1388
        %v1715 = vpop.f32.mrf.mxu0
        %v1716 = vadd.f32 0.0, %v1715
        %v1717 = vpop.f32.mrf.mxu0
        %v1718 = vadd.f32 0.0, %v1717
        %1719 = vmatmul.bf16.gmra.mxu0 %v1391
        %v1720 = vpop.f32.mrf.mxu0
        %v1721 = vadd.f32 0.0, %v1720
        %v1722 = vpop.f32.mrf.mxu0
        %v1723 = vadd.f32 0.0, %v1722
        %1724 = vmatmul.bf16.gmra.mxu0 %v1394
        %v1725 = vpop.f32.mrf.mxu0
        %v1726 = vadd.f32 0.0, %v1725
        %v1727 = vpop.f32.mrf.mxu0
        %v1728 = vadd.f32 0.0, %v1727
        %1729 = vmatmul.bf16.gmra.mxu0 %v1397
        %v1730 = vpop.f32.mrf.mxu0
        %v1731 = vadd.f32 0.0, %v1730
        %v1732 = vpop.f32.mrf.mxu0
        %v1733 = vadd.f32 0.0, %v1732
        %1734 = vmatmul.bf16.gmra.mxu0 %v1400
        %v1735 = vpop.f32.mrf.mxu0
        %v1736 = vadd.f32 0.0, %v1735
        %v1737 = vpop.f32.mrf.mxu0
        %v1738 = vadd.f32 0.0, %v1737
        %1739 = vmatmul.bf16.gmra.mxu0 %v1403
        %v1740 = vpop.f32.mrf.mxu0
        %v1741 = vadd.f32 0.0, %v1740
        %v1742 = vpop.f32.mrf.mxu0
        %v1743 = vadd.f32 0.0, %v1742
        %1744 = vmatmul.bf16.gmra.mxu0 %v1406
        %v1745 = vpop.f32.mrf.mxu0
        %v1746 = vadd.f32 0.0, %v1745
        %v1747 = vpop.f32.mrf.mxu0
        %v1748 = vadd.f32 0.0, %v1747
        %1749 = vmatmul.bf16.gmra.mxu0 %v1409
        %v1750 = vpop.f32.mrf.mxu0
        %v1751 = vadd.f32 0.0, %v1750
        %v1752 = vpop.f32.mrf.mxu0
        %v1753 = vadd.f32 0.0, %v1752
        %1754 = vmatmul.bf16.gmra.mxu0 %v1412
        %v1755 = vpop.f32.mrf.mxu0
        %v1756 = vadd.f32 0.0, %v1755
        %v1757 = vpop.f32.mrf.mxu0
        %v1758 = vadd.f32 0.0, %v1757
        %1759 = vmatmul.bf16.gmra.mxu0 %v1415
        %v1760 = vpop.f32.mrf.mxu0
        %v1761 = vadd.f32 0.0, %v1760
        %v1762 = vpop.f32.mrf.mxu0
        %v1763 = vadd.f32 0.0, %v1762
        %1764 = vmatmul.bf16.gmra.mxu0 %v1418
        %v1765 = vpop.f32.mrf.mxu0
        %v1766 = vadd.f32 0.0, %v1765
        %v1767 = vpop.f32.mrf.mxu0
        %v1768 = vadd.f32 0.0, %v1767
        %1769 = vmatmul.bf16.gmra.mxu0 %v1421
        %v1770 = vpop.f32.mrf.mxu0
        %v1771 = vadd.f32 0.0, %v1770
        %v1772 = vpop.f32.mrf.mxu0
        %v1773 = vadd.f32 0.0, %v1772
        %1774 = vmatmul.bf16.gmra.mxu0 %v1424
        %v1775 = vpop.f32.mrf.mxu0
        %v1776 = vadd.f32 0.0, %v1775
        %v1777 = vpop.f32.mrf.mxu0
        %v1778 = vadd.f32 0.0, %v1777
        %1779 = vmatmul.bf16.gmra.mxu0 %v1427
        %v1780 = vpop.f32.mrf.mxu0
        %v1781 = vadd.f32 0.0, %v1780
        %v1782 = vpop.f32.mrf.mxu0
        %v1783 = vadd.f32 0.0, %v1782
        %1784 = vmatmul.bf16.gmra.mxu0 %v1430
        %v1785 = vpop.f32.mrf.mxu0
        %v1786 = vadd.f32 0.0, %v1785
        %v1787 = vpop.f32.mrf.mxu0
        %v1788 = vadd.f32 0.0, %v1787
        %1789 = vmatmul.bf16.gmra.mxu0 %v1433
        %v1790 = vpop.f32.mrf.mxu0
        %v1791 = vadd.f32 0.0, %v1790
        %v1792 = vpop.f32.mrf.mxu0
        %v1793 = vadd.f32 0.0, %v1792
        %1794 = vmatmul.bf16.gmra.mxu0 %v1436
        %v1795 = vpop.f32.mrf.mxu0
        %v1796 = vadd.f32 0.0, %v1795
        %v1797 = vpop.f32.mrf.mxu0
        %v1798 = vadd.f32 0.0, %v1797
        %1799 = vmatmul.bf16.gmra.mxu0 %v1439
        %v1800 = vpop.f32.mrf.mxu0
        %v1801 = vadd.f32 0.0, %v1800
        %v1802 = vpop.f32.mrf.mxu0
        %v1803 = vadd.f32 0.0, %v1802
        %1804 = vmatmul.bf16.gmra.mxu0 %v1442
        %v1805 = vpop.f32.mrf.mxu0
        %v1806 = vadd.f32 0.0, %v1805
        %v1807 = vpop.f32.mrf.mxu0
        %v1808 = vadd.f32 0.0, %v1807
        %1809 = vmatmul.bf16.gmra.mxu0 %v1445
        %v1810 = vpop.f32.mrf.mxu0
        %v1811 = vadd.f32 0.0, %v1810
        %v1812 = vpop.f32.mrf.mxu0
        %v1813 = vadd.f32 0.0, %v1812
        %1814 = vmatmul.bf16.gmra.mxu0 %v1448
        %v1815 = vpop.f32.mrf.mxu0
        %v1816 = vadd.f32 0.0, %v1815
        %v1817 = vpop.f32.mrf.mxu0
        %v1818 = vadd.f32 0.0, %v1817
        %1819 = vdwg.mxu0
        %1820 = vmatpush.bf16.msra.mxu0 %v1643
        %1821 = vmatpush.bf16.msra.mxu0 %v1642
        %1822 = vmatpush.bf16.msra.mxu0 %v1641
        %1823 = vmatpush.bf16.msra.mxu0 %v1640
        %1824 = vmatpush.bf16.msra.mxu0 %v1639
        %1825 = vmatpush.bf16.msra.mxu0 %v1638
        %1826 = vmatpush.bf16.msra.mxu0 %v1637
        %1827 = vmatpush.bf16.msra.mxu0 %v1636
        %1828 = vmatmul.bf16.gmra.mxu0 %v1371
        %v1829 = vpop.f32.mrf.mxu0
        %v1830 = vadd.f32 %v1686, %v1829
        %v1831 = vpop.f32.mrf.mxu0
        %v1832 = vadd.f32 %v1688, %v1831
        %1833 = vmatmul.bf16.gmra.mxu0 %v1374
        %v1834 = vpop.f32.mrf.mxu0
        %v1835 = vadd.f32 %v1691, %v1834
        %v1836 = vpop.f32.mrf.mxu0
        %v1837 = vadd.f32 %v1693, %v1836
        %1838 = vmatmul.bf16.gmra.mxu0 %v1377
        %v1839 = vpop.f32.mrf.mxu0
        %v1840 = vadd.f32 %v1696, %v1839
        %v1841 = vpop.f32.mrf.mxu0
        %v1842 = vadd.f32 %v1698, %v1841
        %1843 = vmatmul.bf16.gmra.mxu0 %v1380
        %v1844 = vpop.f32.mrf.mxu0
        %v1845 = vadd.f32 %v1701, %v1844
        %v1846 = vpop.f32.mrf.mxu0
        %v1847 = vadd.f32 %v1703, %v1846
        %1848 = vmatmul.bf16.gmra.mxu0 %v1383
        %v1849 = vpop.f32.mrf.mxu0
        %v1850 = vadd.f32 %v1706, %v1849
        %v1851 = vpop.f32.mrf.mxu0
        %v1852 = vadd.f32 %v1708, %v1851
        %1853 = vmatmul.bf16.gmra.mxu0 %v1386
        %v1854 = vpop.f32.mrf.mxu0
        %v1855 = vadd.f32 %v1711, %v1854
        %v1856 = vpop.f32.mrf.mxu0
        %v1857 = vadd.f32 %v1713, %v1856
        %1858 = vmatmul.bf16.gmra.mxu0 %v1389
        %v1859 = vpop.f32.mrf.mxu0
        %v1860 = vadd.f32 %v1716, %v1859
        %v1861 = vpop.f32.mrf.mxu0
        %v1862 = vadd.f32 %v1718, %v1861
        %1863 = vmatmul.bf16.gmra.mxu0 %v1392
        %v1864 = vpop.f32.mrf.mxu0
        %v1865 = vadd.f32 %v1721, %v1864
        %v1866 = vpop.f32.mrf.mxu0
        %v1867 = vadd.f32 %v1723, %v1866
        %1868 = vmatmul.bf16.gmra.mxu0 %v1395
        %v1869 = vpop.f32.mrf.mxu0
        %v1870 = vadd.f32 %v1726, %v1869
        %v1871 = vpop.f32.mrf.mxu0
        %v1872 = vadd.f32 %v1728, %v1871
        %1873 = vmatmul.bf16.gmra.mxu0 %v1398
        %v1874 = vpop.f32.mrf.mxu0
        %v1875 = vadd.f32 %v1731, %v1874
        %v1876 = vpop.f32.mrf.mxu0
        %v1877 = vadd.f32 %v1733, %v1876
        %1878 = vmatmul.bf16.gmra.mxu0 %v1401
        %v1879 = vpop.f32.mrf.mxu0
        %v1880 = vadd.f32 %v1736, %v1879
        %v1881 = vpop.f32.mrf.mxu0
        %v1882 = vadd.f32 %v1738, %v1881
        %1883 = vmatmul.bf16.gmra.mxu0 %v1404
        %v1884 = vpop.f32.mrf.mxu0
        %v1885 = vadd.f32 %v1741, %v1884
        %v1886 = vpop.f32.mrf.mxu0
        %v1887 = vadd.f32 %v1743, %v1886
        %1888 = vmatmul.bf16.gmra.mxu0 %v1407
        %v1889 = vpop.f32.mrf.mxu0
        %v1890 = vadd.f32 %v1746, %v1889
        %v1891 = vpop.f32.mrf.mxu0
        %v1892 = vadd.f32 %v1748, %v1891
        %1893 = vmatmul.bf16.gmra.mxu0 %v1410
        %v1894 = vpop.f32.mrf.mxu0
        %v1895 = vadd.f32 %v1751, %v1894
        %v1896 = vpop.f32.mrf.mxu0
        %v1897 = vadd.f32 %v1753, %v1896
        %1898 = vmatmul.bf16.gmra.mxu0 %v1413
        %v1899 = vpop.f32.mrf.mxu0
        %v1900 = vadd.f32 %v1756, %v1899
        %v1901 = vpop.f32.mrf.mxu0
        %v1902 = vadd.f32 %v1758, %v1901
        %1903 = vmatmul.bf16.gmra.mxu0 %v1416
        %v1904 = vpop.f32.mrf.mxu0
        %v1905 = vadd.f32 %v1761, %v1904
        %v1906 = vpop.f32.mrf.mxu0
        %v1907 = vadd.f32 %v1763, %v1906
        %1908 = vmatmul.bf16.gmra.mxu0 %v1419
        %v1909 = vpop.f32.mrf.mxu0
        %v1910 = vadd.f32 %v1766, %v1909
        %v1911 = vpop.f32.mrf.mxu0
        %v1912 = vadd.f32 %v1768, %v1911
        %1913 = vmatmul.bf16.gmra.mxu0 %v1422
        %v1914 = vpop.f32.mrf.mxu0
        %v1915 = vadd.f32 %v1771, %v1914
        %v1916 = vpop.f32.mrf.mxu0
        %v1917 = vadd.f32 %v1773, %v1916
        %1918 = vmatmul.bf16.gmra.mxu0 %v1425
        %v1919 = vpop.f32.mrf.mxu0
        %v1920 = vadd.f32 %v1776, %v1919
        %v1921 = vpop.f32.mrf.mxu0
        %v1922 = vadd.f32 %v1778, %v1921
        %1923 = vmatmul.bf16.gmra.mxu0 %v1428
        %v1924 = vpop.f32.mrf.mxu0
        %v1925 = vadd.f32 %v1781, %v1924
        %v1926 = vpop.f32.mrf.mxu0
        %v1927 = vadd.f32 %v1783, %v1926
        %1928 = vmatmul.bf16.gmra.mxu0 %v1431
        %v1929 = vpop.f32.mrf.mxu0
        %v1930 = vadd.f32 %v1786, %v1929
        %v1931 = vpop.f32.mrf.mxu0
        %v1932 = vadd.f32 %v1788, %v1931
        %1933 = vmatmul.bf16.gmra.mxu0 %v1434
        %v1934 = vpop.f32.mrf.mxu0
        %v1935 = vadd.f32 %v1791, %v1934
        %v1936 = vpop.f32.mrf.mxu0
        %v1937 = vadd.f32 %v1793, %v1936
        %1938 = vmatmul.bf16.gmra.mxu0 %v1437
        %v1939 = vpop.f32.mrf.mxu0
        %v1940 = vadd.f32 %v1796, %v1939
        %v1941 = vpop.f32.mrf.mxu0
        %v1942 = vadd.f32 %v1798, %v1941
        %1943 = vmatmul.bf16.gmra.mxu0 %v1440
        %v1944 = vpop.f32.mrf.mxu0
        %v1945 = vadd.f32 %v1801, %v1944
        %v1946 = vpop.f32.mrf.mxu0
        %v1947 = vadd.f32 %v1803, %v1946
        %1948 = vmatmul.bf16.gmra.mxu0 %v1443
        %v1949 = vpop.f32.mrf.mxu0
        %v1950 = vadd.f32 %v1806, %v1949
        %v1951 = vpop.f32.mrf.mxu0
        %v1952 = vadd.f32 %v1808, %v1951
        %1953 = vmatmul.bf16.gmra.mxu0 %v1446
        %v1954 = vpop.f32.mrf.mxu0
        %v1955 = vadd.f32 %v1811, %v1954
        %v1956 = vpop.f32.mrf.mxu0
        %v1957 = vadd.f32 %v1813, %v1956
        %1958 = vmatmul.bf16.gmra.mxu0 %v1449
        %v1959 = vpop.f32.mrf.mxu0
        %v1960 = vadd.f32 %v1816, %v1959
        %v1961 = vpop.f32.mrf.mxu0
        %v1962 = vadd.f32 %v1818, %v1961
        %1963 = vdwg.mxu0
        %1964 = vmatpush.bf16.msra.mxu0 %v1651
        %1965 = vmatpush.bf16.msra.mxu0 %v1650
        %1966 = vmatpush.bf16.msra.mxu0 %v1649
        %1967 = vmatpush.bf16.msra.mxu0 %v1648
        %1968 = vmatpush.bf16.msra.mxu0 %v1647
        %1969 = vmatpush.bf16.msra.mxu0 %v1646
        %1970 = vmatpush.bf16.msra.mxu0 %v1645
        %1971 = vmatpush.bf16.msra.mxu0 %v1644
        %1972 = vmatmul.bf16.gmra.mxu0 %v1372
        %v1973 = vpop.f32.mrf.mxu0
        %v1974 = vadd.f32 %v1830, %v1973
        %v1975 = vpop.f32.mrf.mxu0
        %v1976 = vadd.f32 %v1832, %v1975
        %1977 = vmatmul.bf16.gmra.mxu0 %v1375
        %v1978 = vpop.f32.mrf.mxu0
        %v1979 = vadd.f32 %v1835, %v1978
        %v1980 = vpop.f32.mrf.mxu0
        %v1981 = vadd.f32 %v1837, %v1980
        %1982 = vmatmul.bf16.gmra.mxu0 %v1378
        %v1983 = vpop.f32.mrf.mxu0
        %v1984 = vadd.f32 %v1840, %v1983
        %v1985 = vpop.f32.mrf.mxu0
        %v1986 = vadd.f32 %v1842, %v1985
        %1987 = vmatmul.bf16.gmra.mxu0 %v1381
        %v1988 = vpop.f32.mrf.mxu0
        %v1989 = vadd.f32 %v1845, %v1988
        %v1990 = vpop.f32.mrf.mxu0
        %v1991 = vadd.f32 %v1847, %v1990
        %1992 = vmatmul.bf16.gmra.mxu0 %v1384
        %v1993 = vpop.f32.mrf.mxu0
        %v1994 = vadd.f32 %v1850, %v1993
        %v1995 = vpop.f32.mrf.mxu0
        %v1996 = vadd.f32 %v1852, %v1995
        %1997 = vmatmul.bf16.gmra.mxu0 %v1387
        %v1998 = vpop.f32.mrf.mxu0
        %v1999 = vadd.f32 %v1855, %v1998
        %v2000 = vpop.f32.mrf.mxu0
        %v2001 = vadd.f32 %v1857, %v2000
        %2002 = vmatmul.bf16.gmra.mxu0 %v1390
        %v2003 = vpop.f32.mrf.mxu0
        %v2004 = vadd.f32 %v1860, %v2003
        %v2005 = vpop.f32.mrf.mxu0
        %v2006 = vadd.f32 %v1862, %v2005
        %2007 = vmatmul.bf16.gmra.mxu0 %v1393
        %v2008 = vpop.f32.mrf.mxu0
        %v2009 = vadd.f32 %v1865, %v2008
        %v2010 = vpop.f32.mrf.mxu0
        %v2011 = vadd.f32 %v1867, %v2010
        %2012 = vmatmul.bf16.gmra.mxu0 %v1396
        %v2013 = vpop.f32.mrf.mxu0
        %v2014 = vadd.f32 %v1870, %v2013
        %v2015 = vpop.f32.mrf.mxu0
        %v2016 = vadd.f32 %v1872, %v2015
        %2017 = vmatmul.bf16.gmra.mxu0 %v1399
        %v2018 = vpop.f32.mrf.mxu0
        %v2019 = vadd.f32 %v1875, %v2018
        %v2020 = vpop.f32.mrf.mxu0
        %v2021 = vadd.f32 %v1877, %v2020
        %2022 = vmatmul.bf16.gmra.mxu0 %v1402
        %v2023 = vpop.f32.mrf.mxu0
        %v2024 = vadd.f32 %v1880, %v2023
        %v2025 = vpop.f32.mrf.mxu0
        %v2026 = vadd.f32 %v1882, %v2025
        %2027 = vmatmul.bf16.gmra.mxu0 %v1405
        %v2028 = vpop.f32.mrf.mxu0
        %v2029 = vadd.f32 %v1885, %v2028
        %v2030 = vpop.f32.mrf.mxu0
        %v2031 = vadd.f32 %v1887, %v2030
        %2032 = vmatmul.bf16.gmra.mxu0 %v1408
        %v2033 = vpop.f32.mrf.mxu0
        %v2034 = vadd.f32 %v1890, %v2033
        %v2035 = vpop.f32.mrf.mxu0
        %v2036 = vadd.f32 %v1892, %v2035
        %2037 = vmatmul.bf16.gmra.mxu0 %v1411
        %v2038 = vpop.f32.mrf.mxu0
        %v2039 = vadd.f32 %v1895, %v2038
        %v2040 = vpop.f32.mrf.mxu0
        %v2041 = vadd.f32 %v1897, %v2040
        %2042 = vmatmul.bf16.gmra.mxu0 %v1414
        %v2043 = vpop.f32.mrf.mxu0
        %v2044 = vadd.f32 %v1900, %v2043
        %v2045 = vpop.f32.mrf.mxu0
        %v2046 = vadd.f32 %v1902, %v2045
        %2047 = vmatmul.bf16.gmra.mxu0 %v1417
        %v2048 = vpop.f32.mrf.mxu0
        %v2049 = vadd.f32 %v1905, %v2048
        %v2050 = vpop.f32.mrf.mxu0
        %v2051 = vadd.f32 %v1907, %v2050
        %2052 = vmatmul.bf16.gmra.mxu0 %v1420
        %v2053 = vpop.f32.mrf.mxu0
        %v2054 = vadd.f32 %v1910, %v2053
        %v2055 = vpop.f32.mrf.mxu0
        %v2056 = vadd.f32 %v1912, %v2055
        %2057 = vmatmul.bf16.gmra.mxu0 %v1423
        %v2058 = vpop.f32.mrf.mxu0
        %v2059 = vadd.f32 %v1915, %v2058
        %v2060 = vpop.f32.mrf.mxu0
        %v2061 = vadd.f32 %v1917, %v2060
        %2062 = vmatmul.bf16.gmra.mxu0 %v1426
        %v2063 = vpop.f32.mrf.mxu0
        %v2064 = vadd.f32 %v1920, %v2063
        %v2065 = vpop.f32.mrf.mxu0
        %v2066 = vadd.f32 %v1922, %v2065
        %2067 = vmatmul.bf16.gmra.mxu0 %v1429
        %v2068 = vpop.f32.mrf.mxu0
        %v2069 = vadd.f32 %v1925, %v2068
        %v2070 = vpop.f32.mrf.mxu0
        %v2071 = vadd.f32 %v1927, %v2070
        %2072 = vmatmul.bf16.gmra.mxu0 %v1432
        %v2073 = vpop.f32.mrf.mxu0
        %v2074 = vadd.f32 %v1930, %v2073
        %v2075 = vpop.f32.mrf.mxu0
        %v2076 = vadd.f32 %v1932, %v2075
        %2077 = vmatmul.bf16.gmra.mxu0 %v1435
        %v2078 = vpop.f32.mrf.mxu0
        %v2079 = vadd.f32 %v1935, %v2078
        %v2080 = vpop.f32.mrf.mxu0
        %v2081 = vadd.f32 %v1937, %v2080
        %2082 = vmatmul.bf16.gmra.mxu0 %v1438
        %v2083 = vpop.f32.mrf.mxu0
        %v2084 = vadd.f32 %v1940, %v2083
        %v2085 = vpop.f32.mrf.mxu0
        %v2086 = vadd.f32 %v1942, %v2085
        %2087 = vmatmul.bf16.gmra.mxu0 %v1441
        %v2088 = vpop.f32.mrf.mxu0
        %v2089 = vadd.f32 %v1945, %v2088
        %v2090 = vpop.f32.mrf.mxu0
        %v2091 = vadd.f32 %v1947, %v2090
        %2092 = vmatmul.bf16.gmra.mxu0 %v1444
        %v2093 = vpop.f32.mrf.mxu0
        %v2094 = vadd.f32 %v1950, %v2093
        %v2095 = vpop.f32.mrf.mxu0
        %v2096 = vadd.f32 %v1952, %v2095
        %2097 = vmatmul.bf16.gmra.mxu0 %v1447
        %v2098 = vpop.f32.mrf.mxu0
        %v2099 = vadd.f32 %v1955, %v2098
        %v2100 = vpop.f32.mrf.mxu0
        %v2101 = vadd.f32 %v1957, %v2100
        %2102 = vmatmul.bf16.gmra.mxu0 %v1450
        %v2103 = vpop.f32.mrf.mxu0
        %v2104 = vadd.f32 %v1960, %v2103
        %v2105 = vpop.f32.mrf.mxu0
        %v2106 = vadd.f32 %v1962, %v2105
        %2107 = vdwg.mxu0
        %v2108 = vpack.c.b16 %v472, %v471
        %v2109 = vpack.c.b16 %v1155, %v1153
        %v2110 = vpack.c.b16 %v1156, %v1154
        %v2111 = vpack.c.b16 %v474, %v473
        %v2112 = vpack.c.b16 %v1159, %v1157
        %v2113 = vpack.c.b16 %v1160, %v1158
        %v2114 = vpack.c.b16 %v476, %v475
        %v2115 = vpack.c.b16 %v1163, %v1161
        %v2116 = vpack.c.b16 %v1164, %v1162
        %v2117 = vpack.c.b16 %v478, %v477
        %v2118 = vpack.c.b16 %v1167, %v1165
        %v2119 = vpack.c.b16 %v1168, %v1166
        %v2120 = vpack.c.b16 %v480, %v479
        %v2121 = vpack.c.b16 %v1171, %v1169
        %v2122 = vpack.c.b16 %v1172, %v1170
        %v2123 = vpack.c.b16 %v482, %v481
        %v2124 = vpack.c.b16 %v1175, %v1173
        %v2125 = vpack.c.b16 %v1176, %v1174
        %v2126 = vpack.c.b16 %v484, %v483
        %v2127 = vpack.c.b16 %v1179, %v1177
        %v2128 = vpack.c.b16 %v1180, %v1178
        %v2129 = vpack.c.b16 %v486, %v485
        %v2130 = vpack.c.b16 %v1183, %v1181
        %v2131 = vpack.c.b16 %v1184, %v1182
        %v2132 = vpack.c.b16 %v488, %v487
        %v2133 = vpack.c.b16 %v1187, %v1185
        %v2134 = vpack.c.b16 %v1188, %v1186
        %v2135 = vpack.c.b16 %v490, %v489
        %v2136 = vpack.c.b16 %v1191, %v1189
        %v2137 = vpack.c.b16 %v1192, %v1190
        %v2138 = vpack.c.b16 %v492, %v491
        %v2139 = vpack.c.b16 %v1195, %v1193
        %v2140 = vpack.c.b16 %v1196, %v1194
        %v2141 = vpack.c.b16 %v494, %v493
        %v2142 = vpack.c.b16 %v1199, %v1197
        %v2143 = vpack.c.b16 %v1200, %v1198
        %v2144 = vpack.c.b16 %v496, %v495
        %v2145 = vpack.c.b16 %v1203, %v1201
        %v2146 = vpack.c.b16 %v1204, %v1202
        %v2147 = vpack.c.b16 %v498, %v497
        %v2148 = vpack.c.b16 %v1207, %v1205
        %v2149 = vpack.c.b16 %v1208, %v1206
        %v2150 = vpack.c.b16 %v500, %v499
        %v2151 = vpack.c.b16 %v1211, %v1209
        %v2152 = vpack.c.b16 %v1212, %v1210
        %v2153 = vpack.c.b16 %v502, %v501
        %v2154 = vpack.c.b16 %v1215, %v1213
        %v2155 = vpack.c.b16 %v1216, %v1214
        %v2156 = vpack.c.b16 %v504, %v503
        %v2157 = vpack.c.b16 %v1219, %v1217
        %v2158 = vpack.c.b16 %v1220, %v1218
        %v2159 = vpack.c.b16 %v506, %v505
        %v2160 = vpack.c.b16 %v1223, %v1221
        %v2161 = vpack.c.b16 %v1224, %v1222
        %v2162 = vpack.c.b16 %v508, %v507
        %v2163 = vpack.c.b16 %v1227, %v1225
        %v2164 = vpack.c.b16 %v1228, %v1226
        %v2165 = vpack.c.b16 %v510, %v509
        %v2166 = vpack.c.b16 %v1231, %v1229
        %v2167 = vpack.c.b16 %v1232, %v1230
        %v2168 = vpack.c.b16 %v512, %v511
        %v2169 = vpack.c.b16 %v1235, %v1233
        %v2170 = vpack.c.b16 %v1236, %v1234
        %v2171 = vpack.c.b16 %v514, %v513
        %v2172 = vpack.c.b16 %v1239, %v1237
        %v2173 = vpack.c.b16 %v1240, %v1238
        %v2174 = vpack.c.b16 %v516, %v515
        %v2175 = vpack.c.b16 %v1243, %v1241
        %v2176 = vpack.c.b16 %v1244, %v1242
        %v2177 = vpack.c.b16 %v518, %v517
        %v2178 = vpack.c.b16 %v1247, %v1245
        %v2179 = vpack.c.b16 %v1248, %v1246
        %v2180 = vpack.c.b16 %v520, %v519
        %v2181 = vpack.c.b16 %v1251, %v1249
        %v2182 = vpack.c.b16 %v1252, %v1250
        %v2183 = vpack.c.b16 %v522, %v521
        %v2184 = vpack.c.b16 %v1255, %v1253
        %v2185 = vpack.c.b16 %v1256, %v1254
        %v2186 = vpack.c.b16 %v524, %v523
        %v2187 = vpack.c.b16 %v1259, %v1257
        %v2188 = vpack.c.b16 %v1260, %v1258
        %v2318 = vunpack.c.l.b16 %v1273
        %v2319 = vunpack.c.l.b16 %v1274
        %v2320 = vunpack.c.l.b16 %v1275
        %v2321 = vunpack.c.l.b16 %v1276
        %v2322 = vunpack.c.l.b16 %v1277
        %v2323 = vunpack.c.l.b16 %v1278
        %v2324 = vunpack.c.l.b16 %v1279
        %v2325 = vunpack.c.l.b16 %v1280
        %v2326 = vunpack.c.l.b16 %v1281
        %v2327 = vunpack.c.l.b16 %v1282
        %v2328 = vunpack.c.l.b16 %v1283
        %v2329 = vunpack.c.l.b16 %v1284
        %v2330 = vunpack.c.l.b16 %v1285
        %v2331 = vunpack.c.l.b16 %v1286
        %v2332 = vunpack.c.l.b16 %v1287
        %v2333 = vunpack.c.l.b16 %v1288
        %v2334 = vunpack.c.l.b16 %v1289
        %v2335 = vunpack.c.l.b16 %v1290
        %v2336 = vunpack.c.l.b16 %v1291
        %v2337 = vunpack.c.l.b16 %v1292
        %v2338 = vunpack.c.l.b16 %v1293
        %v2339 = vunpack.c.l.b16 %v1294
        %v2340 = vunpack.c.l.b16 %v1295
        %v2341 = vunpack.c.l.b16 %v1296
        %v2342 = vunpack.c.l.b16 %v1297
        %v2343 = vunpack.c.l.b16 %v1298
        %v2344 = vunpack.c.l.b16 %v1299
        %v2345 = vunpack.c.l.b16 %v1300
        %v2346 = vunpack.c.l.b16 %v1301
        %v2347 = vunpack.c.l.b16 %v1302
        %v2348 = vunpack.c.l.b16 %v1303
        %v2349 = vunpack.c.l.b16 %v1304
        %v2350 = vunpack.c.l.b16 %v1305
        %v2351 = vunpack.c.l.b16 %v1306
        %v2352 = vunpack.c.l.b16 %v1307
        %v2353 = vunpack.c.l.b16 %v1308
        %v2354 = vunpack.c.l.b16 %v1309
        %v2355 = vunpack.c.l.b16 %v1310
        %v2356 = vunpack.c.l.b16 %v1311
        %v2357 = vunpack.c.l.b16 %v1312
        %v2358 = vunpack.c.l.b16 %v1313
        %v2359 = vunpack.c.l.b16 %v1314
        %v2360 = vunpack.c.l.b16 %v1315
        %v2361 = vunpack.c.l.b16 %v1316
        %v2362 = vunpack.c.l.b16 %v1317
        %v2363 = vunpack.c.l.b16 %v1318
        %v2364 = vunpack.c.l.b16 %v1319
        %v2365 = vunpack.c.l.b16 %v1320
        %v2366 = vpack.c.b16 %v2319, %v2318
        %v2367 = vpack.c.b16 %v2321, %v2320
        %v2368 = vpack.c.b16 %v2323, %v2322
        %v2369 = vpack.c.b16 %v2325, %v2324
        %v2370 = vpack.c.b16 %v2327, %v2326
        %v2371 = vpack.c.b16 %v2329, %v2328
        %v2372 = vpack.c.b16 %v2331, %v2330
        %v2373 = vpack.c.b16 %v2333, %v2332
        %v2374 = vpack.c.b16 %v2335, %v2334
        %v2375 = vpack.c.b16 %v2337, %v2336
        %v2376 = vpack.c.b16 %v2339, %v2338
        %v2377 = vpack.c.b16 %v2341, %v2340
        %v2378 = vpack.c.b16 %v2343, %v2342
        %v2379 = vpack.c.b16 %v2345, %v2344
        %v2380 = vpack.c.b16 %v2347, %v2346
        %v2381 = vpack.c.b16 %v2349, %v2348
        %v2382 = vpack.c.b16 %v2351, %v2350
        %v2383 = vpack.c.b16 %v2353, %v2352
        %v2384 = vpack.c.b16 %v2355, %v2354
        %v2385 = vpack.c.b16 %v2357, %v2356
        %v2386 = vpack.c.b16 %v2359, %v2358
        %v2387 = vpack.c.b16 %v2361, %v2360
        %v2388 = vpack.c.b16 %v2363, %v2362
        %v2389 = vpack.c.b16 %v2365, %v2364
        %2414 = vmatpush.bf16.msra.mxu0 %v2373
        %2415 = vmatpush.bf16.msra.mxu0 %v2372
        %2416 = vmatpush.bf16.msra.mxu0 %v2371
        %2417 = vmatpush.bf16.msra.mxu0 %v2370
        %2418 = vmatpush.bf16.msra.mxu0 %v2369
        %2419 = vmatpush.bf16.msra.mxu0 %v2368
        %2420 = vmatpush.bf16.msra.mxu0 %v2367
        %2421 = vmatpush.bf16.msra.mxu0 %v2366
        %2422 = vmatmul.bf16.gmra.mxu0 %v2108
        %v2423 = vpop.f32.mrf.mxu0
        %v2424 = vadd.f32 %v1974, %v2423
        %v2425 = vpop.f32.mrf.mxu0
        %v2426 = vadd.f32 %v1976, %v2425
        %2427 = vmatmul.bf16.gmra.mxu0 %v2111
        %v2428 = vpop.f32.mrf.mxu0
        %v2429 = vadd.f32 %v1979, %v2428
        %v2430 = vpop.f32.mrf.mxu0
        %v2431 = vadd.f32 %v1981, %v2430
        %2432 = vmatmul.bf16.gmra.mxu0 %v2114
        %v2433 = vpop.f32.mrf.mxu0
        %v2434 = vadd.f32 %v1984, %v2433
        %v2435 = vpop.f32.mrf.mxu0
        %v2436 = vadd.f32 %v1986, %v2435
        %2437 = vmatmul.bf16.gmra.mxu0 %v2117
        %v2438 = vpop.f32.mrf.mxu0
        %v2439 = vadd.f32 %v1989, %v2438
        %v2440 = vpop.f32.mrf.mxu0
        %v2441 = vadd.f32 %v1991, %v2440
        %2442 = vmatmul.bf16.gmra.mxu0 %v2120
        %v2443 = vpop.f32.mrf.mxu0
        %v2444 = vadd.f32 %v1994, %v2443
        %v2445 = vpop.f32.mrf.mxu0
        %v2446 = vadd.f32 %v1996, %v2445
        %2447 = vmatmul.bf16.gmra.mxu0 %v2123
        %v2448 = vpop.f32.mrf.mxu0
        %v2449 = vadd.f32 %v1999, %v2448
        %v2450 = vpop.f32.mrf.mxu0
        %v2451 = vadd.f32 %v2001, %v2450
        %2452 = vmatmul.bf16.gmra.mxu0 %v2126
        %v2453 = vpop.f32.mrf.mxu0
        %v2454 = vadd.f32 %v2004, %v2453
        %v2455 = vpop.f32.mrf.mxu0
        %v2456 = vadd.f32 %v2006, %v2455
        %2457 = vmatmul.bf16.gmra.mxu0 %v2129
        %v2458 = vpop.f32.mrf.mxu0
        %v2459 = vadd.f32 %v2009, %v2458
        %v2460 = vpop.f32.mrf.mxu0
        %v2461 = vadd.f32 %v2011, %v2460
        %2462 = vmatmul.bf16.gmra.mxu0 %v2132
        %v2463 = vpop.f32.mrf.mxu0
        %v2464 = vadd.f32 %v2014, %v2463
        %v2465 = vpop.f32.mrf.mxu0
        %v2466 = vadd.f32 %v2016, %v2465
        %2467 = vmatmul.bf16.gmra.mxu0 %v2135
        %v2468 = vpop.f32.mrf.mxu0
        %v2469 = vadd.f32 %v2019, %v2468
        %v2470 = vpop.f32.mrf.mxu0
        %v2471 = vadd.f32 %v2021, %v2470
        %2472 = vmatmul.bf16.gmra.mxu0 %v2138
        %v2473 = vpop.f32.mrf.mxu0
        %v2474 = vadd.f32 %v2024, %v2473
        %v2475 = vpop.f32.mrf.mxu0
        %v2476 = vadd.f32 %v2026, %v2475
        %2477 = vmatmul.bf16.gmra.mxu0 %v2141
        %v2478 = vpop.f32.mrf.mxu0
        %v2479 = vadd.f32 %v2029, %v2478
        %v2480 = vpop.f32.mrf.mxu0
        %v2481 = vadd.f32 %v2031, %v2480
        %2482 = vmatmul.bf16.gmra.mxu0 %v2144
        %v2483 = vpop.f32.mrf.mxu0
        %v2484 = vadd.f32 %v2034, %v2483
        %v2485 = vpop.f32.mrf.mxu0
        %v2486 = vadd.f32 %v2036, %v2485
        %2487 = vmatmul.bf16.gmra.mxu0 %v2147
        %v2488 = vpop.f32.mrf.mxu0
        %v2489 = vadd.f32 %v2039, %v2488
        %v2490 = vpop.f32.mrf.mxu0
        %v2491 = vadd.f32 %v2041, %v2490
        %2492 = vmatmul.bf16.gmra.mxu0 %v2150
        %v2493 = vpop.f32.mrf.mxu0
        %v2494 = vadd.f32 %v2044, %v2493
        %v2495 = vpop.f32.mrf.mxu0
        %v2496 = vadd.f32 %v2046, %v2495
        %2497 = vmatmul.bf16.gmra.mxu0 %v2153
        %v2498 = vpop.f32.mrf.mxu0
        %v2499 = vadd.f32 %v2049, %v2498
        %v2500 = vpop.f32.mrf.mxu0
        %v2501 = vadd.f32 %v2051, %v2500
        %2502 = vmatmul.bf16.gmra.mxu0 %v2156
        %v2503 = vpop.f32.mrf.mxu0
        %v2504 = vadd.f32 %v2054, %v2503
        %v2505 = vpop.f32.mrf.mxu0
        %v2506 = vadd.f32 %v2056, %v2505
        %2507 = vmatmul.bf16.gmra.mxu0 %v2159
        %v2508 = vpop.f32.mrf.mxu0
        %v2509 = vadd.f32 %v2059, %v2508
        %v2510 = vpop.f32.mrf.mxu0
        %v2511 = vadd.f32 %v2061, %v2510
        %2512 = vmatmul.bf16.gmra.mxu0 %v2162
        %v2513 = vpop.f32.mrf.mxu0
        %v2514 = vadd.f32 %v2064, %v2513
        %v2515 = vpop.f32.mrf.mxu0
        %v2516 = vadd.f32 %v2066, %v2515
        %2517 = vmatmul.bf16.gmra.mxu0 %v2165
        %v2518 = vpop.f32.mrf.mxu0
        %v2519 = vadd.f32 %v2069, %v2518
        %v2520 = vpop.f32.mrf.mxu0
        %v2521 = vadd.f32 %v2071, %v2520
        %2522 = vmatmul.bf16.gmra.mxu0 %v2168
        %v2523 = vpop.f32.mrf.mxu0
        %v2524 = vadd.f32 %v2074, %v2523
        %v2525 = vpop.f32.mrf.mxu0
        %v2526 = vadd.f32 %v2076, %v2525
        %2527 = vmatmul.bf16.gmra.mxu0 %v2171
        %v2528 = vpop.f32.mrf.mxu0
        %v2529 = vadd.f32 %v2079, %v2528
        %v2530 = vpop.f32.mrf.mxu0
        %v2531 = vadd.f32 %v2081, %v2530
        %2532 = vmatmul.bf16.gmra.mxu0 %v2174
        %v2533 = vpop.f32.mrf.mxu0
        %v2534 = vadd.f32 %v2084, %v2533
        %v2535 = vpop.f32.mrf.mxu0
        %v2536 = vadd.f32 %v2086, %v2535
        %2537 = vmatmul.bf16.gmra.mxu0 %v2177
        %v2538 = vpop.f32.mrf.mxu0
        %v2539 = vadd.f32 %v2089, %v2538
        %v2540 = vpop.f32.mrf.mxu0
        %v2541 = vadd.f32 %v2091, %v2540
        %2542 = vmatmul.bf16.gmra.mxu0 %v2180
        %v2543 = vpop.f32.mrf.mxu0
        %v2544 = vadd.f32 %v2094, %v2543
        %v2545 = vpop.f32.mrf.mxu0
        %v2546 = vadd.f32 %v2096, %v2545
        %2547 = vmatmul.bf16.gmra.mxu0 %v2183
        %v2548 = vpop.f32.mrf.mxu0
        %v2549 = vadd.f32 %v2099, %v2548
        %v2550 = vpop.f32.mrf.mxu0
        %v2551 = vadd.f32 %v2101, %v2550
        %2552 = vmatmul.bf16.gmra.mxu0 %v2186
        %v2553 = vpop.f32.mrf.mxu0
        %v2554 = vadd.f32 %v2104, %v2553
        %v2555 = vpop.f32.mrf.mxu0
        %v2556 = vadd.f32 %v2106, %v2555
        %2557 = vdwg.mxu0
        %2558 = vmatpush.bf16.msra.mxu0 %v2381
        %2559 = vmatpush.bf16.msra.mxu0 %v2380
        %2560 = vmatpush.bf16.msra.mxu0 %v2379
        %2561 = vmatpush.bf16.msra.mxu0 %v2378
        %2562 = vmatpush.bf16.msra.mxu0 %v2377
        %2563 = vmatpush.bf16.msra.mxu0 %v2376
        %2564 = vmatpush.bf16.msra.mxu0 %v2375
        %2565 = vmatpush.bf16.msra.mxu0 %v2374
        %2566 = vmatmul.bf16.gmra.mxu0 %v2109
        %v2567 = vpop.f32.mrf.mxu0
        %v2568 = vadd.f32 %v2424, %v2567
        %v2569 = vpop.f32.mrf.mxu0
        %v2570 = vadd.f32 %v2426, %v2569
        %2571 = vmatmul.bf16.gmra.mxu0 %v2112
        %v2572 = vpop.f32.mrf.mxu0
        %v2573 = vadd.f32 %v2429, %v2572
        %v2574 = vpop.f32.mrf.mxu0
        %v2575 = vadd.f32 %v2431, %v2574
        %2576 = vmatmul.bf16.gmra.mxu0 %v2115
        %v2577 = vpop.f32.mrf.mxu0
        %v2578 = vadd.f32 %v2434, %v2577
        %v2579 = vpop.f32.mrf.mxu0
        %v2580 = vadd.f32 %v2436, %v2579
        %2581 = vmatmul.bf16.gmra.mxu0 %v2118
        %v2582 = vpop.f32.mrf.mxu0
        %v2583 = vadd.f32 %v2439, %v2582
        %v2584 = vpop.f32.mrf.mxu0
        %v2585 = vadd.f32 %v2441, %v2584
        %2586 = vmatmul.bf16.gmra.mxu0 %v2121
        %v2587 = vpop.f32.mrf.mxu0
        %v2588 = vadd.f32 %v2444, %v2587
        %v2589 = vpop.f32.mrf.mxu0
        %v2590 = vadd.f32 %v2446, %v2589
        %2591 = vmatmul.bf16.gmra.mxu0 %v2124
        %v2592 = vpop.f32.mrf.mxu0
        %v2593 = vadd.f32 %v2449, %v2592
        %v2594 = vpop.f32.mrf.mxu0
        %v2595 = vadd.f32 %v2451, %v2594
        %2596 = vmatmul.bf16.gmra.mxu0 %v2127
        %v2597 = vpop.f32.mrf.mxu0
        %v2598 = vadd.f32 %v2454, %v2597
        %v2599 = vpop.f32.mrf.mxu0
        %v2600 = vadd.f32 %v2456, %v2599
        %2601 = vmatmul.bf16.gmra.mxu0 %v2130
        %v2602 = vpop.f32.mrf.mxu0
        %v2603 = vadd.f32 %v2459, %v2602
        %v2604 = vpop.f32.mrf.mxu0
        %v2605 = vadd.f32 %v2461, %v2604
        %2606 = vmatmul.bf16.gmra.mxu0 %v2133
        %v2607 = vpop.f32.mrf.mxu0
        %v2608 = vadd.f32 %v2464, %v2607
        %v2609 = vpop.f32.mrf.mxu0
        %v2610 = vadd.f32 %v2466, %v2609
        %2611 = vmatmul.bf16.gmra.mxu0 %v2136
        %v2612 = vpop.f32.mrf.mxu0
        %v2613 = vadd.f32 %v2469, %v2612
        %v2614 = vpop.f32.mrf.mxu0
        %v2615 = vadd.f32 %v2471, %v2614
        %2616 = vmatmul.bf16.gmra.mxu0 %v2139
        %v2617 = vpop.f32.mrf.mxu0
        %v2618 = vadd.f32 %v2474, %v2617
        %v2619 = vpop.f32.mrf.mxu0
        %v2620 = vadd.f32 %v2476, %v2619
        %2621 = vmatmul.bf16.gmra.mxu0 %v2142
        %v2622 = vpop.f32.mrf.mxu0
        %v2623 = vadd.f32 %v2479, %v2622
        %v2624 = vpop.f32.mrf.mxu0
        %v2625 = vadd.f32 %v2481, %v2624
        %2626 = vmatmul.bf16.gmra.mxu0 %v2145
        %v2627 = vpop.f32.mrf.mxu0
        %v2628 = vadd.f32 %v2484, %v2627
        %v2629 = vpop.f32.mrf.mxu0
        %v2630 = vadd.f32 %v2486, %v2629
        %2631 = vmatmul.bf16.gmra.mxu0 %v2148
        %v2632 = vpop.f32.mrf.mxu0
        %v2633 = vadd.f32 %v2489, %v2632
        %v2634 = vpop.f32.mrf.mxu0
        %v2635 = vadd.f32 %v2491, %v2634
        %2636 = vmatmul.bf16.gmra.mxu0 %v2151
        %v2637 = vpop.f32.mrf.mxu0
        %v2638 = vadd.f32 %v2494, %v2637
        %v2639 = vpop.f32.mrf.mxu0
        %v2640 = vadd.f32 %v2496, %v2639
        %2641 = vmatmul.bf16.gmra.mxu0 %v2154
        %v2642 = vpop.f32.mrf.mxu0
        %v2643 = vadd.f32 %v2499, %v2642
        %v2644 = vpop.f32.mrf.mxu0
        %v2645 = vadd.f32 %v2501, %v2644
        %2646 = vmatmul.bf16.gmra.mxu0 %v2157
        %v2647 = vpop.f32.mrf.mxu0
        %v2648 = vadd.f32 %v2504, %v2647
        %v2649 = vpop.f32.mrf.mxu0
        %v2650 = vadd.f32 %v2506, %v2649
        %2651 = vmatmul.bf16.gmra.mxu0 %v2160
        %v2652 = vpop.f32.mrf.mxu0
        %v2653 = vadd.f32 %v2509, %v2652
        %v2654 = vpop.f32.mrf.mxu0
        %v2655 = vadd.f32 %v2511, %v2654
        %2656 = vmatmul.bf16.gmra.mxu0 %v2163
        %v2657 = vpop.f32.mrf.mxu0
        %v2658 = vadd.f32 %v2514, %v2657
        %v2659 = vpop.f32.mrf.mxu0
        %v2660 = vadd.f32 %v2516, %v2659
        %2661 = vmatmul.bf16.gmra.mxu0 %v2166
        %v2662 = vpop.f32.mrf.mxu0
        %v2663 = vadd.f32 %v2519, %v2662
        %v2664 = vpop.f32.mrf.mxu0
        %v2665 = vadd.f32 %v2521, %v2664
        %2666 = vmatmul.bf16.gmra.mxu0 %v2169
        %v2667 = vpop.f32.mrf.mxu0
        %v2668 = vadd.f32 %v2524, %v2667
        %v2669 = vpop.f32.mrf.mxu0
        %v2670 = vadd.f32 %v2526, %v2669
        %2671 = vmatmul.bf16.gmra.mxu0 %v2172
        %v2672 = vpop.f32.mrf.mxu0
        %v2673 = vadd.f32 %v2529, %v2672
        %v2674 = vpop.f32.mrf.mxu0
        %v2675 = vadd.f32 %v2531, %v2674
        %2676 = vmatmul.bf16.gmra.mxu0 %v2175
        %v2677 = vpop.f32.mrf.mxu0
        %v2678 = vadd.f32 %v2534, %v2677
        %v2679 = vpop.f32.mrf.mxu0
        %v2680 = vadd.f32 %v2536, %v2679
        %2681 = vmatmul.bf16.gmra.mxu0 %v2178
        %v2682 = vpop.f32.mrf.mxu0
        %v2683 = vadd.f32 %v2539, %v2682
        %v2684 = vpop.f32.mrf.mxu0
        %v2685 = vadd.f32 %v2541, %v2684
        %2686 = vmatmul.bf16.gmra.mxu0 %v2181
        %v2687 = vpop.f32.mrf.mxu0
        %v2688 = vadd.f32 %v2544, %v2687
        %v2689 = vpop.f32.mrf.mxu0
        %v2690 = vadd.f32 %v2546, %v2689
        %2691 = vmatmul.bf16.gmra.mxu0 %v2184
        %v2692 = vpop.f32.mrf.mxu0
        %v2693 = vadd.f32 %v2549, %v2692
        %v2694 = vpop.f32.mrf.mxu0
        %v2695 = vadd.f32 %v2551, %v2694
        %2696 = vmatmul.bf16.gmra.mxu0 %v2187
        %v2697 = vpop.f32.mrf.mxu0
        %v2698 = vadd.f32 %v2554, %v2697
        %v2699 = vpop.f32.mrf.mxu0
        %v2700 = vadd.f32 %v2556, %v2699
        %2701 = vdwg.mxu0
        %2702 = vmatpush.bf16.msra.mxu0 %v2389
        %2703 = vmatpush.bf16.msra.mxu0 %v2388
        %2704 = vmatpush.bf16.msra.mxu0 %v2387
        %2705 = vmatpush.bf16.msra.mxu0 %v2386
        %2706 = vmatpush.bf16.msra.mxu0 %v2385
        %2707 = vmatpush.bf16.msra.mxu0 %v2384
        %2708 = vmatpush.bf16.msra.mxu0 %v2383
        %2709 = vmatpush.bf16.msra.mxu0 %v2382
        %2710 = vmatmul.bf16.gmra.mxu0 %v2110
        %v2711 = vpop.f32.mrf.mxu0
        %v2712 = vadd.f32 %v2568, %v2711
        %v2713 = vpop.f32.mrf.mxu0
        %v2714 = vadd.f32 %v2570, %v2713
        %2715 = vmatmul.bf16.gmra.mxu0 %v2113
        %v2716 = vpop.f32.mrf.mxu0
        %v2717 = vadd.f32 %v2573, %v2716
        %v2718 = vpop.f32.mrf.mxu0
        %v2719 = vadd.f32 %v2575, %v2718
        %2720 = vmatmul.bf16.gmra.mxu0 %v2116
        %v2721 = vpop.f32.mrf.mxu0
        %v2722 = vadd.f32 %v2578, %v2721
        %v2723 = vpop.f32.mrf.mxu0
        %v2724 = vadd.f32 %v2580, %v2723
        %2725 = vmatmul.bf16.gmra.mxu0 %v2119
        %v2726 = vpop.f32.mrf.mxu0
        %v2727 = vadd.f32 %v2583, %v2726
        %v2728 = vpop.f32.mrf.mxu0
        %v2729 = vadd.f32 %v2585, %v2728
        %2730 = vmatmul.bf16.gmra.mxu0 %v2122
        %v2731 = vpop.f32.mrf.mxu0
        %v2732 = vadd.f32 %v2588, %v2731
        %v2733 = vpop.f32.mrf.mxu0
        %v2734 = vadd.f32 %v2590, %v2733
        %2735 = vmatmul.bf16.gmra.mxu0 %v2125
        %v2736 = vpop.f32.mrf.mxu0
        %v2737 = vadd.f32 %v2593, %v2736
        %v2738 = vpop.f32.mrf.mxu0
        %v2739 = vadd.f32 %v2595, %v2738
        %2740 = vmatmul.bf16.gmra.mxu0 %v2128
        %v2741 = vpop.f32.mrf.mxu0
        %v2742 = vadd.f32 %v2598, %v2741
        %v2743 = vpop.f32.mrf.mxu0
        %v2744 = vadd.f32 %v2600, %v2743
        %2745 = vmatmul.bf16.gmra.mxu0 %v2131
        %v2746 = vpop.f32.mrf.mxu0
        %v2747 = vadd.f32 %v2603, %v2746
        %v2748 = vpop.f32.mrf.mxu0
        %v2749 = vadd.f32 %v2605, %v2748
        %2750 = vmatmul.bf16.gmra.mxu0 %v2134
        %v2751 = vpop.f32.mrf.mxu0
        %v2752 = vadd.f32 %v2608, %v2751
        %v2753 = vpop.f32.mrf.mxu0
        %v2754 = vadd.f32 %v2610, %v2753
        %2755 = vmatmul.bf16.gmra.mxu0 %v2137
        %v2756 = vpop.f32.mrf.mxu0
        %v2757 = vadd.f32 %v2613, %v2756
        %v2758 = vpop.f32.mrf.mxu0
        %v2759 = vadd.f32 %v2615, %v2758
        %2760 = vmatmul.bf16.gmra.mxu0 %v2140
        %v2761 = vpop.f32.mrf.mxu0
        %v2762 = vadd.f32 %v2618, %v2761
        %v2763 = vpop.f32.mrf.mxu0
        %v2764 = vadd.f32 %v2620, %v2763
        %2765 = vmatmul.bf16.gmra.mxu0 %v2143
        %v2766 = vpop.f32.mrf.mxu0
        %v2767 = vadd.f32 %v2623, %v2766
        %v2768 = vpop.f32.mrf.mxu0
        %v2769 = vadd.f32 %v2625, %v2768
        %2770 = vmatmul.bf16.gmra.mxu0 %v2146
        %v2771 = vpop.f32.mrf.mxu0
        %v2772 = vadd.f32 %v2628, %v2771
        %v2773 = vpop.f32.mrf.mxu0
        %v2774 = vadd.f32 %v2630, %v2773
        %2775 = vmatmul.bf16.gmra.mxu0 %v2149
        %v2776 = vpop.f32.mrf.mxu0
        %v2777 = vadd.f32 %v2633, %v2776
        %v2778 = vpop.f32.mrf.mxu0
        %v2779 = vadd.f32 %v2635, %v2778
        %2780 = vmatmul.bf16.gmra.mxu0 %v2152
        %v2781 = vpop.f32.mrf.mxu0
        %v2782 = vadd.f32 %v2638, %v2781
        %v2783 = vpop.f32.mrf.mxu0
        %v2784 = vadd.f32 %v2640, %v2783
        %2785 = vmatmul.bf16.gmra.mxu0 %v2155
        %v2786 = vpop.f32.mrf.mxu0
        %v2787 = vadd.f32 %v2643, %v2786
        %v2788 = vpop.f32.mrf.mxu0
        %v2789 = vadd.f32 %v2645, %v2788
        %2790 = vmatmul.bf16.gmra.mxu0 %v2158
        %v2791 = vpop.f32.mrf.mxu0
        %v2792 = vadd.f32 %v2648, %v2791
        %v2793 = vpop.f32.mrf.mxu0
        %v2794 = vadd.f32 %v2650, %v2793
        %2795 = vmatmul.bf16.gmra.mxu0 %v2161
        %v2796 = vpop.f32.mrf.mxu0
        %v2797 = vadd.f32 %v2653, %v2796
        %v2798 = vpop.f32.mrf.mxu0
        %v2799 = vadd.f32 %v2655, %v2798
        %2800 = vmatmul.bf16.gmra.mxu0 %v2164
        %v2801 = vpop.f32.mrf.mxu0
        %v2802 = vadd.f32 %v2658, %v2801
        %v2803 = vpop.f32.mrf.mxu0
        %v2804 = vadd.f32 %v2660, %v2803
        %2805 = vmatmul.bf16.gmra.mxu0 %v2167
        %v2806 = vpop.f32.mrf.mxu0
        %v2807 = vadd.f32 %v2663, %v2806
        %v2808 = vpop.f32.mrf.mxu0
        %v2809 = vadd.f32 %v2665, %v2808
        %2810 = vmatmul.bf16.gmra.mxu0 %v2170
        %v2811 = vpop.f32.mrf.mxu0
        %v2812 = vadd.f32 %v2668, %v2811
        %v2813 = vpop.f32.mrf.mxu0
        %v2814 = vadd.f32 %v2670, %v2813
        %2815 = vmatmul.bf16.gmra.mxu0 %v2173
        %v2816 = vpop.f32.mrf.mxu0
        %v2817 = vadd.f32 %v2673, %v2816
        %v2818 = vpop.f32.mrf.mxu0
        %v2819 = vadd.f32 %v2675, %v2818
        %2820 = vmatmul.bf16.gmra.mxu0 %v2176
        %v2821 = vpop.f32.mrf.mxu0
        %v2822 = vadd.f32 %v2678, %v2821
        %v2823 = vpop.f32.mrf.mxu0
        %v2824 = vadd.f32 %v2680, %v2823
        %2825 = vmatmul.bf16.gmra.mxu0 %v2179
        %v2826 = vpop.f32.mrf.mxu0
        %v2827 = vadd.f32 %v2683, %v2826
        %v2828 = vpop.f32.mrf.mxu0
        %v2829 = vadd.f32 %v2685, %v2828
        %2830 = vmatmul.bf16.gmra.mxu0 %v2182
        %v2831 = vpop.f32.mrf.mxu0
        %v2832 = vadd.f32 %v2688, %v2831
        %v2833 = vpop.f32.mrf.mxu0
        %v2834 = vadd.f32 %v2690, %v2833
        %2835 = vmatmul.bf16.gmra.mxu0 %v2185
        %v2836 = vpop.f32.mrf.mxu0
        %v2837 = vadd.f32 %v2693, %v2836
        %v2838 = vpop.f32.mrf.mxu0
        %v2839 = vadd.f32 %v2695, %v2838
        %2840 = vmatmul.bf16.gmra.mxu0 %v2188
        %v2841 = vpop.f32.mrf.mxu0
        %v2842 = vadd.f32 %v2698, %v2841
        %v2843 = vpop.f32.mrf.mxu0
        %v2844 = vadd.f32 %v2700, %v2843
        %2845 = vdwg.mxu0
        %s2846 = scalar_lea.vmem [#allocation4], 384
        %v2847 = vld [vmem:[%s2846] sm:$0xf]
        %v2848 = vld [vmem:[%s2846 + $0x4] sm:$0xf]
        %v2849 = vld [vmem:[%s2846 + $0x8] sm:$0xf]
        %v2850 = vld [vmem:[%s2846 + $0xc] sm:$0xf]
        %v2851 = vld [vmem:[%s2846 + $0x10] sm:$0xf]
        %v2852 = vld [vmem:[%s2846 + $0x14] sm:$0xf]
        %v2853 = vld [vmem:[%s2846 + $0x18] sm:$0xf]
        %v2854 = vld [vmem:[%s2846 + $0x1c] sm:$0xf]
        %v2855 = vld [vmem:[%s2846 + $0x20] sm:$0xf]
        %v2856 = vld [vmem:[%s2846 + $0x24] sm:$0xf]
        %v2857 = vld [vmem:[%s2846 + $0x28] sm:$0xf]
        %v2858 = vld [vmem:[%s2846 + $0x2c] sm:$0xf]
        %v2859 = vld [vmem:[%s2846 + $0x30] sm:$0xf]
        %v2860 = vld [vmem:[%s2846 + $0x34] sm:$0xf]
        %v2861 = vld [vmem:[%s2846 + $0x38] sm:$0xf]
        %v2862 = vld [vmem:[%s2846 + $0x3c] sm:$0xf]
        %v2863 = vld [vmem:[%s2846 + $0x40] sm:$0xf]
        %v2864 = vld [vmem:[%s2846 + $0x44] sm:$0xf]
        %v2865 = vld [vmem:[%s2846 + $0x48] sm:$0xf]
        %v2866 = vld [vmem:[%s2846 + $0x4c] sm:$0xf]
        %v2867 = vld [vmem:[%s2846 + $0x50] sm:$0xf]
        %v2868 = vld [vmem:[%s2846 + $0x54] sm:$0xf]
        %v2869 = vld [vmem:[%s2846 + $0x58] sm:$0xf]
        %v2870 = vld [vmem:[%s2846 + $0x5c] sm:$0xf]
        %v2871 = vld [vmem:[%s2846 + $0x60] sm:$0xf]
        %v2872 = vld [vmem:[%s2846 + $0x64] sm:$0xf]
        %v2873 = vld [vmem:[%s2846 + $0x68] sm:$0xf]
        %v2874 = vld [vmem:[%s2846 + $0x6c] sm:$0xf]
        %v2875 = vld [vmem:[%s2846 + $0x70] sm:$0xf]
        %v2876 = vld [vmem:[%s2846 + $0x74] sm:$0xf]
        %v2877 = vld [vmem:[%s2846 + $0x78] sm:$0xf]
        %v2878 = vld [vmem:[%s2846 + $0x7c] sm:$0xf]
        %v2879 = vld [vmem:[%s2846 + $0x80] sm:$0xf]
        %v2880 = vld [vmem:[%s2846 + $0x84] sm:$0xf]
        %v2881 = vld [vmem:[%s2846 + $0x88] sm:$0xf]
        %v2882 = vld [vmem:[%s2846 + $0x8c] sm:$0xf]
        %v2883 = vld [vmem:[%s2846 + $0x90] sm:$0xf]
        %v2884 = vld [vmem:[%s2846 + $0x94] sm:$0xf]
        %v2885 = vld [vmem:[%s2846 + $0x98] sm:$0xf]
        %v2886 = vld [vmem:[%s2846 + $0x9c] sm:$0xf]
        %v2887 = vld [vmem:[%s2846 + $0xa0] sm:$0xf]
        %v2888 = vld [vmem:[%s2846 + $0xa4] sm:$0xf]
        %v2889 = vld [vmem:[%s2846 + $0xa8] sm:$0xf]
        %v2890 = vld [vmem:[%s2846 + $0xac] sm:$0xf]
        %v2891 = vld [vmem:[%s2846 + $0xb0] sm:$0xf]
        %v2892 = vld [vmem:[%s2846 + $0xb4] sm:$0xf]
        %v2893 = vld [vmem:[%s2846 + $0xb8] sm:$0xf]
        %v2894 = vld [vmem:[%s2846 + $0xbc] sm:$0xf]
        %v2895 = vpack.c.b16 %v526, %v525
        %v2896 = vpack.c.b16 %v1263, %v1261
        %v2897 = vpack.c.b16 %v1264, %v1262
        %v2898 = vpack.c.b16 %v528, %v527
        %v2899 = vpack.c.b16 %v1267, %v1265
        %v2900 = vpack.c.b16 %v1268, %v1266
        %v2901 = vpack.c.b16 %v530, %v529
        %v2902 = vpack.c.b16 %v1271, %v1269
        %v2903 = vpack.c.b16 %v1272, %v1270
        %v2961 = vunpack.c.l.b16 %v2847
        %v2962 = vunpack.c.l.b16 %v2848
        %v2963 = vunpack.c.l.b16 %v2849
        %v2964 = vunpack.c.l.b16 %v2850
        %v2965 = vunpack.c.l.b16 %v2851
        %v2966 = vunpack.c.l.b16 %v2852
        %v2967 = vunpack.c.l.b16 %v2853
        %v2968 = vunpack.c.l.b16 %v2854
        %v2969 = vunpack.c.l.b16 %v2855
        %v2970 = vunpack.c.l.b16 %v2856
        %v2971 = vunpack.c.l.b16 %v2857
        %v2972 = vunpack.c.l.b16 %v2858
        %v2973 = vunpack.c.l.b16 %v2859
        %v2974 = vunpack.c.l.b16 %v2860
        %v2975 = vunpack.c.l.b16 %v2861
        %v2976 = vunpack.c.l.b16 %v2862
        %v2977 = vunpack.c.l.b16 %v2863
        %v2978 = vunpack.c.l.b16 %v2864
        %v2979 = vunpack.c.l.b16 %v2865
        %v2980 = vunpack.c.l.b16 %v2866
        %v2981 = vunpack.c.l.b16 %v2867
        %v2982 = vunpack.c.l.b16 %v2868
        %v2983 = vunpack.c.l.b16 %v2869
        %v2984 = vunpack.c.l.b16 %v2870
        %v2985 = vunpack.c.l.b16 %v2871
        %v2986 = vunpack.c.l.b16 %v2872
        %v2987 = vunpack.c.l.b16 %v2873
        %v2988 = vunpack.c.l.b16 %v2874
        %v2989 = vunpack.c.l.b16 %v2875
        %v2990 = vunpack.c.l.b16 %v2876
        %v2991 = vunpack.c.l.b16 %v2877
        %v2992 = vunpack.c.l.b16 %v2878
        %v2993 = vunpack.c.l.b16 %v2879
        %v2994 = vunpack.c.l.b16 %v2880
        %v2995 = vunpack.c.l.b16 %v2881
        %v2996 = vunpack.c.l.b16 %v2882
        %v2997 = vunpack.c.l.b16 %v2883
        %v2998 = vunpack.c.l.b16 %v2884
        %v2999 = vunpack.c.l.b16 %v2885
        %v3000 = vunpack.c.l.b16 %v2886
        %v3001 = vunpack.c.l.b16 %v2887
        %v3002 = vunpack.c.l.b16 %v2888
        %v3003 = vunpack.c.l.b16 %v2889
        %v3004 = vunpack.c.l.b16 %v2890
        %v3005 = vunpack.c.l.b16 %v2891
        %v3006 = vunpack.c.l.b16 %v2892
        %v3007 = vunpack.c.l.b16 %v2893
        %v3008 = vunpack.c.l.b16 %v2894
        %v3009 = vpack.c.b16 %v2962, %v2961
        %v3010 = vpack.c.b16 %v2964, %v2963
        %v3011 = vpack.c.b16 %v2966, %v2965
        %v3012 = vpack.c.b16 %v2968, %v2967
        %v3013 = vpack.c.b16 %v2970, %v2969
        %v3014 = vpack.c.b16 %v2972, %v2971
        %v3015 = vpack.c.b16 %v2974, %v2973
        %v3016 = vpack.c.b16 %v2976, %v2975
        %v3017 = vpack.c.b16 %v2978, %v2977
        %v3018 = vpack.c.b16 %v2980, %v2979
        %v3019 = vpack.c.b16 %v2982, %v2981
        %v3020 = vpack.c.b16 %v2984, %v2983
        %v3021 = vpack.c.b16 %v2986, %v2985
        %v3022 = vpack.c.b16 %v2988, %v2987
        %v3023 = vpack.c.b16 %v2990, %v2989
        %v3024 = vpack.c.b16 %v2992, %v2991
        %v3025 = vpack.c.b16 %v2994, %v2993
        %v3026 = vpack.c.b16 %v2996, %v2995
        %v3027 = vpack.c.b16 %v2998, %v2997
        %v3028 = vpack.c.b16 %v3000, %v2999
        %v3029 = vpack.c.b16 %v3002, %v3001
        %v3030 = vpack.c.b16 %v3004, %v3003
        %v3031 = vpack.c.b16 %v3006, %v3005
        %v3032 = vpack.c.b16 %v3008, %v3007
        %3057 = vmatpush.bf16.msra.mxu0 %v3016
        %3058 = vmatpush.bf16.msra.mxu0 %v3015
        %3059 = vmatpush.bf16.msra.mxu0 %v3014
        %3060 = vmatpush.bf16.msra.mxu0 %v3013
        %3061 = vmatpush.bf16.msra.mxu0 %v3012
        %3062 = vmatpush.bf16.msra.mxu0 %v3011
        %3063 = vmatpush.bf16.msra.mxu0 %v3010
        %3064 = vmatpush.bf16.msra.mxu0 %v3009
        %3065 = vmatmul.bf16.gmra.mxu0 %v2117
        %v3066 = vpop.f32.mrf.mxu0
        %v3067 = vadd.f32 0.0, %v3066
        %v3068 = vpop.f32.mrf.mxu0
        %v3069 = vadd.f32 0.0, %v3068
        %3070 = vmatmul.bf16.gmra.mxu0 %v2120
        %v3071 = vpop.f32.mrf.mxu0
        %v3072 = vadd.f32 0.0, %v3071
        %v3073 = vpop.f32.mrf.mxu0
        %v3074 = vadd.f32 0.0, %v3073
        %3075 = vmatmul.bf16.gmra.mxu0 %v2123
        %v3076 = vpop.f32.mrf.mxu0
        %v3077 = vadd.f32 0.0, %v3076
        %v3078 = vpop.f32.mrf.mxu0
        %v3079 = vadd.f32 0.0, %v3078
        %3080 = vmatmul.bf16.gmra.mxu0 %v2126
        %v3081 = vpop.f32.mrf.mxu0
        %v3082 = vadd.f32 0.0, %v3081
        %v3083 = vpop.f32.mrf.mxu0
        %v3084 = vadd.f32 0.0, %v3083
        %3085 = vmatmul.bf16.gmra.mxu0 %v2129
        %v3086 = vpop.f32.mrf.mxu0
        %v3087 = vadd.f32 0.0, %v3086
        %v3088 = vpop.f32.mrf.mxu0
        %v3089 = vadd.f32 0.0, %v3088
        %3090 = vmatmul.bf16.gmra.mxu0 %v2132
        %v3091 = vpop.f32.mrf.mxu0
        %v3092 = vadd.f32 0.0, %v3091
        %v3093 = vpop.f32.mrf.mxu0
        %v3094 = vadd.f32 0.0, %v3093
        %3095 = vmatmul.bf16.gmra.mxu0 %v2135
        %v3096 = vpop.f32.mrf.mxu0
        %v3097 = vadd.f32 0.0, %v3096
        %v3098 = vpop.f32.mrf.mxu0
        %v3099 = vadd.f32 0.0, %v3098
        %3100 = vmatmul.bf16.gmra.mxu0 %v2138
        %v3101 = vpop.f32.mrf.mxu0
        %v3102 = vadd.f32 0.0, %v3101
        %v3103 = vpop.f32.mrf.mxu0
        %v3104 = vadd.f32 0.0, %v3103
        %3105 = vmatmul.bf16.gmra.mxu0 %v2141
        %v3106 = vpop.f32.mrf.mxu0
        %v3107 = vadd.f32 0.0, %v3106
        %v3108 = vpop.f32.mrf.mxu0
        %v3109 = vadd.f32 0.0, %v3108
        %3110 = vmatmul.bf16.gmra.mxu0 %v2144
        %v3111 = vpop.f32.mrf.mxu0
        %v3112 = vadd.f32 0.0, %v3111
        %v3113 = vpop.f32.mrf.mxu0
        %v3114 = vadd.f32 0.0, %v3113
        %3115 = vmatmul.bf16.gmra.mxu0 %v2147
        %v3116 = vpop.f32.mrf.mxu0
        %v3117 = vadd.f32 0.0, %v3116
        %v3118 = vpop.f32.mrf.mxu0
        %v3119 = vadd.f32 0.0, %v3118
        %3120 = vmatmul.bf16.gmra.mxu0 %v2150
        %v3121 = vpop.f32.mrf.mxu0
        %v3122 = vadd.f32 0.0, %v3121
        %v3123 = vpop.f32.mrf.mxu0
        %v3124 = vadd.f32 0.0, %v3123
        %3125 = vmatmul.bf16.gmra.mxu0 %v2153
        %v3126 = vpop.f32.mrf.mxu0
        %v3127 = vadd.f32 0.0, %v3126
        %v3128 = vpop.f32.mrf.mxu0
        %v3129 = vadd.f32 0.0, %v3128
        %3130 = vmatmul.bf16.gmra.mxu0 %v2156
        %v3131 = vpop.f32.mrf.mxu0
        %v3132 = vadd.f32 0.0, %v3131
        %v3133 = vpop.f32.mrf.mxu0
        %v3134 = vadd.f32 0.0, %v3133
        %3135 = vmatmul.bf16.gmra.mxu0 %v2159
        %v3136 = vpop.f32.mrf.mxu0
        %v3137 = vadd.f32 0.0, %v3136
        %v3138 = vpop.f32.mrf.mxu0
        %v3139 = vadd.f32 0.0, %v3138
        %3140 = vmatmul.bf16.gmra.mxu0 %v2162
        %v3141 = vpop.f32.mrf.mxu0
        %v3142 = vadd.f32 0.0, %v3141
        %v3143 = vpop.f32.mrf.mxu0
        %v3144 = vadd.f32 0.0, %v3143
        %3145 = vmatmul.bf16.gmra.mxu0 %v2165
        %v3146 = vpop.f32.mrf.mxu0
        %v3147 = vadd.f32 0.0, %v3146
        %v3148 = vpop.f32.mrf.mxu0
        %v3149 = vadd.f32 0.0, %v3148
        %3150 = vmatmul.bf16.gmra.mxu0 %v2168
        %v3151 = vpop.f32.mrf.mxu0
        %v3152 = vadd.f32 0.0, %v3151
        %v3153 = vpop.f32.mrf.mxu0
        %v3154 = vadd.f32 0.0, %v3153
        %3155 = vmatmul.bf16.gmra.mxu0 %v2171
        %v3156 = vpop.f32.mrf.mxu0
        %v3157 = vadd.f32 0.0, %v3156
        %v3158 = vpop.f32.mrf.mxu0
        %v3159 = vadd.f32 0.0, %v3158
        %3160 = vmatmul.bf16.gmra.mxu0 %v2174
        %v3161 = vpop.f32.mrf.mxu0
        %v3162 = vadd.f32 0.0, %v3161
        %v3163 = vpop.f32.mrf.mxu0
        %v3164 = vadd.f32 0.0, %v3163
        %3165 = vmatmul.bf16.gmra.mxu0 %v2177
        %v3166 = vpop.f32.mrf.mxu0
        %v3167 = vadd.f32 0.0, %v3166
        %v3168 = vpop.f32.mrf.mxu0
        %v3169 = vadd.f32 0.0, %v3168
        %3170 = vmatmul.bf16.gmra.mxu0 %v2180
        %v3171 = vpop.f32.mrf.mxu0
        %v3172 = vadd.f32 0.0, %v3171
        %v3173 = vpop.f32.mrf.mxu0
        %v3174 = vadd.f32 0.0, %v3173
        %3175 = vmatmul.bf16.gmra.mxu0 %v2183
        %v3176 = vpop.f32.mrf.mxu0
        %v3177 = vadd.f32 0.0, %v3176
        %v3178 = vpop.f32.mrf.mxu0
        %v3179 = vadd.f32 0.0, %v3178
        %3180 = vmatmul.bf16.gmra.mxu0 %v2186
        %v3181 = vpop.f32.mrf.mxu0
        %v3182 = vadd.f32 0.0, %v3181
        %v3183 = vpop.f32.mrf.mxu0
        %v3184 = vadd.f32 0.0, %v3183
        %3185 = vmatmul.bf16.gmra.mxu0 %v2895
        %v3186 = vpop.f32.mrf.mxu0
        %v3187 = vadd.f32 0.0, %v3186
        %v3188 = vpop.f32.mrf.mxu0
        %v3189 = vadd.f32 0.0, %v3188
        %3190 = vmatmul.bf16.gmra.mxu0 %v2898
        %v3191 = vpop.f32.mrf.mxu0
        %v3192 = vadd.f32 0.0, %v3191
        %v3193 = vpop.f32.mrf.mxu0
        %v3194 = vadd.f32 0.0, %v3193
        %3195 = vmatmul.bf16.gmra.mxu0 %v2901
        %v3196 = vpop.f32.mrf.mxu0
        %v3197 = vadd.f32 0.0, %v3196
        %v3198 = vpop.f32.mrf.mxu0
        %v3199 = vadd.f32 0.0, %v3198
        %3200 = vdwg.mxu0
        %3201 = vmatpush.bf16.msra.mxu0 %v3024
        %3202 = vmatpush.bf16.msra.mxu0 %v3023
        %3203 = vmatpush.bf16.msra.mxu0 %v3022
        %3204 = vmatpush.bf16.msra.mxu0 %v3021
        %3205 = vmatpush.bf16.msra.mxu0 %v3020
        %3206 = vmatpush.bf16.msra.mxu0 %v3019
        %3207 = vmatpush.bf16.msra.mxu0 %v3018
        %3208 = vmatpush.bf16.msra.mxu0 %v3017
        %3209 = vmatmul.bf16.gmra.mxu0 %v2118
        %v3210 = vpop.f32.mrf.mxu0
        %v3211 = vadd.f32 %v3067, %v3210
        %v3212 = vpop.f32.mrf.mxu0
        %v3213 = vadd.f32 %v3069, %v3212
        %3214 = vmatmul.bf16.gmra.mxu0 %v2121
        %v3215 = vpop.f32.mrf.mxu0
        %v3216 = vadd.f32 %v3072, %v3215
        %v3217 = vpop.f32.mrf.mxu0
        %v3218 = vadd.f32 %v3074, %v3217
        %3219 = vmatmul.bf16.gmra.mxu0 %v2124
        %v3220 = vpop.f32.mrf.mxu0
        %v3221 = vadd.f32 %v3077, %v3220
        %v3222 = vpop.f32.mrf.mxu0
        %v3223 = vadd.f32 %v3079, %v3222
        %3224 = vmatmul.bf16.gmra.mxu0 %v2127
        %v3225 = vpop.f32.mrf.mxu0
        %v3226 = vadd.f32 %v3082, %v3225
        %v3227 = vpop.f32.mrf.mxu0
        %v3228 = vadd.f32 %v3084, %v3227
        %3229 = vmatmul.bf16.gmra.mxu0 %v2130
        %v3230 = vpop.f32.mrf.mxu0
        %v3231 = vadd.f32 %v3087, %v3230
        %v3232 = vpop.f32.mrf.mxu0
        %v3233 = vadd.f32 %v3089, %v3232
        %3234 = vmatmul.bf16.gmra.mxu0 %v2133
        %v3235 = vpop.f32.mrf.mxu0
        %v3236 = vadd.f32 %v3092, %v3235
        %v3237 = vpop.f32.mrf.mxu0
        %v3238 = vadd.f32 %v3094, %v3237
        %3239 = vmatmul.bf16.gmra.mxu0 %v2136
        %v3240 = vpop.f32.mrf.mxu0
        %v3241 = vadd.f32 %v3097, %v3240
        %v3242 = vpop.f32.mrf.mxu0
        %v3243 = vadd.f32 %v3099, %v3242
        %3244 = vmatmul.bf16.gmra.mxu0 %v2139
        %v3245 = vpop.f32.mrf.mxu0
        %v3246 = vadd.f32 %v3102, %v3245
        %v3247 = vpop.f32.mrf.mxu0
        %v3248 = vadd.f32 %v3104, %v3247
        %3249 = vmatmul.bf16.gmra.mxu0 %v2142
        %v3250 = vpop.f32.mrf.mxu0
        %v3251 = vadd.f32 %v3107, %v3250
        %v3252 = vpop.f32.mrf.mxu0
        %v3253 = vadd.f32 %v3109, %v3252
        %3254 = vmatmul.bf16.gmra.mxu0 %v2145
        %v3255 = vpop.f32.mrf.mxu0
        %v3256 = vadd.f32 %v3112, %v3255
        %v3257 = vpop.f32.mrf.mxu0
        %v3258 = vadd.f32 %v3114, %v3257
        %3259 = vmatmul.bf16.gmra.mxu0 %v2148
        %v3260 = vpop.f32.mrf.mxu0
        %v3261 = vadd.f32 %v3117, %v3260
        %v3262 = vpop.f32.mrf.mxu0
        %v3263 = vadd.f32 %v3119, %v3262
        %3264 = vmatmul.bf16.gmra.mxu0 %v2151
        %v3265 = vpop.f32.mrf.mxu0
        %v3266 = vadd.f32 %v3122, %v3265
        %v3267 = vpop.f32.mrf.mxu0
        %v3268 = vadd.f32 %v3124, %v3267
        %3269 = vmatmul.bf16.gmra.mxu0 %v2154
        %v3270 = vpop.f32.mrf.mxu0
        %v3271 = vadd.f32 %v3127, %v3270
        %v3272 = vpop.f32.mrf.mxu0
        %v3273 = vadd.f32 %v3129, %v3272
        %3274 = vmatmul.bf16.gmra.mxu0 %v2157
        %v3275 = vpop.f32.mrf.mxu0
        %v3276 = vadd.f32 %v3132, %v3275
        %v3277 = vpop.f32.mrf.mxu0
        %v3278 = vadd.f32 %v3134, %v3277
        %3279 = vmatmul.bf16.gmra.mxu0 %v2160
        %v3280 = vpop.f32.mrf.mxu0
        %v3281 = vadd.f32 %v3137, %v3280
        %v3282 = vpop.f32.mrf.mxu0
        %v3283 = vadd.f32 %v3139, %v3282
        %3284 = vmatmul.bf16.gmra.mxu0 %v2163
        %v3285 = vpop.f32.mrf.mxu0
        %v3286 = vadd.f32 %v3142, %v3285
        %v3287 = vpop.f32.mrf.mxu0
        %v3288 = vadd.f32 %v3144, %v3287
        %3289 = vmatmul.bf16.gmra.mxu0 %v2166
        %v3290 = vpop.f32.mrf.mxu0
        %v3291 = vadd.f32 %v3147, %v3290
        %v3292 = vpop.f32.mrf.mxu0
        %v3293 = vadd.f32 %v3149, %v3292
        %3294 = vmatmul.bf16.gmra.mxu0 %v2169
        %v3295 = vpop.f32.mrf.mxu0
        %v3296 = vadd.f32 %v3152, %v3295
        %v3297 = vpop.f32.mrf.mxu0
        %v3298 = vadd.f32 %v3154, %v3297
        %3299 = vmatmul.bf16.gmra.mxu0 %v2172
        %v3300 = vpop.f32.mrf.mxu0
        %v3301 = vadd.f32 %v3157, %v3300
        %v3302 = vpop.f32.mrf.mxu0
        %v3303 = vadd.f32 %v3159, %v3302
        %3304 = vmatmul.bf16.gmra.mxu0 %v2175
        %v3305 = vpop.f32.mrf.mxu0
        %v3306 = vadd.f32 %v3162, %v3305
        %v3307 = vpop.f32.mrf.mxu0
        %v3308 = vadd.f32 %v3164, %v3307
        %3309 = vmatmul.bf16.gmra.mxu0 %v2178
        %v3310 = vpop.f32.mrf.mxu0
        %v3311 = vadd.f32 %v3167, %v3310
        %v3312 = vpop.f32.mrf.mxu0
        %v3313 = vadd.f32 %v3169, %v3312
        %3314 = vmatmul.bf16.gmra.mxu0 %v2181
        %v3315 = vpop.f32.mrf.mxu0
        %v3316 = vadd.f32 %v3172, %v3315
        %v3317 = vpop.f32.mrf.mxu0
        %v3318 = vadd.f32 %v3174, %v3317
        %3319 = vmatmul.bf16.gmra.mxu0 %v2184
        %v3320 = vpop.f32.mrf.mxu0
        %v3321 = vadd.f32 %v3177, %v3320
        %v3322 = vpop.f32.mrf.mxu0
        %v3323 = vadd.f32 %v3179, %v3322
        %3324 = vmatmul.bf16.gmra.mxu0 %v2187
        %v3325 = vpop.f32.mrf.mxu0
        %v3326 = vadd.f32 %v3182, %v3325
        %v3327 = vpop.f32.mrf.mxu0
        %v3328 = vadd.f32 %v3184, %v3327
        %3329 = vmatmul.bf16.gmra.mxu0 %v2896
        %v3330 = vpop.f32.mrf.mxu0
        %v3331 = vadd.f32 %v3187, %v3330
        %v3332 = vpop.f32.mrf.mxu0
        %v3333 = vadd.f32 %v3189, %v3332
        %3334 = vmatmul.bf16.gmra.mxu0 %v2899
        %v3335 = vpop.f32.mrf.mxu0
        %v3336 = vadd.f32 %v3192, %v3335
        %v3337 = vpop.f32.mrf.mxu0
        %v3338 = vadd.f32 %v3194, %v3337
        %3339 = vmatmul.bf16.gmra.mxu0 %v2902
        %v3340 = vpop.f32.mrf.mxu0
        %v3341 = vadd.f32 %v3197, %v3340
        %v3342 = vpop.f32.mrf.mxu0
        %v3343 = vadd.f32 %v3199, %v3342
        %3344 = vdwg.mxu0
        %3345 = vmatpush.bf16.msra.mxu0 %v3032
        %3346 = vmatpush.bf16.msra.mxu0 %v3031
        %3347 = vmatpush.bf16.msra.mxu0 %v3030
        %3348 = vmatpush.bf16.msra.mxu0 %v3029
        %3349 = vmatpush.bf16.msra.mxu0 %v3028
        %3350 = vmatpush.bf16.msra.mxu0 %v3027
        %3351 = vmatpush.bf16.msra.mxu0 %v3026
        %3352 = vmatpush.bf16.msra.mxu0 %v3025
        %3353 = vmatmul.bf16.gmra.mxu0 %v2119
        %v3354 = vpop.f32.mrf.mxu0
        %v3355 = vadd.f32 %v3211, %v3354
        %v3356 = vpop.f32.mrf.mxu0
        %v3357 = vadd.f32 %v3213, %v3356
        %3358 = vmatmul.bf16.gmra.mxu0 %v2122
        %v3359 = vpop.f32.mrf.mxu0
        %v3360 = vadd.f32 %v3216, %v3359
        %v3361 = vpop.f32.mrf.mxu0
        %v3362 = vadd.f32 %v3218, %v3361
        %3363 = vmatmul.bf16.gmra.mxu0 %v2125
        %v3364 = vpop.f32.mrf.mxu0
        %v3365 = vadd.f32 %v3221, %v3364
        %v3366 = vpop.f32.mrf.mxu0
        %v3367 = vadd.f32 %v3223, %v3366
        %3368 = vmatmul.bf16.gmra.mxu0 %v2128
        %v3369 = vpop.f32.mrf.mxu0
        %v3370 = vadd.f32 %v3226, %v3369
        %v3371 = vpop.f32.mrf.mxu0
        %v3372 = vadd.f32 %v3228, %v3371
        %3373 = vmatmul.bf16.gmra.mxu0 %v2131
        %v3374 = vpop.f32.mrf.mxu0
        %v3375 = vadd.f32 %v3231, %v3374
        %v3376 = vpop.f32.mrf.mxu0
        %v3377 = vadd.f32 %v3233, %v3376
        %3378 = vmatmul.bf16.gmra.mxu0 %v2134
        %v3379 = vpop.f32.mrf.mxu0
        %v3380 = vadd.f32 %v3236, %v3379
        %v3381 = vpop.f32.mrf.mxu0
        %v3382 = vadd.f32 %v3238, %v3381
        %3383 = vmatmul.bf16.gmra.mxu0 %v2137
        %v3384 = vpop.f32.mrf.mxu0
        %v3385 = vadd.f32 %v3241, %v3384
        %v3386 = vpop.f32.mrf.mxu0
        %v3387 = vadd.f32 %v3243, %v3386
        %3388 = vmatmul.bf16.gmra.mxu0 %v2140
        %v3389 = vpop.f32.mrf.mxu0
        %v3390 = vadd.f32 %v3246, %v3389
        %v3391 = vpop.f32.mrf.mxu0
        %v3392 = vadd.f32 %v3248, %v3391
        %3393 = vmatmul.bf16.gmra.mxu0 %v2143
        %v3394 = vpop.f32.mrf.mxu0
        %v3395 = vadd.f32 %v3251, %v3394
        %v3396 = vpop.f32.mrf.mxu0
        %v3397 = vadd.f32 %v3253, %v3396
        %3398 = vmatmul.bf16.gmra.mxu0 %v2146
        %v3399 = vpop.f32.mrf.mxu0
        %v3400 = vadd.f32 %v3256, %v3399
        %v3401 = vpop.f32.mrf.mxu0
        %v3402 = vadd.f32 %v3258, %v3401
        %3403 = vmatmul.bf16.gmra.mxu0 %v2149
        %v3404 = vpop.f32.mrf.mxu0
        %v3405 = vadd.f32 %v3261, %v3404
        %v3406 = vpop.f32.mrf.mxu0
        %v3407 = vadd.f32 %v3263, %v3406
        %3408 = vmatmul.bf16.gmra.mxu0 %v2152
        %v3409 = vpop.f32.mrf.mxu0
        %v3410 = vadd.f32 %v3266, %v3409
        %v3411 = vpop.f32.mrf.mxu0
        %v3412 = vadd.f32 %v3268, %v3411
        %3413 = vmatmul.bf16.gmra.mxu0 %v2155
        %v3414 = vpop.f32.mrf.mxu0
        %v3415 = vadd.f32 %v3271, %v3414
        %v3416 = vpop.f32.mrf.mxu0
        %v3417 = vadd.f32 %v3273, %v3416
        %3418 = vmatmul.bf16.gmra.mxu0 %v2158
        %v3419 = vpop.f32.mrf.mxu0
        %v3420 = vadd.f32 %v3276, %v3419
        %v3421 = vpop.f32.mrf.mxu0
        %v3422 = vadd.f32 %v3278, %v3421
        %3423 = vmatmul.bf16.gmra.mxu0 %v2161
        %v3424 = vpop.f32.mrf.mxu0
        %v3425 = vadd.f32 %v3281, %v3424
        %v3426 = vpop.f32.mrf.mxu0
        %v3427 = vadd.f32 %v3283, %v3426
        %3428 = vmatmul.bf16.gmra.mxu0 %v2164
        %v3429 = vpop.f32.mrf.mxu0
        %v3430 = vadd.f32 %v3286, %v3429
        %v3431 = vpop.f32.mrf.mxu0
        %v3432 = vadd.f32 %v3288, %v3431
        %3433 = vmatmul.bf16.gmra.mxu0 %v2167
        %v3434 = vpop.f32.mrf.mxu0
        %v3435 = vadd.f32 %v3291, %v3434
        %v3436 = vpop.f32.mrf.mxu0
        %v3437 = vadd.f32 %v3293, %v3436
        %3438 = vmatmul.bf16.gmra.mxu0 %v2170
        %v3439 = vpop.f32.mrf.mxu0
        %v3440 = vadd.f32 %v3296, %v3439
        %v3441 = vpop.f32.mrf.mxu0
        %v3442 = vadd.f32 %v3298, %v3441
        %3443 = vmatmul.bf16.gmra.mxu0 %v2173
        %v3444 = vpop.f32.mrf.mxu0
        %v3445 = vadd.f32 %v3301, %v3444
        %v3446 = vpop.f32.mrf.mxu0
        %v3447 = vadd.f32 %v3303, %v3446
        %3448 = vmatmul.bf16.gmra.mxu0 %v2176
        %v3449 = vpop.f32.mrf.mxu0
        %v3450 = vadd.f32 %v3306, %v3449
        %v3451 = vpop.f32.mrf.mxu0
        %v3452 = vadd.f32 %v3308, %v3451
        %3453 = vmatmul.bf16.gmra.mxu0 %v2179
        %v3454 = vpop.f32.mrf.mxu0
        %v3455 = vadd.f32 %v3311, %v3454
        %v3456 = vpop.f32.mrf.mxu0
        %v3457 = vadd.f32 %v3313, %v3456
        %3458 = vmatmul.bf16.gmra.mxu0 %v2182
        %v3459 = vpop.f32.mrf.mxu0
        %v3460 = vadd.f32 %v3316, %v3459
        %v3461 = vpop.f32.mrf.mxu0
        %v3462 = vadd.f32 %v3318, %v3461
        %3463 = vmatmul.bf16.gmra.mxu0 %v2185
        %v3464 = vpop.f32.mrf.mxu0
        %v3465 = vadd.f32 %v3321, %v3464
        %v3466 = vpop.f32.mrf.mxu0
        %v3467 = vadd.f32 %v3323, %v3466
        %3468 = vmatmul.bf16.gmra.mxu0 %v2188
        %v3469 = vpop.f32.mrf.mxu0
        %v3470 = vadd.f32 %v3326, %v3469
        %v3471 = vpop.f32.mrf.mxu0
        %v3472 = vadd.f32 %v3328, %v3471
        %3473 = vmatmul.bf16.gmra.mxu0 %v2897
        %v3474 = vpop.f32.mrf.mxu0
        %v3475 = vadd.f32 %v3331, %v3474
        %v3476 = vpop.f32.mrf.mxu0
        %v3477 = vadd.f32 %v3333, %v3476
        %3478 = vmatmul.bf16.gmra.mxu0 %v2900
        %v3479 = vpop.f32.mrf.mxu0
        %v3480 = vadd.f32 %v3336, %v3479
        %v3481 = vpop.f32.mrf.mxu0
        %v3482 = vadd.f32 %v3338, %v3481
        %3483 = vmatmul.bf16.gmra.mxu0 %v2903
        %v3484 = vpop.f32.mrf.mxu0
        %v3485 = vadd.f32 %v3341, %v3484
        %v3486 = vpop.f32.mrf.mxu0
        %v3487 = vadd.f32 %v3343, %v3486
        %3488 = vdwg.mxu0
        %v3489 = vadd.f32 %v2712, %v3355
        %v3490 = vadd.f32 %v2714, %v3357
        %v3491 = vadd.f32 %v2717, %v3360
        %v3492 = vadd.f32 %v2719, %v3362
        %v3493 = vadd.f32 %v2722, %v3365
        %v3494 = vadd.f32 %v2724, %v3367
        %v3495 = vadd.f32 %v2727, %v3370
        %v3496 = vadd.f32 %v2729, %v3372
        %v3497 = vadd.f32 %v2732, %v3375
        %v3498 = vadd.f32 %v2734, %v3377
        %v3499 = vadd.f32 %v2737, %v3380
        %v3500 = vadd.f32 %v2739, %v3382
        %v3501 = vadd.f32 %v2742, %v3385
        %v3502 = vadd.f32 %v2744, %v3387
        %v3503 = vadd.f32 %v2747, %v3390
        %v3504 = vadd.f32 %v2749, %v3392
        %v3505 = vadd.f32 %v2752, %v3395
        %v3506 = vadd.f32 %v2754, %v3397
        %v3507 = vadd.f32 %v2757, %v3400
        %v3508 = vadd.f32 %v2759, %v3402
        %v3509 = vadd.f32 %v2762, %v3405
        %v3510 = vadd.f32 %v2764, %v3407
        %v3511 = vadd.f32 %v2767, %v3410
        %v3512 = vadd.f32 %v2769, %v3412
        %v3513 = vadd.f32 %v2772, %v3415
        %v3514 = vadd.f32 %v2774, %v3417
        %v3515 = vadd.f32 %v2777, %v3420
        %v3516 = vadd.f32 %v2779, %v3422
        %v3517 = vadd.f32 %v2782, %v3425
        %v3518 = vadd.f32 %v2784, %v3427
        %v3519 = vadd.f32 %v2787, %v3430
        %v3520 = vadd.f32 %v2789, %v3432
        %v3521 = vadd.f32 %v2792, %v3435
        %v3522 = vadd.f32 %v2794, %v3437
        %v3523 = vadd.f32 %v2797, %v3440
        %v3524 = vadd.f32 %v2799, %v3442
        %v3525 = vadd.f32 %v2802, %v3445
        %v3526 = vadd.f32 %v2804, %v3447
        %v3527 = vadd.f32 %v2807, %v3450
        %v3528 = vadd.f32 %v2809, %v3452
        %v3529 = vadd.f32 %v2812, %v3455
        %v3530 = vadd.f32 %v2814, %v3457
        %v3531 = vadd.f32 %v2817, %v3460
        %v3532 = vadd.f32 %v2819, %v3462
        %v3533 = vadd.f32 %v2822, %v3465
        %v3534 = vadd.f32 %v2824, %v3467
        %v3535 = vadd.f32 %v2827, %v3470
        %v3536 = vadd.f32 %v2829, %v3472
        %v3537 = vadd.f32 %v2832, %v3475
        %v3538 = vadd.f32 %v2834, %v3477
        %v3539 = vadd.f32 %v2837, %v3480
        %v3540 = vadd.f32 %v2839, %v3482
        %v3541 = vadd.f32 %v2842, %v3485
        %v3542 = vadd.f32 %v2844, %v3487
        %v3543 = vld [vmem:[%s2] sm:$0x1]
        %v3545 = vperm.slane %v3543, 0
        %v3547 = vadd.f32 %v3489, %v3545
        %v3548 = vadd.f32 %v3490, %v3545
        %v3549 = vadd.f32 %v3491, %v3545
        %v3550 = vadd.f32 %v3492, %v3545
        %v3551 = vadd.f32 %v3493, %v3545
        %v3552 = vadd.f32 %v3494, %v3545
        %v3553 = vadd.f32 %v3495, %v3545
        %v3554 = vadd.f32 %v3496, %v3545
        %v3555 = vadd.f32 %v3497, %v3545
        %v3556 = vadd.f32 %v3498, %v3545
        %v3557 = vadd.f32 %v3499, %v3545
        %v3558 = vadd.f32 %v3500, %v3545
        %v3559 = vadd.f32 %v3501, %v3545
        %v3560 = vadd.f32 %v3502, %v3545
        %v3561 = vadd.f32 %v3503, %v3545
        %v3562 = vadd.f32 %v3504, %v3545
        %v3563 = vadd.f32 %v3505, %v3545
        %v3564 = vadd.f32 %v3506, %v3545
        %v3565 = vadd.f32 %v3507, %v3545
        %v3566 = vadd.f32 %v3508, %v3545
        %v3567 = vadd.f32 %v3509, %v3545
        %v3568 = vadd.f32 %v3510, %v3545
        %v3569 = vadd.f32 %v3511, %v3545
        %v3570 = vadd.f32 %v3512, %v3545
        %v3571 = vadd.f32 %v3513, %v3545
        %v3572 = vadd.f32 %v3514, %v3545
        %v3573 = vadd.f32 %v3515, %v3545
        %v3574 = vadd.f32 %v3516, %v3545
        %v3575 = vadd.f32 %v3517, %v3545
        %v3576 = vadd.f32 %v3518, %v3545
        %v3577 = vadd.f32 %v3519, %v3545
        %v3578 = vadd.f32 %v3520, %v3545
        %v3579 = vadd.f32 %v3521, %v3545
        %v3580 = vadd.f32 %v3522, %v3545
        %v3581 = vadd.f32 %v3523, %v3545
        %v3582 = vadd.f32 %v3524, %v3545
        %v3583 = vadd.f32 %v3525, %v3545
        %v3584 = vadd.f32 %v3526, %v3545
        %v3585 = vadd.f32 %v3527, %v3545
        %v3586 = vadd.f32 %v3528, %v3545
        %v3587 = vadd.f32 %v3529, %v3545
        %v3588 = vadd.f32 %v3530, %v3545
        %v3589 = vadd.f32 %v3531, %v3545
        %v3590 = vadd.f32 %v3532, %v3545
        %v3591 = vadd.f32 %v3533, %v3545
        %v3592 = vadd.f32 %v3534, %v3545
        %v3593 = vadd.f32 %v3535, %v3545
        %v3594 = vadd.f32 %v3536, %v3545
        %v3595 = vadd.f32 %v3537, %v3545
        %v3596 = vadd.f32 %v3538, %v3545
        %v3597 = vadd.f32 %v3539, %v3545
        %v3598 = vadd.f32 %v3540, %v3545
        %v3599 = vadd.f32 %v3541, %v3545
        %v3600 = vadd.f32 %v3542, %v3545
        %v3601 = vmul.f32 %v3547, 0.2
        %v3602 = vmul.f32 %v3548, 0.2
        %v3603 = vmul.f32 %v3549, 0.2
        %v3604 = vmul.f32 %v3550, 0.2
        %v3605 = vmul.f32 %v3551, 0.2
        %v3606 = vmul.f32 %v3552, 0.2
        %v3607 = vmul.f32 %v3553, 0.2
        %v3608 = vmul.f32 %v3554, 0.2
        %v3609 = vmul.f32 %v3555, 0.2
        %v3610 = vmul.f32 %v3556, 0.2
        %v3611 = vmul.f32 %v3557, 0.2
        %v3612 = vmul.f32 %v3558, 0.2
        %v3613 = vmul.f32 %v3559, 0.2
        %v3614 = vmul.f32 %v3560, 0.2
        %v3615 = vmul.f32 %v3561, 0.2
        %v3616 = vmul.f32 %v3562, 0.2
        %v3617 = vmul.f32 %v3563, 0.2
        %v3618 = vmul.f32 %v3564, 0.2
        %v3619 = vmul.f32 %v3565, 0.2
        %v3620 = vmul.f32 %v3566, 0.2
        %v3621 = vmul.f32 %v3567, 0.2
        %v3622 = vmul.f32 %v3568, 0.2
        %v3623 = vmul.f32 %v3569, 0.2
        %v3624 = vmul.f32 %v3570, 0.2
        %v3625 = vmul.f32 %v3571, 0.2
        %v3626 = vmul.f32 %v3572, 0.2
        %v3627 = vmul.f32 %v3573, 0.2
        %v3628 = vmul.f32 %v3574, 0.2
        %v3629 = vmul.f32 %v3575, 0.2
        %v3630 = vmul.f32 %v3576, 0.2
        %v3631 = vmul.f32 %v3577, 0.2
        %v3632 = vmul.f32 %v3578, 0.2
        %v3633 = vmul.f32 %v3579, 0.2
        %v3634 = vmul.f32 %v3580, 0.2
        %v3635 = vmul.f32 %v3581, 0.2
        %v3636 = vmul.f32 %v3582, 0.2
        %v3637 = vmul.f32 %v3583, 0.2
        %v3638 = vmul.f32 %v3584, 0.2
        %v3639 = vmul.f32 %v3585, 0.2
        %v3640 = vmul.f32 %v3586, 0.2
        %v3641 = vmul.f32 %v3587, 0.2
        %v3642 = vmul.f32 %v3588, 0.2
        %v3643 = vmul.f32 %v3589, 0.2
        %v3644 = vmul.f32 %v3590, 0.2
        %v3645 = vmul.f32 %v3591, 0.2
        %v3646 = vmul.f32 %v3592, 0.2
        %v3647 = vmul.f32 %v3593, 0.2
        %v3648 = vmul.f32 %v3594, 0.2
        %v3649 = vmul.f32 %v3595, 0.2
        %v3650 = vmul.f32 %v3596, 0.2
        %v3651 = vmul.f32 %v3597, 0.2
        %v3652 = vmul.f32 %v3598, 0.2
        %v3653 = vmul.f32 %v3599, 0.2
        %v3654 = vmul.f32 %v3600, 0.2
        %v3655 = vmax.f32 %v3547, %v3601
        %v3656 = vmax.f32 %v3548, %v3602
        %v3657 = vmax.f32 %v3549, %v3603
        %v3658 = vmax.f32 %v3550, %v3604
        %v3659 = vmax.f32 %v3551, %v3605
        %v3660 = vmax.f32 %v3552, %v3606
        %v3661 = vmax.f32 %v3553, %v3607
        %v3662 = vmax.f32 %v3554, %v3608
        %v3663 = vmax.f32 %v3555, %v3609
        %v3664 = vmax.f32 %v3556, %v3610
        %v3665 = vmax.f32 %v3557, %v3611
        %v3666 = vmax.f32 %v3558, %v3612
        %v3667 = vmax.f32 %v3559, %v3613
        %v3668 = vmax.f32 %v3560, %v3614
        %v3669 = vmax.f32 %v3561, %v3615
        %v3670 = vmax.f32 %v3562, %v3616
        %v3671 = vmax.f32 %v3563, %v3617
        %v3672 = vmax.f32 %v3564, %v3618
        %v3673 = vmax.f32 %v3565, %v3619
        %v3674 = vmax.f32 %v3566, %v3620
        %v3675 = vmax.f32 %v3567, %v3621
        %v3676 = vmax.f32 %v3568, %v3622
        %v3677 = vmax.f32 %v3569, %v3623
        %v3678 = vmax.f32 %v3570, %v3624
        %v3679 = vmax.f32 %v3571, %v3625
        %v3680 = vmax.f32 %v3572, %v3626
        %v3681 = vmax.f32 %v3573, %v3627
        %v3682 = vmax.f32 %v3574, %v3628
        %v3683 = vmax.f32 %v3575, %v3629
        %v3684 = vmax.f32 %v3576, %v3630
        %v3685 = vmax.f32 %v3577, %v3631
        %v3686 = vmax.f32 %v3578, %v3632
        %v3687 = vmax.f32 %v3579, %v3633
        %v3688 = vmax.f32 %v3580, %v3634
        %v3689 = vmax.f32 %v3581, %v3635
        %v3690 = vmax.f32 %v3582, %v3636
        %v3691 = vmax.f32 %v3583, %v3637
        %v3692 = vmax.f32 %v3584, %v3638
        %v3693 = vmax.f32 %v3585, %v3639
        %v3694 = vmax.f32 %v3586, %v3640
        %v3695 = vmax.f32 %v3587, %v3641
        %v3696 = vmax.f32 %v3588, %v3642
        %v3697 = vmax.f32 %v3589, %v3643
        %v3698 = vmax.f32 %v3590, %v3644
        %v3699 = vmax.f32 %v3591, %v3645
        %v3700 = vmax.f32 %v3592, %v3646
        %v3701 = vmax.f32 %v3593, %v3647
        %v3702 = vmax.f32 %v3594, %v3648
        %v3703 = vmax.f32 %v3595, %v3649
        %v3704 = vmax.f32 %v3596, %v3650
        %v3705 = vmax.f32 %v3597, %v3651
        %v3706 = vmax.f32 %v3598, %v3652
        %v3707 = vmax.f32 %v3599, %v3653
        %v3708 = vmax.f32 %v3600, %v3654
        %v3709 = vpack.c.bf16 %v3655, %v3655
        %v3710 = vpack.c.bf16 %v3656, %v3656
        %v3711 = vpack.c.bf16 %v3657, %v3657
        %v3712 = vpack.c.bf16 %v3658, %v3658
        %v3713 = vpack.c.bf16 %v3659, %v3659
        %v3714 = vpack.c.bf16 %v3660, %v3660
        %v3715 = vpack.c.bf16 %v3661, %v3661
        %v3716 = vpack.c.bf16 %v3662, %v3662
        %v3717 = vpack.c.bf16 %v3663, %v3663
        %v3718 = vpack.c.bf16 %v3664, %v3664
        %v3719 = vpack.c.bf16 %v3665, %v3665
        %v3720 = vpack.c.bf16 %v3666, %v3666
        %v3721 = vpack.c.bf16 %v3667, %v3667
        %v3722 = vpack.c.bf16 %v3668, %v3668
        %v3723 = vpack.c.bf16 %v3669, %v3669
        %v3724 = vpack.c.bf16 %v3670, %v3670
        %v3725 = vpack.c.bf16 %v3671, %v3671
        %v3726 = vpack.c.bf16 %v3672, %v3672
        %v3727 = vpack.c.bf16 %v3673, %v3673
        %v3728 = vpack.c.bf16 %v3674, %v3674
        %v3729 = vpack.c.bf16 %v3675, %v3675
        %v3730 = vpack.c.bf16 %v3676, %v3676
        %v3731 = vpack.c.bf16 %v3677, %v3677
        %v3732 = vpack.c.bf16 %v3678, %v3678
        %v3733 = vpack.c.bf16 %v3679, %v3679
        %v3734 = vpack.c.bf16 %v3680, %v3680
        %v3735 = vpack.c.bf16 %v3681, %v3681
        %v3736 = vpack.c.bf16 %v3682, %v3682
        %v3737 = vpack.c.bf16 %v3683, %v3683
        %v3738 = vpack.c.bf16 %v3684, %v3684
        %v3739 = vpack.c.bf16 %v3685, %v3685
        %v3740 = vpack.c.bf16 %v3686, %v3686
        %v3741 = vpack.c.bf16 %v3687, %v3687
        %v3742 = vpack.c.bf16 %v3688, %v3688
        %v3743 = vpack.c.bf16 %v3689, %v3689
        %v3744 = vpack.c.bf16 %v3690, %v3690
        %v3745 = vpack.c.bf16 %v3691, %v3691
        %v3746 = vpack.c.bf16 %v3692, %v3692
        %v3747 = vpack.c.bf16 %v3693, %v3693
        %v3748 = vpack.c.bf16 %v3694, %v3694
        %v3749 = vpack.c.bf16 %v3695, %v3695
        %v3750 = vpack.c.bf16 %v3696, %v3696
        %v3751 = vpack.c.bf16 %v3697, %v3697
        %v3752 = vpack.c.bf16 %v3698, %v3698
        %v3753 = vpack.c.bf16 %v3699, %v3699
        %v3754 = vpack.c.bf16 %v3700, %v3700
        %v3755 = vpack.c.bf16 %v3701, %v3701
        %v3756 = vpack.c.bf16 %v3702, %v3702
        %v3757 = vpack.c.bf16 %v3703, %v3703
        %v3758 = vpack.c.bf16 %v3704, %v3704
        %v3759 = vpack.c.bf16 %v3705, %v3705
        %v3760 = vpack.c.bf16 %v3706, %v3706
        %v3761 = vpack.c.bf16 %v3707, %v3707
        %v3762 = vpack.c.bf16 %v3708, %v3708
        %3763 = vst [vmem:[#allocation3] sm:$0xf] %v3709
        %3764 = vst [vmem:[#allocation3 + $0x4] sm:$0xf] %v3710
        %3765 = vst [vmem:[#allocation3 + $0x8] sm:$0xf] %v3711
        %3766 = vst [vmem:[#allocation3 + $0xc] sm:$0xf] %v3712
        %3767 = vst [vmem:[#allocation3 + $0x10] sm:$0xf] %v3713
        %3768 = vst [vmem:[#allocation3 + $0x14] sm:$0xf] %v3714
        %3769 = vst [vmem:[#allocation3 + $0x18] sm:$0xf] %v3715
        %3770 = vst [vmem:[#allocation3 + $0x1c] sm:$0xf] %v3716
        %3771 = vst [vmem:[#allocation3 + $0x20] sm:$0xf] %v3717
        %3772 = vst [vmem:[#allocation3 + $0x24] sm:$0xf] %v3718
        %3773 = vst [vmem:[#allocation3 + $0x28] sm:$0xf] %v3719
        %3774 = vst [vmem:[#allocation3 + $0x2c] sm:$0xf] %v3720
        %3775 = vst [vmem:[#allocation3 + $0x30] sm:$0xf] %v3721
        %3776 = vst [vmem:[#allocation3 + $0x34] sm:$0xf] %v3722
        %3777 = vst [vmem:[#allocation3 + $0x38] sm:$0xf] %v3723
        %3778 = vst [vmem:[#allocation3 + $0x3c] sm:$0xf] %v3724
        %3779 = vst [vmem:[#allocation3 + $0x40] sm:$0xf] %v3725
        %3780 = vst [vmem:[#allocation3 + $0x44] sm:$0xf] %v3726
        %3781 = vst [vmem:[#allocation3 + $0x48] sm:$0xf] %v3727
        %3782 = vst [vmem:[#allocation3 + $0x4c] sm:$0xf] %v3728
        %3783 = vst [vmem:[#allocation3 + $0x50] sm:$0xf] %v3729
        %3784 = vst [vmem:[#allocation3 + $0x54] sm:$0xf] %v3730
        %3785 = vst [vmem:[#allocation3 + $0x58] sm:$0xf] %v3731
        %3786 = vst [vmem:[#allocation3 + $0x5c] sm:$0xf] %v3732
        %3787 = vst [vmem:[#allocation3 + $0x60] sm:$0xf] %v3733
        %3788 = vst [vmem:[#allocation3 + $0x64] sm:$0xf] %v3734
        %3789 = vst [vmem:[#allocation3 + $0x68] sm:$0xf] %v3735
        %3790 = vst [vmem:[#allocation3 + $0x6c] sm:$0xf] %v3736
        %3791 = vst [vmem:[#allocation3 + $0x70] sm:$0xf] %v3737
        %3792 = vst [vmem:[#allocation3 + $0x74] sm:$0xf] %v3738
        %3793 = vst [vmem:[#allocation3 + $0x78] sm:$0xf] %v3739
        %3794 = vst [vmem:[#allocation3 + $0x7c] sm:$0xf] %v3740
        %3795 = vst [vmem:[#allocation3 + $0x80] sm:$0xf] %v3741
        %3796 = vst [vmem:[#allocation3 + $0x84] sm:$0xf] %v3742
        %3797 = vst [vmem:[#allocation3 + $0x88] sm:$0xf] %v3743
        %3798 = vst [vmem:[#allocation3 + $0x8c] sm:$0xf] %v3744
        %3799 = vst [vmem:[#allocation3 + $0x90] sm:$0xf] %v3745
        %3800 = vst [vmem:[#allocation3 + $0x94] sm:$0xf] %v3746
        %3801 = vst [vmem:[#allocation3 + $0x98] sm:$0xf] %v3747
        %3802 = vst [vmem:[#allocation3 + $0x9c] sm:$0xf] %v3748
        %3803 = vst [vmem:[#allocation3 + $0xa0] sm:$0xf] %v3749
        %3804 = vst [vmem:[#allocation3 + $0xa4] sm:$0xf] %v3750
        %3805 = vst [vmem:[#allocation3 + $0xa8] sm:$0xf] %v3751
        %3806 = vst [vmem:[#allocation3 + $0xac] sm:$0xf] %v3752
        %3807 = vst [vmem:[#allocation3 + $0xb0] sm:$0xf] %v3753
        %3808 = vst [vmem:[#allocation3 + $0xb4] sm:$0xf] %v3754
        %3809 = vst [vmem:[#allocation3 + $0xb8] sm:$0xf] %v3755
        %3810 = vst [vmem:[#allocation3 + $0xbc] sm:$0xf] %v3756
        %3811 = vst [vmem:[#allocation3 + $0xc0] sm:$0xf] %v3757
        %3812 = vst [vmem:[#allocation3 + $0xc4] sm:$0xf] %v3758
        %3813 = vst [vmem:[#allocation3 + $0xc8] sm:$0xf] %v3759
        %3814 = vst [vmem:[#allocation3 + $0xcc] sm:$0xf] %v3760
        %3815 = vst [vmem:[#allocation3 + $0xd0] sm:$0xf] %v3761
        %3816 = vst [vmem:[#allocation3 + $0xd4] sm:$0xf] %v3762
        %vm3817 = vcmask 1040384
        %vm3818 = vsmask.f32 256
        %vm3819 = vmand %vm3817, %vm3818
        %v3820 = vld [vmem:[#allocation3] sm:$0x1]
        %v3821 = vsel %vm3819, 0, %v3820
        %3822 = vst [vmem:[#allocation3] sm:$0x1] %v3821
        %v3823 = vld [vmem:[#allocation3 + $0xc] sm:$0x1]
        %v3824 = vsel %vm3819, 0, %v3823
        %3825 = vst [vmem:[#allocation3 + $0xc] sm:$0x1] %v3824
        %v3826 = vld [vmem:[#allocation3 + $0x18] sm:$0x1]
        %v3827 = vsel %vm3819, 0, %v3826
        %3828 = vst [vmem:[#allocation3 + $0x18] sm:$0x1] %v3827
        %v3829 = vld [vmem:[#allocation3 + $0x24] sm:$0x1]
        %v3830 = vsel %vm3819, 0, %v3829
        %3831 = vst [vmem:[#allocation3 + $0x24] sm:$0x1] %v3830
        %v3832 = vld [vmem:[#allocation3 + $0x30] sm:$0x1]
        %v3833 = vsel %vm3819, 0, %v3832
        %3834 = vst [vmem:[#allocation3 + $0x30] sm:$0x1] %v3833
        %v3835 = vld [vmem:[#allocation3 + $0x3c] sm:$0x1]
        %v3836 = vsel %vm3819, 0, %v3835
        %3837 = vst [vmem:[#allocation3 + $0x3c] sm:$0x1] %v3836
        %v3838 = vld [vmem:[#allocation3 + $0x48] sm:$0x1]
        %v3839 = vsel %vm3819, 0, %v3838
        %3840 = vst [vmem:[#allocation3 + $0x48] sm:$0x1] %v3839
        %v3841 = vld [vmem:[#allocation3 + $0x54] sm:$0x1]
        %v3842 = vsel %vm3819, 0, %v3841
        %3843 = vst [vmem:[#allocation3 + $0x54] sm:$0x1] %v3842
        %v3844 = vld [vmem:[#allocation3 + $0x60] sm:$0x1]
        %v3845 = vsel %vm3819, 0, %v3844
        %3846 = vst [vmem:[#allocation3 + $0x60] sm:$0x1] %v3845
        %v3847 = vld [vmem:[#allocation3 + $0x6c] sm:$0x1]
        %v3848 = vsel %vm3819, 0, %v3847
        %3849 = vst [vmem:[#allocation3 + $0x6c] sm:$0x1] %v3848
        %v3850 = vld [vmem:[#allocation3 + $0x78] sm:$0x1]
        %v3851 = vsel %vm3819, 0, %v3850
        %3852 = vst [vmem:[#allocation3 + $0x78] sm:$0x1] %v3851
        %v3853 = vld [vmem:[#allocation3 + $0x84] sm:$0x1]
        %v3854 = vsel %vm3819, 0, %v3853
        %3855 = vst [vmem:[#allocation3 + $0x84] sm:$0x1] %v3854
        %v3856 = vld [vmem:[#allocation3 + $0x90] sm:$0x1]
        %v3857 = vsel %vm3819, 0, %v3856
        %3858 = vst [vmem:[#allocation3 + $0x90] sm:$0x1] %v3857
        %v3859 = vld [vmem:[#allocation3 + $0x9c] sm:$0x1]
        %v3860 = vsel %vm3819, 0, %v3859
        %3861 = vst [vmem:[#allocation3 + $0x9c] sm:$0x1] %v3860
        %v3862 = vld [vmem:[#allocation3 + $0xa8] sm:$0x1]
        %v3863 = vsel %vm3819, 0, %v3862
        %3864 = vst [vmem:[#allocation3 + $0xa8] sm:$0x1] %v3863
        %v3865 = vld [vmem:[#allocation3 + $0xb4] sm:$0x1]
        %v3866 = vsel %vm3819, 0, %v3865
        %3867 = vst [vmem:[#allocation3 + $0xb4] sm:$0x1] %v3866
        %v3868 = vld [vmem:[#allocation3 + $0xc0] sm:$0x1]
        %v3869 = vsel %vm3819, 0, %v3868
        %3870 = vst [vmem:[#allocation3 + $0xc0] sm:$0x1] %v3869
        %v3871 = vld [vmem:[#allocation3 + $0xcc] sm:$0x1]
        %v3872 = vsel %vm3819, 0, %v3871
        %3873 = vst [vmem:[#allocation3 + $0xcc] sm:$0x1] %v3872
        %vm3874 = vsmask.f32 7938
        %vm3875 = vmand %vm3817, %vm3874
        %v3876 = vld [vmem:[#allocation3 + $0x8] sm:$0x1]
        %v3877 = vsel %vm3875, 0, %v3876
        %3878 = vst [vmem:[#allocation3 + $0x8] sm:$0x1] %v3877
        %v3879 = vld [vmem:[#allocation3 + $0x14] sm:$0x1]
        %v3880 = vsel %vm3875, 0, %v3879
        %3881 = vst [vmem:[#allocation3 + $0x14] sm:$0x1] %v3880
        %v3882 = vld [vmem:[#allocation3 + $0x20] sm:$0x1]
        %v3883 = vsel %vm3875, 0, %v3882
        %3884 = vst [vmem:[#allocation3 + $0x20] sm:$0x1] %v3883
        %v3885 = vld [vmem:[#allocation3 + $0x2c] sm:$0x1]
        %v3886 = vsel %vm3875, 0, %v3885
        %3887 = vst [vmem:[#allocation3 + $0x2c] sm:$0x1] %v3886
        %v3888 = vld [vmem:[#allocation3 + $0x38] sm:$0x1]
        %v3889 = vsel %vm3875, 0, %v3888
        %3890 = vst [vmem:[#allocation3 + $0x38] sm:$0x1] %v3889
        %v3891 = vld [vmem:[#allocation3 + $0x44] sm:$0x1]
        %v3892 = vsel %vm3875, 0, %v3891
        %3893 = vst [vmem:[#allocation3 + $0x44] sm:$0x1] %v3892
        %v3894 = vld [vmem:[#allocation3 + $0x50] sm:$0x1]
        %v3895 = vsel %vm3875, 0, %v3894
        %3896 = vst [vmem:[#allocation3 + $0x50] sm:$0x1] %v3895
        %v3897 = vld [vmem:[#allocation3 + $0x5c] sm:$0x1]
        %v3898 = vsel %vm3875, 0, %v3897
        %3899 = vst [vmem:[#allocation3 + $0x5c] sm:$0x1] %v3898
        %v3900 = vld [vmem:[#allocation3 + $0x68] sm:$0x1]
        %v3901 = vsel %vm3875, 0, %v3900
        %3902 = vst [vmem:[#allocation3 + $0x68] sm:$0x1] %v3901
        %v3903 = vld [vmem:[#allocation3 + $0x74] sm:$0x1]
        %v3904 = vsel %vm3875, 0, %v3903
        %3905 = vst [vmem:[#allocation3 + $0x74] sm:$0x1] %v3904
        %v3906 = vld [vmem:[#allocation3 + $0x80] sm:$0x1]
        %v3907 = vsel %vm3875, 0, %v3906
        %3908 = vst [vmem:[#allocation3 + $0x80] sm:$0x1] %v3907
        %v3909 = vld [vmem:[#allocation3 + $0x8c] sm:$0x1]
        %v3910 = vsel %vm3875, 0, %v3909
        %3911 = vst [vmem:[#allocation3 + $0x8c] sm:$0x1] %v3910
        %v3912 = vld [vmem:[#allocation3 + $0x98] sm:$0x1]
        %v3913 = vsel %vm3875, 0, %v3912
        %3914 = vst [vmem:[#allocation3 + $0x98] sm:$0x1] %v3913
        %v3915 = vld [vmem:[#allocation3 + $0xa4] sm:$0x1]
        %v3916 = vsel %vm3875, 0, %v3915
        %3917 = vst [vmem:[#allocation3 + $0xa4] sm:$0x1] %v3916
        %v3918 = vld [vmem:[#allocation3 + $0xb0] sm:$0x1]
        %v3919 = vsel %vm3875, 0, %v3918
        %3920 = vst [vmem:[#allocation3 + $0xb0] sm:$0x1] %v3919
        %v3921 = vld [vmem:[#allocation3 + $0xbc] sm:$0x1]
        %v3922 = vsel %vm3875, 0, %v3921
        %3923 = vst [vmem:[#allocation3 + $0xbc] sm:$0x1] %v3922
        %v3924 = vld [vmem:[#allocation3 + $0xc8] sm:$0x1]
        %v3925 = vsel %vm3875, 0, %v3924
        %3926 = vst [vmem:[#allocation3 + $0xc8] sm:$0x1] %v3925
        %v3927 = vld [vmem:[#allocation3 + $0xd4] sm:$0x1]
        %v3928 = vsel %vm3875, 0, %v3927
        %3929 = vst [vmem:[#allocation3 + $0xd4] sm:$0x1] %v3928
        %p3930 = scmp.eq.s32.totalorder %s26, 0
        // Predicated region
        $region50: #{tpu_custom_call.1} parent=35 // pred_check
          %p3931 = pneg %p3930
        $region51: #{tpu_custom_call.1} parent=35 // pred_check_branch
          %3933 = sbr.rel (%p3931) target = $region53
        $region52: #{tpu_custom_call.1} parent=35 // pred_region
          %3934 = vst [vmem:[#allocation3] sm:$0xf] 0
          %3935 = vst [vmem:[#allocation3 + $0x4] sm:$0xf] 0
          %3936 = vst [vmem:[#allocation3 + $0x8] sm:$0xf] 0
          %s3937 = scalar_lea.vmem [#allocation3], 204
          %3938 = vst [vmem:[%s3937] sm:$0xf] 0
          %3939 = vst [vmem:[%s3937 + $0x4] sm:$0xf] 0
          %3940 = vst [vmem:[%s3937 + $0x8] sm:$0xf] 0
        $region53: #{tpu_custom_call.1} parent=35 // pred_fallthru
          _
        %v3941 = vld [vmem:[#allocation3] sm:$0xf]
        %v3942 = vld [vmem:[#allocation3 + $0x4] sm:$0xf]
        %v3943 = vld [vmem:[#allocation3 + $0xc] sm:$0xf]
        %v3944 = vld [vmem:[#allocation3 + $0x10] sm:$0xf]
        %v3945 = vld [vmem:[#allocation3 + $0x18] sm:$0xf]
        %v3946 = vld [vmem:[#allocation3 + $0x1c] sm:$0xf]
        %v3947 = vld [vmem:[#allocation3 + $0x24] sm:$0xf]
        %v3948 = vld [vmem:[#allocation3 + $0x28] sm:$0xf]
        %v3949 = vld [vmem:[#allocation3 + $0x30] sm:$0xf]
        %v3950 = vld [vmem:[#allocation3 + $0x34] sm:$0xf]
        %v3951 = vld [vmem:[#allocation3 + $0x3c] sm:$0xf]
        %v3952 = vld [vmem:[#allocation3 + $0x40] sm:$0xf]
        %v3953 = vld [vmem:[#allocation3 + $0x48] sm:$0xf]
        %v3954 = vld [vmem:[#allocation3 + $0x4c] sm:$0xf]
        %v3955 = vld [vmem:[#allocation3 + $0x54] sm:$0xf]
        %v3956 = vld [vmem:[#allocation3 + $0x58] sm:$0xf]
        %v3957 = vld [vmem:[#allocation3 + $0x60] sm:$0xf]
        %v3958 = vld [vmem:[#allocation3 + $0x64] sm:$0xf]
        %v3959 = vld [vmem:[#allocation3 + $0x6c] sm:$0xf]
        %v3960 = vld [vmem:[#allocation3 + $0x70] sm:$0xf]
        %v3961 = vld [vmem:[#allocation3 + $0x78] sm:$0xf]
        %v3962 = vld [vmem:[#allocation3 + $0x7c] sm:$0xf]
        %v3963 = vld [vmem:[#allocation3 + $0x84] sm:$0xf]
        %v3964 = vld [vmem:[#allocation3 + $0x88] sm:$0xf]
        %v3965 = vld [vmem:[#allocation3 + $0x90] sm:$0xf]
        %v3966 = vld [vmem:[#allocation3 + $0x94] sm:$0xf]
        %v3967 = vld [vmem:[#allocation3 + $0x9c] sm:$0xf]
        %v3968 = vld [vmem:[#allocation3 + $0xa0] sm:$0xf]
        %v3969 = vld [vmem:[#allocation3 + $0xa8] sm:$0xf]
        %v3970 = vld [vmem:[#allocation3 + $0xac] sm:$0xf]
        %v3971 = vld [vmem:[#allocation3 + $0xb4] sm:$0xf]
        %v3972 = vld [vmem:[#allocation3 + $0xb8] sm:$0xf]
        %v3973 = vld [vmem:[#allocation3 + $0xc0] sm:$0xf]
        %v3974 = vld [vmem:[#allocation3 + $0xc4] sm:$0xf]
        %v3975 = vld [vmem:[#allocation3 + $0xcc] sm:$0xf]
        %v3976 = vld [vmem:[#allocation3 + $0xd0] sm:$0xf]
        %v3977 = vld [vmem:[#allocation3] sm:$0xf]
        %v3978 = vld [vmem:[#allocation3 + $0x4] sm:$0xf]
        %v3979 = vld [vmem:[#allocation3 + $0x8] sm:$0x1]
        %v3980 = vld [vmem:[#allocation3 + $0xc] sm:$0xf]
        %v3981 = vld [vmem:[#allocation3 + $0x10] sm:$0xf]
        %v3982 = vld [vmem:[#allocation3 + $0x14] sm:$0x1]
        %v3983 = vld [vmem:[#allocation3 + $0x18] sm:$0xf]
        %v3984 = vld [vmem:[#allocation3 + $0x1c] sm:$0xf]
        %v3985 = vld [vmem:[#allocation3 + $0x20] sm:$0x1]
        %v3986 = vld [vmem:[#allocation3 + $0x24] sm:$0xf]
        %v3987 = vld [vmem:[#allocation3 + $0x28] sm:$0xf]
        %v3988 = vld [vmem:[#allocation3 + $0x2c] sm:$0x1]
        %v3989 = vld [vmem:[#allocation3 + $0x30] sm:$0xf]
        %v3990 = vld [vmem:[#allocation3 + $0x34] sm:$0xf]
        %v3991 = vld [vmem:[#allocation3 + $0x38] sm:$0x1]
        %v3992 = vld [vmem:[#allocation3 + $0x3c] sm:$0xf]
        %v3993 = vld [vmem:[#allocation3 + $0x40] sm:$0xf]
        %v3994 = vld [vmem:[#allocation3 + $0x44] sm:$0x1]
        %v3995 = vld [vmem:[#allocation3 + $0x48] sm:$0xf]
        %v3996 = vld [vmem:[#allocation3 + $0x4c] sm:$0xf]
        %v3997 = vld [vmem:[#allocation3 + $0x50] sm:$0x1]
        %v3998 = vld [vmem:[#allocation3 + $0x54] sm:$0xf]
        %v3999 = vld [vmem:[#allocation3 + $0x58] sm:$0xf]
        %v4000 = vld [vmem:[#allocation3 + $0x5c] sm:$0x1]
        %v4001 = vld [vmem:[#allocation3 + $0x60] sm:$0xf]
        %v4002 = vld [vmem:[#allocation3 + $0x64] sm:$0xf]
        %v4003 = vld [vmem:[#allocation3 + $0x68] sm:$0x1]
        %v4004 = vld [vmem:[#allocation3 + $0x6c] sm:$0xf]
        %v4005 = vld [vmem:[#allocation3 + $0x70] sm:$0xf]
        %v4006 = vld [vmem:[#allocation3 + $0x74] sm:$0x1]
        %v4007 = vld [vmem:[#allocation3 + $0x78] sm:$0xf]
        %v4008 = vld [vmem:[#allocation3 + $0x7c] sm:$0xf]
        %v4009 = vld [vmem:[#allocation3 + $0x80] sm:$0x1]
        %v4010 = vld [vmem:[#allocation3 + $0x84] sm:$0xf]
        %v4011 = vld [vmem:[#allocation3 + $0x88] sm:$0xf]
        %v4012 = vld [vmem:[#allocation3 + $0x8c] sm:$0x1]
        %v4013 = vld [vmem:[#allocation3 + $0x90] sm:$0xf]
        %v4014 = vld [vmem:[#allocation3 + $0x94] sm:$0xf]
        %v4015 = vld [vmem:[#allocation3 + $0x98] sm:$0x1]
        %v4016 = vld [vmem:[#allocation3 + $0x9c] sm:$0xf]
        %v4017 = vld [vmem:[#allocation3 + $0xa0] sm:$0xf]
        %v4018 = vld [vmem:[#allocation3 + $0xa4] sm:$0x1]
        %v4019 = vld [vmem:[#allocation3 + $0xa8] sm:$0xf]
        %v4020 = vld [vmem:[#allocation3 + $0xac] sm:$0xf]
        %v4021 = vld [vmem:[#allocation3 + $0xb0] sm:$0x1]
        %v4022 = vld [vmem:[#allocation3 + $0xb4] sm:$0xf]
        %v4023 = vld [vmem:[#allocation3 + $0xb8] sm:$0xf]
        %v4024 = vld [vmem:[#allocation3 + $0xbc] sm:$0x1]
        %v4025 = vld [vmem:[#allocation3 + $0xc0] sm:$0xf]
        %v4026 = vld [vmem:[#allocation3 + $0xc4] sm:$0xf]
        %v4027 = vld [vmem:[#allocation3 + $0xc8] sm:$0x1]
        %v4028 = vld [vmem:[#allocation3 + $0xcc] sm:$0xf]
        %v4029 = vld [vmem:[#allocation3 + $0xd0] sm:$0xf]
        %v4030 = vld [vmem:[#allocation3 + $0xd4] sm:$0x1]
        %v4031 = vld [vmem:[#allocation3] sm:$0xe]
        %v4032 = vld [vmem:[#allocation3 + $0xc] sm:$0xe]
        %v4033 = vld [vmem:[#allocation3 + $0x18] sm:$0xe]
        %v4034 = vld [vmem:[#allocation3 + $0x24] sm:$0xe]
        %v4035 = vld [vmem:[#allocation3 + $0x30] sm:$0xe]
        %v4036 = vld [vmem:[#allocation3 + $0x3c] sm:$0xe]
        %v4037 = vld [vmem:[#allocation3 + $0x48] sm:$0xe]
        %v4038 = vld [vmem:[#allocation3 + $0x54] sm:$0xe]
        %v4039 = vld [vmem:[#allocation3 + $0x60] sm:$0xe]
        %v4040 = vld [vmem:[#allocation3 + $0x6c] sm:$0xe]
        %v4041 = vld [vmem:[#allocation3 + $0x78] sm:$0xe]
        %v4042 = vld [vmem:[#allocation3 + $0x84] sm:$0xe]
        %v4043 = vld [vmem:[#allocation3 + $0x90] sm:$0xe]
        %v4044 = vld [vmem:[#allocation3 + $0x9c] sm:$0xe]
        %v4045 = vld [vmem:[#allocation3 + $0xa8] sm:$0xe]
        %v4046 = vld [vmem:[#allocation3 + $0xb4] sm:$0xe]
        %v4047 = vld [vmem:[#allocation3 + $0xc0] sm:$0xe]
        %v4048 = vld [vmem:[#allocation3 + $0xcc] sm:$0xe]
        %v4085 = vunpack.c.l.b16 %v3941
        %v4086 = vunpack.c.l.b16 %v3942
        %v4087 = vunpack.c.l.b16 %v3943
        %v4088 = vunpack.c.l.b16 %v3944
        %v4089 = vunpack.c.l.b16 %v3945
        %v4090 = vunpack.c.l.b16 %v3946
        %v4091 = vunpack.c.l.b16 %v3947
        %v4092 = vunpack.c.l.b16 %v3948
        %v4093 = vunpack.c.l.b16 %v3949
        %v4094 = vunpack.c.l.b16 %v3950
        %v4095 = vunpack.c.l.b16 %v3951
        %v4096 = vunpack.c.l.b16 %v3952
        %v4097 = vunpack.c.l.b16 %v3953
        %v4098 = vunpack.c.l.b16 %v3954
        %v4099 = vunpack.c.l.b16 %v3955
        %v4100 = vunpack.c.l.b16 %v3956
        %v4101 = vunpack.c.l.b16 %v3957
        %v4102 = vunpack.c.l.b16 %v3958
        %v4103 = vunpack.c.l.b16 %v3959
        %v4104 = vunpack.c.l.b16 %v3960
        %v4105 = vunpack.c.l.b16 %v3961
        %v4106 = vunpack.c.l.b16 %v3962
        %v4107 = vunpack.c.l.b16 %v3963
        %v4108 = vunpack.c.l.b16 %v3964
        %v4109 = vunpack.c.l.b16 %v3965
        %v4110 = vunpack.c.l.b16 %v3966
        %v4111 = vunpack.c.l.b16 %v3967
        %v4112 = vunpack.c.l.b16 %v3968
        %v4113 = vunpack.c.l.b16 %v3969
        %v4114 = vunpack.c.l.b16 %v3970
        %v4115 = vunpack.c.l.b16 %v3971
        %v4116 = vunpack.c.l.b16 %v3972
        %v4117 = vunpack.c.l.b16 %v3973
        %v4118 = vunpack.c.l.b16 %v3974
        %v4119 = vunpack.c.l.b16 %v3975
        %v4120 = vunpack.c.l.b16 %v3976
        %v4121 = vpack.c.b16 %v4086, %v4085
        %v4122 = vpack.c.b16 %v4088, %v4087
        %v4123 = vpack.c.b16 %v4090, %v4089
        %v4124 = vpack.c.b16 %v4092, %v4091
        %v4125 = vpack.c.b16 %v4094, %v4093
        %v4126 = vpack.c.b16 %v4096, %v4095
        %v4127 = vpack.c.b16 %v4098, %v4097
        %v4128 = vpack.c.b16 %v4100, %v4099
        %v4129 = vpack.c.b16 %v4102, %v4101
        %v4130 = vpack.c.b16 %v4104, %v4103
        %v4131 = vpack.c.b16 %v4106, %v4105
        %v4132 = vpack.c.b16 %v4108, %v4107
        %v4133 = vpack.c.b16 %v4110, %v4109
        %v4134 = vpack.c.b16 %v4112, %v4111
        %v4135 = vpack.c.b16 %v4114, %v4113
        %v4136 = vpack.c.b16 %v4116, %v4115
        %v4137 = vpack.c.b16 %v4118, %v4117
        %v4138 = vpack.c.b16 %v4120, %v4119
        %v4211 = vunpack.c.l.b16 %v3977
        %v4212 = vunpack.c.l.b16 %v3978
        %v4213 = vunpack.c.l.b16 %v3979
        %v4214 = vunpack.c.l.b16 %v3980
        %v4215 = vunpack.c.l.b16 %v3981
        %v4216 = vunpack.c.l.b16 %v3982
        %v4217 = vunpack.c.l.b16 %v3983
        %v4218 = vunpack.c.l.b16 %v3984
        %v4219 = vunpack.c.l.b16 %v3985
        %v4220 = vunpack.c.l.b16 %v3986
        %v4221 = vunpack.c.l.b16 %v3987
        %v4222 = vunpack.c.l.b16 %v3988
        %v4223 = vunpack.c.l.b16 %v3989
        %v4224 = vunpack.c.l.b16 %v3990
        %v4225 = vunpack.c.l.b16 %v3991
        %v4226 = vunpack.c.l.b16 %v3992
        %v4227 = vunpack.c.l.b16 %v3993
        %v4228 = vunpack.c.l.b16 %v3994
        %v4229 = vunpack.c.l.b16 %v3995
        %v4230 = vunpack.c.l.b16 %v3996
        %v4231 = vunpack.c.l.b16 %v3997
        %v4232 = vunpack.c.l.b16 %v3998
        %v4233 = vunpack.c.l.b16 %v3999
        %v4234 = vunpack.c.l.b16 %v4000
        %v4235 = vunpack.c.l.b16 %v4001
        %v4236 = vunpack.c.l.b16 %v4002
        %v4237 = vunpack.c.l.b16 %v4003
        %v4238 = vunpack.c.l.b16 %v4004
        %v4239 = vunpack.c.l.b16 %v4005
        %v4240 = vunpack.c.l.b16 %v4006
        %v4241 = vunpack.c.l.b16 %v4007
        %v4242 = vunpack.c.l.b16 %v4008
        %v4243 = vunpack.c.l.b16 %v4009
        %v4244 = vunpack.c.l.b16 %v4010
        %v4245 = vunpack.c.l.b16 %v4011
        %v4246 = vunpack.c.l.b16 %v4012
        %v4247 = vunpack.c.l.b16 %v4013
        %v4248 = vunpack.c.l.b16 %v4014
        %v4249 = vunpack.c.l.b16 %v4015
        %v4250 = vunpack.c.l.b16 %v4016
        %v4251 = vunpack.c.l.b16 %v4017
        %v4252 = vunpack.c.l.b16 %v4018
        %v4253 = vunpack.c.l.b16 %v4019
        %v4254 = vunpack.c.l.b16 %v4020
        %v4255 = vunpack.c.l.b16 %v4021
        %v4256 = vunpack.c.l.b16 %v4022
        %v4257 = vunpack.c.l.b16 %v4023
        %v4258 = vunpack.c.l.b16 %v4024
        %v4259 = vunpack.c.l.b16 %v4025
        %v4260 = vunpack.c.l.b16 %v4026
        %v4261 = vunpack.c.l.b16 %v4027
        %v4262 = vunpack.c.l.b16 %v4028
        %v4263 = vunpack.c.l.b16 %v4029
        %v4264 = vunpack.c.l.b16 %v4030
        %v4265 = vpack.c.b16 %v4212, %v4211
        %v4266 = vpack.c.b16 %v4213, %v4213
        %v4267 = vpack.c.b16 %v4215, %v4214
        %v4268 = vpack.c.b16 %v4216, %v4216
        %v4269 = vpack.c.b16 %v4218, %v4217
        %v4270 = vpack.c.b16 %v4219, %v4219
        %v4271 = vpack.c.b16 %v4221, %v4220
        %v4272 = vpack.c.b16 %v4222, %v4222
        %v4273 = vpack.c.b16 %v4224, %v4223
        %v4274 = vpack.c.b16 %v4225, %v4225
        %v4275 = vpack.c.b16 %v4227, %v4226
        %v4276 = vpack.c.b16 %v4228, %v4228
        %v4277 = vpack.c.b16 %v4230, %v4229
        %v4278 = vpack.c.b16 %v4231, %v4231
        %v4279 = vpack.c.b16 %v4233, %v4232
        %v4280 = vpack.c.b16 %v4234, %v4234
        %v4281 = vpack.c.b16 %v4236, %v4235
        %v4282 = vpack.c.b16 %v4237, %v4237
        %v4283 = vpack.c.b16 %v4239, %v4238
        %v4284 = vpack.c.b16 %v4240, %v4240
        %v4285 = vpack.c.b16 %v4242, %v4241
        %v4286 = vpack.c.b16 %v4243, %v4243
        %v4287 = vpack.c.b16 %v4245, %v4244
        %v4288 = vpack.c.b16 %v4246, %v4246
        %v4289 = vpack.c.b16 %v4248, %v4247
        %v4290 = vpack.c.b16 %v4249, %v4249
        %v4291 = vpack.c.b16 %v4251, %v4250
        %v4292 = vpack.c.b16 %v4252, %v4252
        %v4293 = vpack.c.b16 %v4254, %v4253
        %v4294 = vpack.c.b16 %v4255, %v4255
        %v4295 = vpack.c.b16 %v4257, %v4256
        %v4296 = vpack.c.b16 %v4258, %v4258
        %v4297 = vpack.c.b16 %v4260, %v4259
        %v4298 = vpack.c.b16 %v4261, %v4261
        %v4299 = vpack.c.b16 %v4263, %v4262
        %v4300 = vpack.c.b16 %v4264, %v4264
        %v4302 = vshrl.u32 %v4265, 16
        %v4304 = vshll.u32 %v4265, 16
        %v4306 = vrot.slane %v4304, 1
        %v4307 = vor.u32 %v4302, %v4306
        %v4309 = vshll.u32 %v4266, 16
        %v4311 = vrot.slane %v4309, 1
        %v4312 = vsel %vm731, %v4307, %v4311
        %v4314 = vshrl.u32 %v4267, 16
        %v4316 = vshll.u32 %v4267, 16
        %v4318 = vrot.slane %v4316, 1
        %v4319 = vor.u32 %v4314, %v4318
        %v4321 = vshll.u32 %v4268, 16
        %v4323 = vrot.slane %v4321, 1
        %v4324 = vsel %vm731, %v4319, %v4323
        %v4326 = vshrl.u32 %v4269, 16
        %v4328 = vshll.u32 %v4269, 16
        %v4330 = vrot.slane %v4328, 1
        %v4331 = vor.u32 %v4326, %v4330
        %v4333 = vshll.u32 %v4270, 16
        %v4335 = vrot.slane %v4333, 1
        %v4336 = vsel %vm731, %v4331, %v4335
        %v4338 = vshrl.u32 %v4271, 16
        %v4340 = vshll.u32 %v4271, 16
        %v4342 = vrot.slane %v4340, 1
        %v4343 = vor.u32 %v4338, %v4342
        %v4345 = vshll.u32 %v4272, 16
        %v4347 = vrot.slane %v4345, 1
        %v4348 = vsel %vm731, %v4343, %v4347
        %v4350 = vshrl.u32 %v4273, 16
        %v4352 = vshll.u32 %v4273, 16
        %v4354 = vrot.slane %v4352, 1
        %v4355 = vor.u32 %v4350, %v4354
        %v4357 = vshll.u32 %v4274, 16
        %v4359 = vrot.slane %v4357, 1
        %v4360 = vsel %vm731, %v4355, %v4359
        %v4362 = vshrl.u32 %v4275, 16
        %v4364 = vshll.u32 %v4275, 16
        %v4366 = vrot.slane %v4364, 1
        %v4367 = vor.u32 %v4362, %v4366
        %v4369 = vshll.u32 %v4276, 16
        %v4371 = vrot.slane %v4369, 1
        %v4372 = vsel %vm731, %v4367, %v4371
        %v4374 = vshrl.u32 %v4277, 16
        %v4376 = vshll.u32 %v4277, 16
        %v4378 = vrot.slane %v4376, 1
        %v4379 = vor.u32 %v4374, %v4378
        %v4381 = vshll.u32 %v4278, 16
        %v4383 = vrot.slane %v4381, 1
        %v4384 = vsel %vm731, %v4379, %v4383
        %v4386 = vshrl.u32 %v4279, 16
        %v4388 = vshll.u32 %v4279, 16
        %v4390 = vrot.slane %v4388, 1
        %v4391 = vor.u32 %v4386, %v4390
        %v4393 = vshll.u32 %v4280, 16
        %v4395 = vrot.slane %v4393, 1
        %v4396 = vsel %vm731, %v4391, %v4395
        %v4398 = vshrl.u32 %v4281, 16
        %v4400 = vshll.u32 %v4281, 16
        %v4402 = vrot.slane %v4400, 1
        %v4403 = vor.u32 %v4398, %v4402
        %v4405 = vshll.u32 %v4282, 16
        %v4407 = vrot.slane %v4405, 1
        %v4408 = vsel %vm731, %v4403, %v4407
        %v4410 = vshrl.u32 %v4283, 16
        %v4412 = vshll.u32 %v4283, 16
        %v4414 = vrot.slane %v4412, 1
        %v4415 = vor.u32 %v4410, %v4414
        %v4417 = vshll.u32 %v4284, 16
        %v4419 = vrot.slane %v4417, 1
        %v4420 = vsel %vm731, %v4415, %v4419
        %v4422 = vshrl.u32 %v4285, 16
        %v4424 = vshll.u32 %v4285, 16
        %v4426 = vrot.slane %v4424, 1
        %v4427 = vor.u32 %v4422, %v4426
        %v4429 = vshll.u32 %v4286, 16
        %v4431 = vrot.slane %v4429, 1
        %v4432 = vsel %vm731, %v4427, %v4431
        %v4434 = vshrl.u32 %v4287, 16
        %v4436 = vshll.u32 %v4287, 16
        %v4438 = vrot.slane %v4436, 1
        %v4439 = vor.u32 %v4434, %v4438
        %v4441 = vshll.u32 %v4288, 16
        %v4443 = vrot.slane %v4441, 1
        %v4444 = vsel %vm731, %v4439, %v4443
        %v4446 = vshrl.u32 %v4289, 16
        %v4448 = vshll.u32 %v4289, 16
        %v4450 = vrot.slane %v4448, 1
        %v4451 = vor.u32 %v4446, %v4450
        %v4453 = vshll.u32 %v4290, 16
        %v4455 = vrot.slane %v4453, 1
        %v4456 = vsel %vm731, %v4451, %v4455
        %v4458 = vshrl.u32 %v4291, 16
        %v4460 = vshll.u32 %v4291, 16
        %v4462 = vrot.slane %v4460, 1
        %v4463 = vor.u32 %v4458, %v4462
        %v4465 = vshll.u32 %v4292, 16
        %v4467 = vrot.slane %v4465, 1
        %v4468 = vsel %vm731, %v4463, %v4467
        %v4470 = vshrl.u32 %v4293, 16
        %v4472 = vshll.u32 %v4293, 16
        %v4474 = vrot.slane %v4472, 1
        %v4475 = vor.u32 %v4470, %v4474
        %v4477 = vshll.u32 %v4294, 16
        %v4479 = vrot.slane %v4477, 1
        %v4480 = vsel %vm731, %v4475, %v4479
        %v4482 = vshrl.u32 %v4295, 16
        %v4484 = vshll.u32 %v4295, 16
        %v4486 = vrot.slane %v4484, 1
        %v4487 = vor.u32 %v4482, %v4486
        %v4489 = vshll.u32 %v4296, 16
        %v4491 = vrot.slane %v4489, 1
        %v4492 = vsel %vm731, %v4487, %v4491
        %v4494 = vshrl.u32 %v4297, 16
        %v4496 = vshll.u32 %v4297, 16
        %v4498 = vrot.slane %v4496, 1
        %v4499 = vor.u32 %v4494, %v4498
        %v4501 = vshll.u32 %v4298, 16
        %v4503 = vrot.slane %v4501, 1
        %v4504 = vsel %vm731, %v4499, %v4503
        %v4506 = vshrl.u32 %v4299, 16
        %v4508 = vshll.u32 %v4299, 16
        %v4510 = vrot.slane %v4508, 1
        %v4511 = vor.u32 %v4506, %v4510
        %v4513 = vshll.u32 %v4300, 16
        %v4515 = vrot.slane %v4513, 1
        %v4516 = vsel %vm731, %v4511, %v4515
        %v4553 = vunpack.c.l.b16 %v4031
        %v4554 = vunpack.c.l.b16 %v4032
        %v4555 = vunpack.c.l.b16 %v4033
        %v4556 = vunpack.c.l.b16 %v4034
        %v4557 = vunpack.c.l.b16 %v4035
        %v4558 = vunpack.c.l.b16 %v4036
        %v4559 = vunpack.c.l.b16 %v4037
        %v4560 = vunpack.c.l.b16 %v4038
        %v4561 = vunpack.c.l.b16 %v4039
        %v4562 = vunpack.c.l.b16 %v4040
        %v4563 = vunpack.c.l.b16 %v4041
        %v4564 = vunpack.c.l.b16 %v4042
        %v4565 = vunpack.c.l.b16 %v4043
        %v4566 = vunpack.c.l.b16 %v4044
        %v4567 = vunpack.c.l.b16 %v4045
        %v4568 = vunpack.c.l.b16 %v4046
        %v4569 = vunpack.c.l.b16 %v4047
        %v4570 = vunpack.c.l.b16 %v4048
        %v4571 = vpack.c.b16 %v4212, %v4553
        %v4572 = vpack.c.b16 %v4215, %v4554
        %v4573 = vpack.c.b16 %v4218, %v4555
        %v4574 = vpack.c.b16 %v4221, %v4556
        %v4575 = vpack.c.b16 %v4224, %v4557
        %v4576 = vpack.c.b16 %v4227, %v4558
        %v4577 = vpack.c.b16 %v4230, %v4559
        %v4578 = vpack.c.b16 %v4233, %v4560
        %v4579 = vpack.c.b16 %v4236, %v4561
        %v4580 = vpack.c.b16 %v4239, %v4562
        %v4581 = vpack.c.b16 %v4242, %v4563
        %v4582 = vpack.c.b16 %v4245, %v4564
        %v4583 = vpack.c.b16 %v4248, %v4565
        %v4584 = vpack.c.b16 %v4251, %v4566
        %v4585 = vpack.c.b16 %v4254, %v4567
        %v4586 = vpack.c.b16 %v4257, %v4568
        %v4587 = vpack.c.b16 %v4260, %v4569
        %v4588 = vpack.c.b16 %v4263, %v4570
        %v4589 = vrot.slane %v4571, 1
        %v4590 = vrot.slane %v4266, 1
        %v4591 = vsel %vm1092, %v4589, %v4590
        %v4592 = vrot.slane %v4572, 1
        %v4593 = vrot.slane %v4268, 1
        %v4594 = vsel %vm1092, %v4592, %v4593
        %v4595 = vrot.slane %v4573, 1
        %v4596 = vrot.slane %v4270, 1
        %v4597 = vsel %vm1092, %v4595, %v4596
        %v4598 = vrot.slane %v4574, 1
        %v4599 = vrot.slane %v4272, 1
        %v4600 = vsel %vm1092, %v4598, %v4599
        %v4601 = vrot.slane %v4575, 1
        %v4602 = vrot.slane %v4274, 1
        %v4603 = vsel %vm1092, %v4601, %v4602
        %v4604 = vrot.slane %v4576, 1
        %v4605 = vrot.slane %v4276, 1
        %v4606 = vsel %vm1092, %v4604, %v4605
        %v4607 = vrot.slane %v4577, 1
        %v4608 = vrot.slane %v4278, 1
        %v4609 = vsel %vm1092, %v4607, %v4608
        %v4610 = vrot.slane %v4578, 1
        %v4611 = vrot.slane %v4280, 1
        %v4612 = vsel %vm1092, %v4610, %v4611
        %v4613 = vrot.slane %v4579, 1
        %v4614 = vrot.slane %v4282, 1
        %v4615 = vsel %vm1092, %v4613, %v4614
        %v4616 = vrot.slane %v4580, 1
        %v4617 = vrot.slane %v4284, 1
        %v4618 = vsel %vm1092, %v4616, %v4617
        %v4619 = vrot.slane %v4581, 1
        %v4620 = vrot.slane %v4286, 1
        %v4621 = vsel %vm1092, %v4619, %v4620
        %v4622 = vrot.slane %v4582, 1
        %v4623 = vrot.slane %v4288, 1
        %v4624 = vsel %vm1092, %v4622, %v4623
        %v4625 = vrot.slane %v4583, 1
        %v4626 = vrot.slane %v4290, 1
        %v4627 = vsel %vm1092, %v4625, %v4626
        %v4628 = vrot.slane %v4584, 1
        %v4629 = vrot.slane %v4292, 1
        %v4630 = vsel %vm1092, %v4628, %v4629
        %v4631 = vrot.slane %v4585, 1
        %v4632 = vrot.slane %v4294, 1
        %v4633 = vsel %vm1092, %v4631, %v4632
        %v4634 = vrot.slane %v4586, 1
        %v4635 = vrot.slane %v4296, 1
        %v4636 = vsel %vm1092, %v4634, %v4635
        %v4637 = vrot.slane %v4587, 1
        %v4638 = vrot.slane %v4298, 1
        %v4639 = vsel %vm1092, %v4637, %v4638
        %v4640 = vrot.slane %v4588, 1
        %v4641 = vrot.slane %v4300, 1
        %v4642 = vsel %vm1092, %v4640, %v4641
        %v4661 = vld [vmem:[#allocation7] sm:$0xf]
        %v4662 = vld [vmem:[#allocation7 + $0x4] sm:$0xf]
        %v4663 = vld [vmem:[#allocation7 + $0x8] sm:$0xf]
        %v4664 = vld [vmem:[#allocation7 + $0xc] sm:$0xf]
        %v4665 = vld [vmem:[#allocation7 + $0x10] sm:$0xf]
        %v4666 = vld [vmem:[#allocation7 + $0x14] sm:$0xf]
        %v4667 = vld [vmem:[#allocation7 + $0x18] sm:$0xf]
        %v4668 = vld [vmem:[#allocation7 + $0x1c] sm:$0xf]
        %v4669 = vld [vmem:[#allocation7 + $0x20] sm:$0xf]
        %v4670 = vld [vmem:[#allocation7 + $0x24] sm:$0xf]
        %v4671 = vld [vmem:[#allocation7 + $0x28] sm:$0xf]
        %v4672 = vld [vmem:[#allocation7 + $0x2c] sm:$0xf]
        %v4673 = vld [vmem:[#allocation7 + $0x30] sm:$0xf]
        %v4674 = vld [vmem:[#allocation7 + $0x34] sm:$0xf]
        %v4675 = vld [vmem:[#allocation7 + $0x38] sm:$0xf]
        %v4676 = vld [vmem:[#allocation7 + $0x3c] sm:$0xf]
        %v4677 = vld [vmem:[#allocation7 + $0x40] sm:$0xf]
        %v4678 = vld [vmem:[#allocation7 + $0x44] sm:$0xf]
        %v4679 = vld [vmem:[#allocation7 + $0x48] sm:$0xf]
        %v4680 = vld [vmem:[#allocation7 + $0x4c] sm:$0xf]
        %v4681 = vld [vmem:[#allocation7 + $0x50] sm:$0xf]
        %v4682 = vld [vmem:[#allocation7 + $0x54] sm:$0xf]
        %v4683 = vld [vmem:[#allocation7 + $0x58] sm:$0xf]
        %v4684 = vld [vmem:[#allocation7 + $0x5c] sm:$0xf]
        %v4685 = vld [vmem:[#allocation7 + $0x60] sm:$0xf]
        %v4686 = vld [vmem:[#allocation7 + $0x64] sm:$0xf]
        %v4687 = vld [vmem:[#allocation7 + $0x68] sm:$0xf]
        %v4688 = vld [vmem:[#allocation7 + $0x6c] sm:$0xf]
        %v4689 = vld [vmem:[#allocation7 + $0x70] sm:$0xf]
        %v4690 = vld [vmem:[#allocation7 + $0x74] sm:$0xf]
        %v4691 = vld [vmem:[#allocation7 + $0x78] sm:$0xf]
        %v4692 = vld [vmem:[#allocation7 + $0x7c] sm:$0xf]
        %v4693 = vld [vmem:[#allocation7 + $0x80] sm:$0xf]
        %v4694 = vld [vmem:[#allocation7 + $0x84] sm:$0xf]
        %v4695 = vld [vmem:[#allocation7 + $0x88] sm:$0xf]
        %v4696 = vld [vmem:[#allocation7 + $0x8c] sm:$0xf]
        %v4697 = vld [vmem:[#allocation7 + $0x90] sm:$0xf]
        %v4698 = vld [vmem:[#allocation7 + $0x94] sm:$0xf]
        %v4699 = vld [vmem:[#allocation7 + $0x98] sm:$0xf]
        %v4700 = vld [vmem:[#allocation7 + $0x9c] sm:$0xf]
        %v4701 = vld [vmem:[#allocation7 + $0xa0] sm:$0xf]
        %v4702 = vld [vmem:[#allocation7 + $0xa4] sm:$0xf]
        %v4703 = vld [vmem:[#allocation7 + $0xa8] sm:$0xf]
        %v4704 = vld [vmem:[#allocation7 + $0xac] sm:$0xf]
        %v4705 = vld [vmem:[#allocation7 + $0xb0] sm:$0xf]
        %v4706 = vld [vmem:[#allocation7 + $0xb4] sm:$0xf]
        %v4707 = vld [vmem:[#allocation7 + $0xb8] sm:$0xf]
        %v4708 = vld [vmem:[#allocation7 + $0xbc] sm:$0xf]
        %s4709 = scalar_lea.vmem [#allocation7], 192
        %v4710 = vld [vmem:[%s4709] sm:$0xf]
        %v4711 = vld [vmem:[%s4709 + $0x4] sm:$0xf]
        %v4712 = vld [vmem:[%s4709 + $0x8] sm:$0xf]
        %v4713 = vld [vmem:[%s4709 + $0xc] sm:$0xf]
        %v4714 = vld [vmem:[%s4709 + $0x10] sm:$0xf]
        %v4715 = vld [vmem:[%s4709 + $0x14] sm:$0xf]
        %v4716 = vld [vmem:[%s4709 + $0x18] sm:$0xf]
        %v4717 = vld [vmem:[%s4709 + $0x1c] sm:$0xf]
        %v4718 = vld [vmem:[%s4709 + $0x20] sm:$0xf]
        %v4719 = vld [vmem:[%s4709 + $0x24] sm:$0xf]
        %v4720 = vld [vmem:[%s4709 + $0x28] sm:$0xf]
        %v4721 = vld [vmem:[%s4709 + $0x2c] sm:$0xf]
        %v4722 = vld [vmem:[%s4709 + $0x30] sm:$0xf]
        %v4723 = vld [vmem:[%s4709 + $0x34] sm:$0xf]
        %v4724 = vld [vmem:[%s4709 + $0x38] sm:$0xf]
        %v4725 = vld [vmem:[%s4709 + $0x3c] sm:$0xf]
        %v4726 = vld [vmem:[%s4709 + $0x40] sm:$0xf]
        %v4727 = vld [vmem:[%s4709 + $0x44] sm:$0xf]
        %v4728 = vld [vmem:[%s4709 + $0x48] sm:$0xf]
        %v4729 = vld [vmem:[%s4709 + $0x4c] sm:$0xf]
        %v4730 = vld [vmem:[%s4709 + $0x50] sm:$0xf]
        %v4731 = vld [vmem:[%s4709 + $0x54] sm:$0xf]
        %v4732 = vld [vmem:[%s4709 + $0x58] sm:$0xf]
        %v4733 = vld [vmem:[%s4709 + $0x5c] sm:$0xf]
        %v4734 = vld [vmem:[%s4709 + $0x60] sm:$0xf]
        %v4735 = vld [vmem:[%s4709 + $0x64] sm:$0xf]
        %v4736 = vld [vmem:[%s4709 + $0x68] sm:$0xf]
        %v4737 = vld [vmem:[%s4709 + $0x6c] sm:$0xf]
        %v4738 = vld [vmem:[%s4709 + $0x70] sm:$0xf]
        %v4739 = vld [vmem:[%s4709 + $0x74] sm:$0xf]
        %v4740 = vld [vmem:[%s4709 + $0x78] sm:$0xf]
        %v4741 = vld [vmem:[%s4709 + $0x7c] sm:$0xf]
        %v4742 = vld [vmem:[%s4709 + $0x80] sm:$0xf]
        %v4743 = vld [vmem:[%s4709 + $0x84] sm:$0xf]
        %v4744 = vld [vmem:[%s4709 + $0x88] sm:$0xf]
        %v4745 = vld [vmem:[%s4709 + $0x8c] sm:$0xf]
        %v4746 = vld [vmem:[%s4709 + $0x90] sm:$0xf]
        %v4747 = vld [vmem:[%s4709 + $0x94] sm:$0xf]
        %v4748 = vld [vmem:[%s4709 + $0x98] sm:$0xf]
        %v4749 = vld [vmem:[%s4709 + $0x9c] sm:$0xf]
        %v4750 = vld [vmem:[%s4709 + $0xa0] sm:$0xf]
        %v4751 = vld [vmem:[%s4709 + $0xa4] sm:$0xf]
        %v4752 = vld [vmem:[%s4709 + $0xa8] sm:$0xf]
        %v4753 = vld [vmem:[%s4709 + $0xac] sm:$0xf]
        %v4754 = vld [vmem:[%s4709 + $0xb0] sm:$0xf]
        %v4755 = vld [vmem:[%s4709 + $0xb4] sm:$0xf]
        %v4756 = vld [vmem:[%s4709 + $0xb8] sm:$0xf]
        %v4757 = vld [vmem:[%s4709 + $0xbc] sm:$0xf]
        %v4806 = vunpack.c.l.b16 %v4710
        %v4807 = vunpack.c.l.b16 %v4711
        %v4808 = vunpack.c.l.b16 %v4712
        %v4809 = vunpack.c.l.b16 %v4713
        %v4810 = vunpack.c.l.b16 %v4714
        %v4811 = vunpack.c.l.b16 %v4715
        %v4812 = vunpack.c.l.b16 %v4716
        %v4813 = vunpack.c.l.b16 %v4717
        %v4814 = vunpack.c.l.b16 %v4718
        %v4815 = vunpack.c.l.b16 %v4719
        %v4816 = vunpack.c.l.b16 %v4720
        %v4817 = vunpack.c.l.b16 %v4721
        %v4818 = vunpack.c.l.b16 %v4722
        %v4819 = vunpack.c.l.b16 %v4723
        %v4820 = vunpack.c.l.b16 %v4724
        %v4821 = vunpack.c.l.b16 %v4725
        %v4822 = vunpack.c.l.b16 %v4726
        %v4823 = vunpack.c.l.b16 %v4727
        %v4824 = vunpack.c.l.b16 %v4728
        %v4825 = vunpack.c.l.b16 %v4729
        %v4826 = vunpack.c.l.b16 %v4730
        %v4827 = vunpack.c.l.b16 %v4731
        %v4828 = vunpack.c.l.b16 %v4732
        %v4829 = vunpack.c.l.b16 %v4733
        %v4830 = vunpack.c.l.b16 %v4734
        %v4831 = vunpack.c.l.b16 %v4735
        %v4832 = vunpack.c.l.b16 %v4736
        %v4833 = vunpack.c.l.b16 %v4737
        %v4834 = vunpack.c.l.b16 %v4738
        %v4835 = vunpack.c.l.b16 %v4739
        %v4836 = vunpack.c.l.b16 %v4740
        %v4837 = vunpack.c.l.b16 %v4741
        %v4838 = vunpack.c.l.b16 %v4742
        %v4839 = vunpack.c.l.b16 %v4743
        %v4840 = vunpack.c.l.b16 %v4744
        %v4841 = vunpack.c.l.b16 %v4745
        %v4842 = vunpack.c.l.b16 %v4746
        %v4843 = vunpack.c.l.b16 %v4747
        %v4844 = vunpack.c.l.b16 %v4748
        %v4845 = vunpack.c.l.b16 %v4749
        %v4846 = vunpack.c.l.b16 %v4750
        %v4847 = vunpack.c.l.b16 %v4751
        %v4848 = vunpack.c.l.b16 %v4752
        %v4849 = vunpack.c.l.b16 %v4753
        %v4850 = vunpack.c.l.b16 %v4754
        %v4851 = vunpack.c.l.b16 %v4755
        %v4852 = vunpack.c.l.b16 %v4756
        %v4853 = vunpack.c.l.b16 %v4757
        %v4854 = vpack.c.b16 %v4807, %v4806
        %v4855 = vpack.c.b16 %v4809, %v4808
        %v4856 = vpack.c.b16 %v4811, %v4810
        %v4857 = vpack.c.b16 %v4813, %v4812
        %v4858 = vpack.c.b16 %v4815, %v4814
        %v4859 = vpack.c.b16 %v4817, %v4816
        %v4860 = vpack.c.b16 %v4819, %v4818
        %v4861 = vpack.c.b16 %v4821, %v4820
        %v4862 = vpack.c.b16 %v4823, %v4822
        %v4863 = vpack.c.b16 %v4825, %v4824
        %v4864 = vpack.c.b16 %v4827, %v4826
        %v4865 = vpack.c.b16 %v4829, %v4828
        %v4866 = vpack.c.b16 %v4831, %v4830
        %v4867 = vpack.c.b16 %v4833, %v4832
        %v4868 = vpack.c.b16 %v4835, %v4834
        %v4869 = vpack.c.b16 %v4837, %v4836
        %v4870 = vpack.c.b16 %v4839, %v4838
        %v4871 = vpack.c.b16 %v4841, %v4840
        %v4872 = vpack.c.b16 %v4843, %v4842
        %v4873 = vpack.c.b16 %v4845, %v4844
        %v4874 = vpack.c.b16 %v4847, %v4846
        %v4875 = vpack.c.b16 %v4849, %v4848
        %v4876 = vpack.c.b16 %v4851, %v4850
        %v4877 = vpack.c.b16 %v4853, %v4852
        %4902 = vmatpush.bf16.msra.mxu0 %v4861
        %4903 = vmatpush.bf16.msra.mxu0 %v4860
        %4904 = vmatpush.bf16.msra.mxu0 %v4859
        %4905 = vmatpush.bf16.msra.mxu0 %v4858
        %4906 = vmatpush.bf16.msra.mxu0 %v4857
        %4907 = vmatpush.bf16.msra.mxu0 %v4856
        %4908 = vmatpush.bf16.msra.mxu0 %v4855
        %4909 = vmatpush.bf16.msra.mxu0 %v4854
        %4910 = vmatmul.bf16.gmra.mxu0 %v4122
        %v4911 = vpop.f32.mrf.mxu0
        %v4912 = vadd.f32 0.0, %v4911
        %v4913 = vpop.f32.mrf.mxu0
        %v4914 = vadd.f32 0.0, %v4913
        %4915 = vmatmul.bf16.gmra.mxu0 %v4123
        %v4916 = vpop.f32.mrf.mxu0
        %v4917 = vadd.f32 0.0, %v4916
        %v4918 = vpop.f32.mrf.mxu0
        %v4919 = vadd.f32 0.0, %v4918
        %4920 = vmatmul.bf16.gmra.mxu0 %v4124
        %v4921 = vpop.f32.mrf.mxu0
        %v4922 = vadd.f32 0.0, %v4921
        %v4923 = vpop.f32.mrf.mxu0
        %v4924 = vadd.f32 0.0, %v4923
        %4925 = vmatmul.bf16.gmra.mxu0 %v4125
        %v4926 = vpop.f32.mrf.mxu0
        %v4927 = vadd.f32 0.0, %v4926
        %v4928 = vpop.f32.mrf.mxu0
        %v4929 = vadd.f32 0.0, %v4928
        %4930 = vmatmul.bf16.gmra.mxu0 %v4126
        %v4931 = vpop.f32.mrf.mxu0
        %v4932 = vadd.f32 0.0, %v4931
        %v4933 = vpop.f32.mrf.mxu0
        %v4934 = vadd.f32 0.0, %v4933
        %4935 = vmatmul.bf16.gmra.mxu0 %v4127
        %v4936 = vpop.f32.mrf.mxu0
        %v4937 = vadd.f32 0.0, %v4936
        %v4938 = vpop.f32.mrf.mxu0
        %v4939 = vadd.f32 0.0, %v4938
        %4940 = vmatmul.bf16.gmra.mxu0 %v4128
        %v4941 = vpop.f32.mrf.mxu0
        %v4942 = vadd.f32 0.0, %v4941
        %v4943 = vpop.f32.mrf.mxu0
        %v4944 = vadd.f32 0.0, %v4943
        %4945 = vmatmul.bf16.gmra.mxu0 %v4129
        %v4946 = vpop.f32.mrf.mxu0
        %v4947 = vadd.f32 0.0, %v4946
        %v4948 = vpop.f32.mrf.mxu0
        %v4949 = vadd.f32 0.0, %v4948
        %4950 = vmatmul.bf16.gmra.mxu0 %v4130
        %v4951 = vpop.f32.mrf.mxu0
        %v4952 = vadd.f32 0.0, %v4951
        %v4953 = vpop.f32.mrf.mxu0
        %v4954 = vadd.f32 0.0, %v4953
        %4955 = vmatmul.bf16.gmra.mxu0 %v4131
        %v4956 = vpop.f32.mrf.mxu0
        %v4957 = vadd.f32 0.0, %v4956
        %v4958 = vpop.f32.mrf.mxu0
        %v4959 = vadd.f32 0.0, %v4958
        %4960 = vmatmul.bf16.gmra.mxu0 %v4132
        %v4961 = vpop.f32.mrf.mxu0
        %v4962 = vadd.f32 0.0, %v4961
        %v4963 = vpop.f32.mrf.mxu0
        %v4964 = vadd.f32 0.0, %v4963
        %4965 = vmatmul.bf16.gmra.mxu0 %v4133
        %v4966 = vpop.f32.mrf.mxu0
        %v4967 = vadd.f32 0.0, %v4966
        %v4968 = vpop.f32.mrf.mxu0
        %v4969 = vadd.f32 0.0, %v4968
        %4970 = vmatmul.bf16.gmra.mxu0 %v4134
        %v4971 = vpop.f32.mrf.mxu0
        %v4972 = vadd.f32 0.0, %v4971
        %v4973 = vpop.f32.mrf.mxu0
        %v4974 = vadd.f32 0.0, %v4973
        %4975 = vmatmul.bf16.gmra.mxu0 %v4135
        %v4976 = vpop.f32.mrf.mxu0
        %v4977 = vadd.f32 0.0, %v4976
        %v4978 = vpop.f32.mrf.mxu0
        %v4979 = vadd.f32 0.0, %v4978
        %4980 = vmatmul.bf16.gmra.mxu0 %v4136
        %v4981 = vpop.f32.mrf.mxu0
        %v4982 = vadd.f32 0.0, %v4981
        %v4983 = vpop.f32.mrf.mxu0
        %v4984 = vadd.f32 0.0, %v4983
        %4985 = vmatmul.bf16.gmra.mxu0 %v4137
        %v4986 = vpop.f32.mrf.mxu0
        %v4987 = vadd.f32 0.0, %v4986
        %v4988 = vpop.f32.mrf.mxu0
        %v4989 = vadd.f32 0.0, %v4988
        %4990 = vdwg.mxu0
        %4991 = vmatpush.bf16.msra.mxu0 %v4869
        %4992 = vmatpush.bf16.msra.mxu0 %v4868
        %4993 = vmatpush.bf16.msra.mxu0 %v4867
        %4994 = vmatpush.bf16.msra.mxu0 %v4866
        %4995 = vmatpush.bf16.msra.mxu0 %v4865
        %4996 = vmatpush.bf16.msra.mxu0 %v4864
        %4997 = vmatpush.bf16.msra.mxu0 %v4863
        %4998 = vmatpush.bf16.msra.mxu0 %v4862
        %4999 = vmatmul.bf16.gmra.mxu0 %v4324
        %v5000 = vpop.f32.mrf.mxu0
        %v5001 = vadd.f32 %v4912, %v5000
        %v5002 = vpop.f32.mrf.mxu0
        %v5003 = vadd.f32 %v4914, %v5002
        %5004 = vmatmul.bf16.gmra.mxu0 %v4336
        %v5005 = vpop.f32.mrf.mxu0
        %v5006 = vadd.f32 %v4917, %v5005
        %v5007 = vpop.f32.mrf.mxu0
        %v5008 = vadd.f32 %v4919, %v5007
        %5009 = vmatmul.bf16.gmra.mxu0 %v4348
        %v5010 = vpop.f32.mrf.mxu0
        %v5011 = vadd.f32 %v4922, %v5010
        %v5012 = vpop.f32.mrf.mxu0
        %v5013 = vadd.f32 %v4924, %v5012
        %5014 = vmatmul.bf16.gmra.mxu0 %v4360
        %v5015 = vpop.f32.mrf.mxu0
        %v5016 = vadd.f32 %v4927, %v5015
        %v5017 = vpop.f32.mrf.mxu0
        %v5018 = vadd.f32 %v4929, %v5017
        %5019 = vmatmul.bf16.gmra.mxu0 %v4372
        %v5020 = vpop.f32.mrf.mxu0
        %v5021 = vadd.f32 %v4932, %v5020
        %v5022 = vpop.f32.mrf.mxu0
        %v5023 = vadd.f32 %v4934, %v5022
        %5024 = vmatmul.bf16.gmra.mxu0 %v4384
        %v5025 = vpop.f32.mrf.mxu0
        %v5026 = vadd.f32 %v4937, %v5025
        %v5027 = vpop.f32.mrf.mxu0
        %v5028 = vadd.f32 %v4939, %v5027
        %5029 = vmatmul.bf16.gmra.mxu0 %v4396
        %v5030 = vpop.f32.mrf.mxu0
        %v5031 = vadd.f32 %v4942, %v5030
        %v5032 = vpop.f32.mrf.mxu0
        %v5033 = vadd.f32 %v4944, %v5032
        %5034 = vmatmul.bf16.gmra.mxu0 %v4408
        %v5035 = vpop.f32.mrf.mxu0
        %v5036 = vadd.f32 %v4947, %v5035
        %v5037 = vpop.f32.mrf.mxu0
        %v5038 = vadd.f32 %v4949, %v5037
        %5039 = vmatmul.bf16.gmra.mxu0 %v4420
        %v5040 = vpop.f32.mrf.mxu0
        %v5041 = vadd.f32 %v4952, %v5040
        %v5042 = vpop.f32.mrf.mxu0
        %v5043 = vadd.f32 %v4954, %v5042
        %5044 = vmatmul.bf16.gmra.mxu0 %v4432
        %v5045 = vpop.f32.mrf.mxu0
        %v5046 = vadd.f32 %v4957, %v5045
        %v5047 = vpop.f32.mrf.mxu0
        %v5048 = vadd.f32 %v4959, %v5047
        %5049 = vmatmul.bf16.gmra.mxu0 %v4444
        %v5050 = vpop.f32.mrf.mxu0
        %v5051 = vadd.f32 %v4962, %v5050
        %v5052 = vpop.f32.mrf.mxu0
        %v5053 = vadd.f32 %v4964, %v5052
        %5054 = vmatmul.bf16.gmra.mxu0 %v4456
        %v5055 = vpop.f32.mrf.mxu0
        %v5056 = vadd.f32 %v4967, %v5055
        %v5057 = vpop.f32.mrf.mxu0
        %v5058 = vadd.f32 %v4969, %v5057
        %5059 = vmatmul.bf16.gmra.mxu0 %v4468
        %v5060 = vpop.f32.mrf.mxu0
        %v5061 = vadd.f32 %v4972, %v5060
        %v5062 = vpop.f32.mrf.mxu0
        %v5063 = vadd.f32 %v4974, %v5062
        %5064 = vmatmul.bf16.gmra.mxu0 %v4480
        %v5065 = vpop.f32.mrf.mxu0
        %v5066 = vadd.f32 %v4977, %v5065
        %v5067 = vpop.f32.mrf.mxu0
        %v5068 = vadd.f32 %v4979, %v5067
        %5069 = vmatmul.bf16.gmra.mxu0 %v4492
        %v5070 = vpop.f32.mrf.mxu0
        %v5071 = vadd.f32 %v4982, %v5070
        %v5072 = vpop.f32.mrf.mxu0
        %v5073 = vadd.f32 %v4984, %v5072
        %5074 = vmatmul.bf16.gmra.mxu0 %v4504
        %v5075 = vpop.f32.mrf.mxu0
        %v5076 = vadd.f32 %v4987, %v5075
        %v5077 = vpop.f32.mrf.mxu0
        %v5078 = vadd.f32 %v4989, %v5077
        %5079 = vdwg.mxu0
        %5080 = vmatpush.bf16.msra.mxu0 %v4877
        %5081 = vmatpush.bf16.msra.mxu0 %v4876
        %5082 = vmatpush.bf16.msra.mxu0 %v4875
        %5083 = vmatpush.bf16.msra.mxu0 %v4874
        %5084 = vmatpush.bf16.msra.mxu0 %v4873
        %5085 = vmatpush.bf16.msra.mxu0 %v4872
        %5086 = vmatpush.bf16.msra.mxu0 %v4871
        %5087 = vmatpush.bf16.msra.mxu0 %v4870
        %5088 = vmatmul.bf16.gmra.mxu0 %v4594
        %v5089 = vpop.f32.mrf.mxu0
        %v5090 = vadd.f32 %v5001, %v5089
        %v5091 = vpop.f32.mrf.mxu0
        %v5092 = vadd.f32 %v5003, %v5091
        %5093 = vmatmul.bf16.gmra.mxu0 %v4597
        %v5094 = vpop.f32.mrf.mxu0
        %v5095 = vadd.f32 %v5006, %v5094
        %v5096 = vpop.f32.mrf.mxu0
        %v5097 = vadd.f32 %v5008, %v5096
        %5098 = vmatmul.bf16.gmra.mxu0 %v4600
        %v5099 = vpop.f32.mrf.mxu0
        %v5100 = vadd.f32 %v5011, %v5099
        %v5101 = vpop.f32.mrf.mxu0
        %v5102 = vadd.f32 %v5013, %v5101
        %5103 = vmatmul.bf16.gmra.mxu0 %v4603
        %v5104 = vpop.f32.mrf.mxu0
        %v5105 = vadd.f32 %v5016, %v5104
        %v5106 = vpop.f32.mrf.mxu0
        %v5107 = vadd.f32 %v5018, %v5106
        %5108 = vmatmul.bf16.gmra.mxu0 %v4606
        %v5109 = vpop.f32.mrf.mxu0
        %v5110 = vadd.f32 %v5021, %v5109
        %v5111 = vpop.f32.mrf.mxu0
        %v5112 = vadd.f32 %v5023, %v5111
        %5113 = vmatmul.bf16.gmra.mxu0 %v4609
        %v5114 = vpop.f32.mrf.mxu0
        %v5115 = vadd.f32 %v5026, %v5114
        %v5116 = vpop.f32.mrf.mxu0
        %v5117 = vadd.f32 %v5028, %v5116
        %5118 = vmatmul.bf16.gmra.mxu0 %v4612
        %v5119 = vpop.f32.mrf.mxu0
        %v5120 = vadd.f32 %v5031, %v5119
        %v5121 = vpop.f32.mrf.mxu0
        %v5122 = vadd.f32 %v5033, %v5121
        %5123 = vmatmul.bf16.gmra.mxu0 %v4615
        %v5124 = vpop.f32.mrf.mxu0
        %v5125 = vadd.f32 %v5036, %v5124
        %v5126 = vpop.f32.mrf.mxu0
        %v5127 = vadd.f32 %v5038, %v5126
        %5128 = vmatmul.bf16.gmra.mxu0 %v4618
        %v5129 = vpop.f32.mrf.mxu0
        %v5130 = vadd.f32 %v5041, %v5129
        %v5131 = vpop.f32.mrf.mxu0
        %v5132 = vadd.f32 %v5043, %v5131
        %5133 = vmatmul.bf16.gmra.mxu0 %v4621
        %v5134 = vpop.f32.mrf.mxu0
        %v5135 = vadd.f32 %v5046, %v5134
        %v5136 = vpop.f32.mrf.mxu0
        %v5137 = vadd.f32 %v5048, %v5136
        %5138 = vmatmul.bf16.gmra.mxu0 %v4624
        %v5139 = vpop.f32.mrf.mxu0
        %v5140 = vadd.f32 %v5051, %v5139
        %v5141 = vpop.f32.mrf.mxu0
        %v5142 = vadd.f32 %v5053, %v5141
        %5143 = vmatmul.bf16.gmra.mxu0 %v4627
        %v5144 = vpop.f32.mrf.mxu0
        %v5145 = vadd.f32 %v5056, %v5144
        %v5146 = vpop.f32.mrf.mxu0
        %v5147 = vadd.f32 %v5058, %v5146
        %5148 = vmatmul.bf16.gmra.mxu0 %v4630
        %v5149 = vpop.f32.mrf.mxu0
        %v5150 = vadd.f32 %v5061, %v5149
        %v5151 = vpop.f32.mrf.mxu0
        %v5152 = vadd.f32 %v5063, %v5151
        %5153 = vmatmul.bf16.gmra.mxu0 %v4633
        %v5154 = vpop.f32.mrf.mxu0
        %v5155 = vadd.f32 %v5066, %v5154
        %v5156 = vpop.f32.mrf.mxu0
        %v5157 = vadd.f32 %v5068, %v5156
        %5158 = vmatmul.bf16.gmra.mxu0 %v4636
        %v5159 = vpop.f32.mrf.mxu0
        %v5160 = vadd.f32 %v5071, %v5159
        %v5161 = vpop.f32.mrf.mxu0
        %v5162 = vadd.f32 %v5073, %v5161
        %5163 = vmatmul.bf16.gmra.mxu0 %v4639
        %v5164 = vpop.f32.mrf.mxu0
        %v5165 = vadd.f32 %v5076, %v5164
        %v5166 = vpop.f32.mrf.mxu0
        %v5167 = vadd.f32 %v5078, %v5166
        %5168 = vdwg.mxu0
        %v5217 = vunpack.c.l.b16 %v4661
        %v5218 = vunpack.c.l.b16 %v4662
        %v5219 = vunpack.c.l.b16 %v4663
        %v5220 = vunpack.c.l.b16 %v4664
        %v5221 = vunpack.c.l.b16 %v4665
        %v5222 = vunpack.c.l.b16 %v4666
        %v5223 = vunpack.c.l.b16 %v4667
        %v5224 = vunpack.c.l.b16 %v4668
        %v5225 = vunpack.c.l.b16 %v4669
        %v5226 = vunpack.c.l.b16 %v4670
        %v5227 = vunpack.c.l.b16 %v4671
        %v5228 = vunpack.c.l.b16 %v4672
        %v5229 = vunpack.c.l.b16 %v4673
        %v5230 = vunpack.c.l.b16 %v4674
        %v5231 = vunpack.c.l.b16 %v4675
        %v5232 = vunpack.c.l.b16 %v4676
        %v5233 = vunpack.c.l.b16 %v4677
        %v5234 = vunpack.c.l.b16 %v4678
        %v5235 = vunpack.c.l.b16 %v4679
        %v5236 = vunpack.c.l.b16 %v4680
        %v5237 = vunpack.c.l.b16 %v4681
        %v5238 = vunpack.c.l.b16 %v4682
        %v5239 = vunpack.c.l.b16 %v4683
        %v5240 = vunpack.c.l.b16 %v4684
        %v5241 = vunpack.c.l.b16 %v4685
        %v5242 = vunpack.c.l.b16 %v4686
        %v5243 = vunpack.c.l.b16 %v4687
        %v5244 = vunpack.c.l.b16 %v4688
        %v5245 = vunpack.c.l.b16 %v4689
        %v5246 = vunpack.c.l.b16 %v4690
        %v5247 = vunpack.c.l.b16 %v4691
        %v5248 = vunpack.c.l.b16 %v4692
        %v5249 = vunpack.c.l.b16 %v4693
        %v5250 = vunpack.c.l.b16 %v4694
        %v5251 = vunpack.c.l.b16 %v4695
        %v5252 = vunpack.c.l.b16 %v4696
        %v5253 = vunpack.c.l.b16 %v4697
        %v5254 = vunpack.c.l.b16 %v4698
        %v5255 = vunpack.c.l.b16 %v4699
        %v5256 = vunpack.c.l.b16 %v4700
        %v5257 = vunpack.c.l.b16 %v4701
        %v5258 = vunpack.c.l.b16 %v4702
        %v5259 = vunpack.c.l.b16 %v4703
        %v5260 = vunpack.c.l.b16 %v4704
        %v5261 = vunpack.c.l.b16 %v4705
        %v5262 = vunpack.c.l.b16 %v4706
        %v5263 = vunpack.c.l.b16 %v4707
        %v5264 = vunpack.c.l.b16 %v4708
        %v5265 = vpack.c.b16 %v5218, %v5217
        %v5266 = vpack.c.b16 %v5220, %v5219
        %v5267 = vpack.c.b16 %v5222, %v5221
        %v5268 = vpack.c.b16 %v5224, %v5223
        %v5269 = vpack.c.b16 %v5226, %v5225
        %v5270 = vpack.c.b16 %v5228, %v5227
        %v5271 = vpack.c.b16 %v5230, %v5229
        %v5272 = vpack.c.b16 %v5232, %v5231
        %v5273 = vpack.c.b16 %v5234, %v5233
        %v5274 = vpack.c.b16 %v5236, %v5235
        %v5275 = vpack.c.b16 %v5238, %v5237
        %v5276 = vpack.c.b16 %v5240, %v5239
        %v5277 = vpack.c.b16 %v5242, %v5241
        %v5278 = vpack.c.b16 %v5244, %v5243
        %v5279 = vpack.c.b16 %v5246, %v5245
        %v5280 = vpack.c.b16 %v5248, %v5247
        %v5281 = vpack.c.b16 %v5250, %v5249
        %v5282 = vpack.c.b16 %v5252, %v5251
        %v5283 = vpack.c.b16 %v5254, %v5253
        %v5284 = vpack.c.b16 %v5256, %v5255
        %v5285 = vpack.c.b16 %v5258, %v5257
        %v5286 = vpack.c.b16 %v5260, %v5259
        %v5287 = vpack.c.b16 %v5262, %v5261
        %v5288 = vpack.c.b16 %v5264, %v5263
        %5313 = vmatpush.bf16.msra.mxu0 %v5272
        %5314 = vmatpush.bf16.msra.mxu0 %v5271
        %5315 = vmatpush.bf16.msra.mxu0 %v5270
        %5316 = vmatpush.bf16.msra.mxu0 %v5269
        %5317 = vmatpush.bf16.msra.mxu0 %v5268
        %5318 = vmatpush.bf16.msra.mxu0 %v5267
        %5319 = vmatpush.bf16.msra.mxu0 %v5266
        %5320 = vmatpush.bf16.msra.mxu0 %v5265
        %5321 = vmatmul.bf16.gmra.mxu0 %v4121
        %v5322 = vpop.f32.mrf.mxu0
        %v5323 = vadd.f32 %v5090, %v5322
        %v5324 = vpop.f32.mrf.mxu0
        %v5325 = vadd.f32 %v5092, %v5324
        %5326 = vmatmul.bf16.gmra.mxu0 %v4122
        %v5327 = vpop.f32.mrf.mxu0
        %v5328 = vadd.f32 %v5095, %v5327
        %v5329 = vpop.f32.mrf.mxu0
        %v5330 = vadd.f32 %v5097, %v5329
        %5331 = vmatmul.bf16.gmra.mxu0 %v4123
        %v5332 = vpop.f32.mrf.mxu0
        %v5333 = vadd.f32 %v5100, %v5332
        %v5334 = vpop.f32.mrf.mxu0
        %v5335 = vadd.f32 %v5102, %v5334
        %5336 = vmatmul.bf16.gmra.mxu0 %v4124
        %v5337 = vpop.f32.mrf.mxu0
        %v5338 = vadd.f32 %v5105, %v5337
        %v5339 = vpop.f32.mrf.mxu0
        %v5340 = vadd.f32 %v5107, %v5339
        %5341 = vmatmul.bf16.gmra.mxu0 %v4125
        %v5342 = vpop.f32.mrf.mxu0
        %v5343 = vadd.f32 %v5110, %v5342
        %v5344 = vpop.f32.mrf.mxu0
        %v5345 = vadd.f32 %v5112, %v5344
        %5346 = vmatmul.bf16.gmra.mxu0 %v4126
        %v5347 = vpop.f32.mrf.mxu0
        %v5348 = vadd.f32 %v5115, %v5347
        %v5349 = vpop.f32.mrf.mxu0
        %v5350 = vadd.f32 %v5117, %v5349
        %5351 = vmatmul.bf16.gmra.mxu0 %v4127
        %v5352 = vpop.f32.mrf.mxu0
        %v5353 = vadd.f32 %v5120, %v5352
        %v5354 = vpop.f32.mrf.mxu0
        %v5355 = vadd.f32 %v5122, %v5354
        %5356 = vmatmul.bf16.gmra.mxu0 %v4128
        %v5357 = vpop.f32.mrf.mxu0
        %v5358 = vadd.f32 %v5125, %v5357
        %v5359 = vpop.f32.mrf.mxu0
        %v5360 = vadd.f32 %v5127, %v5359
        %5361 = vmatmul.bf16.gmra.mxu0 %v4129
        %v5362 = vpop.f32.mrf.mxu0
        %v5363 = vadd.f32 %v5130, %v5362
        %v5364 = vpop.f32.mrf.mxu0
        %v5365 = vadd.f32 %v5132, %v5364
        %5366 = vmatmul.bf16.gmra.mxu0 %v4130
        %v5367 = vpop.f32.mrf.mxu0
        %v5368 = vadd.f32 %v5135, %v5367
        %v5369 = vpop.f32.mrf.mxu0
        %v5370 = vadd.f32 %v5137, %v5369
        %5371 = vmatmul.bf16.gmra.mxu0 %v4131
        %v5372 = vpop.f32.mrf.mxu0
        %v5373 = vadd.f32 %v5140, %v5372
        %v5374 = vpop.f32.mrf.mxu0
        %v5375 = vadd.f32 %v5142, %v5374
        %5376 = vmatmul.bf16.gmra.mxu0 %v4132
        %v5377 = vpop.f32.mrf.mxu0
        %v5378 = vadd.f32 %v5145, %v5377
        %v5379 = vpop.f32.mrf.mxu0
        %v5380 = vadd.f32 %v5147, %v5379
        %5381 = vmatmul.bf16.gmra.mxu0 %v4133
        %v5382 = vpop.f32.mrf.mxu0
        %v5383 = vadd.f32 %v5150, %v5382
        %v5384 = vpop.f32.mrf.mxu0
        %v5385 = vadd.f32 %v5152, %v5384
        %5386 = vmatmul.bf16.gmra.mxu0 %v4134
        %v5387 = vpop.f32.mrf.mxu0
        %v5388 = vadd.f32 %v5155, %v5387
        %v5389 = vpop.f32.mrf.mxu0
        %v5390 = vadd.f32 %v5157, %v5389
        %5391 = vmatmul.bf16.gmra.mxu0 %v4135
        %v5392 = vpop.f32.mrf.mxu0
        %v5393 = vadd.f32 %v5160, %v5392
        %v5394 = vpop.f32.mrf.mxu0
        %v5395 = vadd.f32 %v5162, %v5394
        %5396 = vmatmul.bf16.gmra.mxu0 %v4136
        %v5397 = vpop.f32.mrf.mxu0
        %v5398 = vadd.f32 %v5165, %v5397
        %v5399 = vpop.f32.mrf.mxu0
        %v5400 = vadd.f32 %v5167, %v5399
        %5401 = vdwg.mxu0
        %5402 = vmatpush.bf16.msra.mxu0 %v5280
        %5403 = vmatpush.bf16.msra.mxu0 %v5279
        %5404 = vmatpush.bf16.msra.mxu0 %v5278
        %5405 = vmatpush.bf16.msra.mxu0 %v5277
        %5406 = vmatpush.bf16.msra.mxu0 %v5276
        %5407 = vmatpush.bf16.msra.mxu0 %v5275
        %5408 = vmatpush.bf16.msra.mxu0 %v5274
        %5409 = vmatpush.bf16.msra.mxu0 %v5273
        %5410 = vmatmul.bf16.gmra.mxu0 %v4312
        %v5411 = vpop.f32.mrf.mxu0
        %v5412 = vadd.f32 %v5323, %v5411
        %v5413 = vpop.f32.mrf.mxu0
        %v5414 = vadd.f32 %v5325, %v5413
        %5415 = vmatmul.bf16.gmra.mxu0 %v4324
        %v5416 = vpop.f32.mrf.mxu0
        %v5417 = vadd.f32 %v5328, %v5416
        %v5418 = vpop.f32.mrf.mxu0
        %v5419 = vadd.f32 %v5330, %v5418
        %5420 = vmatmul.bf16.gmra.mxu0 %v4336
        %v5421 = vpop.f32.mrf.mxu0
        %v5422 = vadd.f32 %v5333, %v5421
        %v5423 = vpop.f32.mrf.mxu0
        %v5424 = vadd.f32 %v5335, %v5423
        %5425 = vmatmul.bf16.gmra.mxu0 %v4348
        %v5426 = vpop.f32.mrf.mxu0
        %v5427 = vadd.f32 %v5338, %v5426
        %v5428 = vpop.f32.mrf.mxu0
        %v5429 = vadd.f32 %v5340, %v5428
        %5430 = vmatmul.bf16.gmra.mxu0 %v4360
        %v5431 = vpop.f32.mrf.mxu0
        %v5432 = vadd.f32 %v5343, %v5431
        %v5433 = vpop.f32.mrf.mxu0
        %v5434 = vadd.f32 %v5345, %v5433
        %5435 = vmatmul.bf16.gmra.mxu0 %v4372
        %v5436 = vpop.f32.mrf.mxu0
        %v5437 = vadd.f32 %v5348, %v5436
        %v5438 = vpop.f32.mrf.mxu0
        %v5439 = vadd.f32 %v5350, %v5438
        %5440 = vmatmul.bf16.gmra.mxu0 %v4384
        %v5441 = vpop.f32.mrf.mxu0
        %v5442 = vadd.f32 %v5353, %v5441
        %v5443 = vpop.f32.mrf.mxu0
        %v5444 = vadd.f32 %v5355, %v5443
        %5445 = vmatmul.bf16.gmra.mxu0 %v4396
        %v5446 = vpop.f32.mrf.mxu0
        %v5447 = vadd.f32 %v5358, %v5446
        %v5448 = vpop.f32.mrf.mxu0
        %v5449 = vadd.f32 %v5360, %v5448
        %5450 = vmatmul.bf16.gmra.mxu0 %v4408
        %v5451 = vpop.f32.mrf.mxu0
        %v5452 = vadd.f32 %v5363, %v5451
        %v5453 = vpop.f32.mrf.mxu0
        %v5454 = vadd.f32 %v5365, %v5453
        %5455 = vmatmul.bf16.gmra.mxu0 %v4420
        %v5456 = vpop.f32.mrf.mxu0
        %v5457 = vadd.f32 %v5368, %v5456
        %v5458 = vpop.f32.mrf.mxu0
        %v5459 = vadd.f32 %v5370, %v5458
        %5460 = vmatmul.bf16.gmra.mxu0 %v4432
        %v5461 = vpop.f32.mrf.mxu0
        %v5462 = vadd.f32 %v5373, %v5461
        %v5463 = vpop.f32.mrf.mxu0
        %v5464 = vadd.f32 %v5375, %v5463
        %5465 = vmatmul.bf16.gmra.mxu0 %v4444
        %v5466 = vpop.f32.mrf.mxu0
        %v5467 = vadd.f32 %v5378, %v5466
        %v5468 = vpop.f32.mrf.mxu0
        %v5469 = vadd.f32 %v5380, %v5468
        %5470 = vmatmul.bf16.gmra.mxu0 %v4456
        %v5471 = vpop.f32.mrf.mxu0
        %v5472 = vadd.f32 %v5383, %v5471
        %v5473 = vpop.f32.mrf.mxu0
        %v5474 = vadd.f32 %v5385, %v5473
        %5475 = vmatmul.bf16.gmra.mxu0 %v4468
        %v5476 = vpop.f32.mrf.mxu0
        %v5477 = vadd.f32 %v5388, %v5476
        %v5478 = vpop.f32.mrf.mxu0
        %v5479 = vadd.f32 %v5390, %v5478
        %5480 = vmatmul.bf16.gmra.mxu0 %v4480
        %v5481 = vpop.f32.mrf.mxu0
        %v5482 = vadd.f32 %v5393, %v5481
        %v5483 = vpop.f32.mrf.mxu0
        %v5484 = vadd.f32 %v5395, %v5483
        %5485 = vmatmul.bf16.gmra.mxu0 %v4492
        %v5486 = vpop.f32.mrf.mxu0
        %v5487 = vadd.f32 %v5398, %v5486
        %v5488 = vpop.f32.mrf.mxu0
        %v5489 = vadd.f32 %v5400, %v5488
        %5490 = vdwg.mxu0
        %5491 = vmatpush.bf16.msra.mxu0 %v5288
        %5492 = vmatpush.bf16.msra.mxu0 %v5287
        %5493 = vmatpush.bf16.msra.mxu0 %v5286
        %5494 = vmatpush.bf16.msra.mxu0 %v5285
        %5495 = vmatpush.bf16.msra.mxu0 %v5284
        %5496 = vmatpush.bf16.msra.mxu0 %v5283
        %5497 = vmatpush.bf16.msra.mxu0 %v5282
        %5498 = vmatpush.bf16.msra.mxu0 %v5281
        %5499 = vmatmul.bf16.gmra.mxu0 %v4591
        %v5500 = vpop.f32.mrf.mxu0
        %v5501 = vadd.f32 %v5412, %v5500
        %v5502 = vpop.f32.mrf.mxu0
        %v5503 = vadd.f32 %v5414, %v5502
        %5504 = vmatmul.bf16.gmra.mxu0 %v4594
        %v5505 = vpop.f32.mrf.mxu0
        %v5506 = vadd.f32 %v5417, %v5505
        %v5507 = vpop.f32.mrf.mxu0
        %v5508 = vadd.f32 %v5419, %v5507
        %5509 = vmatmul.bf16.gmra.mxu0 %v4597
        %v5510 = vpop.f32.mrf.mxu0
        %v5511 = vadd.f32 %v5422, %v5510
        %v5512 = vpop.f32.mrf.mxu0
        %v5513 = vadd.f32 %v5424, %v5512
        %5514 = vmatmul.bf16.gmra.mxu0 %v4600
        %v5515 = vpop.f32.mrf.mxu0
        %v5516 = vadd.f32 %v5427, %v5515
        %v5517 = vpop.f32.mrf.mxu0
        %v5518 = vadd.f32 %v5429, %v5517
        %5519 = vmatmul.bf16.gmra.mxu0 %v4603
        %v5520 = vpop.f32.mrf.mxu0
        %v5521 = vadd.f32 %v5432, %v5520
        %v5522 = vpop.f32.mrf.mxu0
        %v5523 = vadd.f32 %v5434, %v5522
        %5524 = vmatmul.bf16.gmra.mxu0 %v4606
        %v5525 = vpop.f32.mrf.mxu0
        %v5526 = vadd.f32 %v5437, %v5525
        %v5527 = vpop.f32.mrf.mxu0
        %v5528 = vadd.f32 %v5439, %v5527
        %5529 = vmatmul.bf16.gmra.mxu0 %v4609
        %v5530 = vpop.f32.mrf.mxu0
        %v5531 = vadd.f32 %v5442, %v5530
        %v5532 = vpop.f32.mrf.mxu0
        %v5533 = vadd.f32 %v5444, %v5532
        %5534 = vmatmul.bf16.gmra.mxu0 %v4612
        %v5535 = vpop.f32.mrf.mxu0
        %v5536 = vadd.f32 %v5447, %v5535
        %v5537 = vpop.f32.mrf.mxu0
        %v5538 = vadd.f32 %v5449, %v5537
        %5539 = vmatmul.bf16.gmra.mxu0 %v4615
        %v5540 = vpop.f32.mrf.mxu0
        %v5541 = vadd.f32 %v5452, %v5540
        %v5542 = vpop.f32.mrf.mxu0
        %v5543 = vadd.f32 %v5454, %v5542
        %5544 = vmatmul.bf16.gmra.mxu0 %v4618
        %v5545 = vpop.f32.mrf.mxu0
        %v5546 = vadd.f32 %v5457, %v5545
        %v5547 = vpop.f32.mrf.mxu0
        %v5548 = vadd.f32 %v5459, %v5547
        %5549 = vmatmul.bf16.gmra.mxu0 %v4621
        %v5550 = vpop.f32.mrf.mxu0
        %v5551 = vadd.f32 %v5462, %v5550
        %v5552 = vpop.f32.mrf.mxu0
        %v5553 = vadd.f32 %v5464, %v5552
        %5554 = vmatmul.bf16.gmra.mxu0 %v4624
        %v5555 = vpop.f32.mrf.mxu0
        %v5556 = vadd.f32 %v5467, %v5555
        %v5557 = vpop.f32.mrf.mxu0
        %v5558 = vadd.f32 %v5469, %v5557
        %5559 = vmatmul.bf16.gmra.mxu0 %v4627
        %v5560 = vpop.f32.mrf.mxu0
        %v5561 = vadd.f32 %v5472, %v5560
        %v5562 = vpop.f32.mrf.mxu0
        %v5563 = vadd.f32 %v5474, %v5562
        %5564 = vmatmul.bf16.gmra.mxu0 %v4630
        %v5565 = vpop.f32.mrf.mxu0
        %v5566 = vadd.f32 %v5477, %v5565
        %v5567 = vpop.f32.mrf.mxu0
        %v5568 = vadd.f32 %v5479, %v5567
        %5569 = vmatmul.bf16.gmra.mxu0 %v4633
        %v5570 = vpop.f32.mrf.mxu0
        %v5571 = vadd.f32 %v5482, %v5570
        %v5572 = vpop.f32.mrf.mxu0
        %v5573 = vadd.f32 %v5484, %v5572
        %5574 = vmatmul.bf16.gmra.mxu0 %v4636
        %v5575 = vpop.f32.mrf.mxu0
        %v5576 = vadd.f32 %v5487, %v5575
        %v5577 = vpop.f32.mrf.mxu0
        %v5578 = vadd.f32 %v5489, %v5577
        %5579 = vdwg.mxu0
        %s5580 = scalar_lea.vmem [#allocation7], 384
        %v5581 = vld [vmem:[%s5580] sm:$0xf]
        %v5582 = vld [vmem:[%s5580 + $0x4] sm:$0xf]
        %v5583 = vld [vmem:[%s5580 + $0x8] sm:$0xf]
        %v5584 = vld [vmem:[%s5580 + $0xc] sm:$0xf]
        %v5585 = vld [vmem:[%s5580 + $0x10] sm:$0xf]
        %v5586 = vld [vmem:[%s5580 + $0x14] sm:$0xf]
        %v5587 = vld [vmem:[%s5580 + $0x18] sm:$0xf]
        %v5588 = vld [vmem:[%s5580 + $0x1c] sm:$0xf]
        %v5589 = vld [vmem:[%s5580 + $0x20] sm:$0xf]
        %v5590 = vld [vmem:[%s5580 + $0x24] sm:$0xf]
        %v5591 = vld [vmem:[%s5580 + $0x28] sm:$0xf]
        %v5592 = vld [vmem:[%s5580 + $0x2c] sm:$0xf]
        %v5593 = vld [vmem:[%s5580 + $0x30] sm:$0xf]
        %v5594 = vld [vmem:[%s5580 + $0x34] sm:$0xf]
        %v5595 = vld [vmem:[%s5580 + $0x38] sm:$0xf]
        %v5596 = vld [vmem:[%s5580 + $0x3c] sm:$0xf]
        %v5597 = vld [vmem:[%s5580 + $0x40] sm:$0xf]
        %v5598 = vld [vmem:[%s5580 + $0x44] sm:$0xf]
        %v5599 = vld [vmem:[%s5580 + $0x48] sm:$0xf]
        %v5600 = vld [vmem:[%s5580 + $0x4c] sm:$0xf]
        %v5601 = vld [vmem:[%s5580 + $0x50] sm:$0xf]
        %v5602 = vld [vmem:[%s5580 + $0x54] sm:$0xf]
        %v5603 = vld [vmem:[%s5580 + $0x58] sm:$0xf]
        %v5604 = vld [vmem:[%s5580 + $0x5c] sm:$0xf]
        %v5605 = vld [vmem:[%s5580 + $0x60] sm:$0xf]
        %v5606 = vld [vmem:[%s5580 + $0x64] sm:$0xf]
        %v5607 = vld [vmem:[%s5580 + $0x68] sm:$0xf]
        %v5608 = vld [vmem:[%s5580 + $0x6c] sm:$0xf]
        %v5609 = vld [vmem:[%s5580 + $0x70] sm:$0xf]
        %v5610 = vld [vmem:[%s5580 + $0x74] sm:$0xf]
        %v5611 = vld [vmem:[%s5580 + $0x78] sm:$0xf]
        %v5612 = vld [vmem:[%s5580 + $0x7c] sm:$0xf]
        %v5613 = vld [vmem:[%s5580 + $0x80] sm:$0xf]
        %v5614 = vld [vmem:[%s5580 + $0x84] sm:$0xf]
        %v5615 = vld [vmem:[%s5580 + $0x88] sm:$0xf]
        %v5616 = vld [vmem:[%s5580 + $0x8c] sm:$0xf]
        %v5617 = vld [vmem:[%s5580 + $0x90] sm:$0xf]
        %v5618 = vld [vmem:[%s5580 + $0x94] sm:$0xf]
        %v5619 = vld [vmem:[%s5580 + $0x98] sm:$0xf]
        %v5620 = vld [vmem:[%s5580 + $0x9c] sm:$0xf]
        %v5621 = vld [vmem:[%s5580 + $0xa0] sm:$0xf]
        %v5622 = vld [vmem:[%s5580 + $0xa4] sm:$0xf]
        %v5623 = vld [vmem:[%s5580 + $0xa8] sm:$0xf]
        %v5624 = vld [vmem:[%s5580 + $0xac] sm:$0xf]
        %v5625 = vld [vmem:[%s5580 + $0xb0] sm:$0xf]
        %v5626 = vld [vmem:[%s5580 + $0xb4] sm:$0xf]
        %v5627 = vld [vmem:[%s5580 + $0xb8] sm:$0xf]
        %v5628 = vld [vmem:[%s5580 + $0xbc] sm:$0xf]
        %v5677 = vunpack.c.l.b16 %v5581
        %v5678 = vunpack.c.l.b16 %v5582
        %v5679 = vunpack.c.l.b16 %v5583
        %v5680 = vunpack.c.l.b16 %v5584
        %v5681 = vunpack.c.l.b16 %v5585
        %v5682 = vunpack.c.l.b16 %v5586
        %v5683 = vunpack.c.l.b16 %v5587
        %v5684 = vunpack.c.l.b16 %v5588
        %v5685 = vunpack.c.l.b16 %v5589
        %v5686 = vunpack.c.l.b16 %v5590
        %v5687 = vunpack.c.l.b16 %v5591
        %v5688 = vunpack.c.l.b16 %v5592
        %v5689 = vunpack.c.l.b16 %v5593
        %v5690 = vunpack.c.l.b16 %v5594
        %v5691 = vunpack.c.l.b16 %v5595
        %v5692 = vunpack.c.l.b16 %v5596
        %v5693 = vunpack.c.l.b16 %v5597
        %v5694 = vunpack.c.l.b16 %v5598
        %v5695 = vunpack.c.l.b16 %v5599
        %v5696 = vunpack.c.l.b16 %v5600
        %v5697 = vunpack.c.l.b16 %v5601
        %v5698 = vunpack.c.l.b16 %v5602
        %v5699 = vunpack.c.l.b16 %v5603
        %v5700 = vunpack.c.l.b16 %v5604
        %v5701 = vunpack.c.l.b16 %v5605
        %v5702 = vunpack.c.l.b16 %v5606
        %v5703 = vunpack.c.l.b16 %v5607
        %v5704 = vunpack.c.l.b16 %v5608
        %v5705 = vunpack.c.l.b16 %v5609
        %v5706 = vunpack.c.l.b16 %v5610
        %v5707 = vunpack.c.l.b16 %v5611
        %v5708 = vunpack.c.l.b16 %v5612
        %v5709 = vunpack.c.l.b16 %v5613
        %v5710 = vunpack.c.l.b16 %v5614
        %v5711 = vunpack.c.l.b16 %v5615
        %v5712 = vunpack.c.l.b16 %v5616
        %v5713 = vunpack.c.l.b16 %v5617
        %v5714 = vunpack.c.l.b16 %v5618
        %v5715 = vunpack.c.l.b16 %v5619
        %v5716 = vunpack.c.l.b16 %v5620
        %v5717 = vunpack.c.l.b16 %v5621
        %v5718 = vunpack.c.l.b16 %v5622
        %v5719 = vunpack.c.l.b16 %v5623
        %v5720 = vunpack.c.l.b16 %v5624
        %v5721 = vunpack.c.l.b16 %v5625
        %v5722 = vunpack.c.l.b16 %v5626
        %v5723 = vunpack.c.l.b16 %v5627
        %v5724 = vunpack.c.l.b16 %v5628
        %v5725 = vpack.c.b16 %v5678, %v5677
        %v5726 = vpack.c.b16 %v5680, %v5679
        %v5727 = vpack.c.b16 %v5682, %v5681
        %v5728 = vpack.c.b16 %v5684, %v5683
        %v5729 = vpack.c.b16 %v5686, %v5685
        %v5730 = vpack.c.b16 %v5688, %v5687
        %v5731 = vpack.c.b16 %v5690, %v5689
        %v5732 = vpack.c.b16 %v5692, %v5691
        %v5733 = vpack.c.b16 %v5694, %v5693
        %v5734 = vpack.c.b16 %v5696, %v5695
        %v5735 = vpack.c.b16 %v5698, %v5697
        %v5736 = vpack.c.b16 %v5700, %v5699
        %v5737 = vpack.c.b16 %v5702, %v5701
        %v5738 = vpack.c.b16 %v5704, %v5703
        %v5739 = vpack.c.b16 %v5706, %v5705
        %v5740 = vpack.c.b16 %v5708, %v5707
        %v5741 = vpack.c.b16 %v5710, %v5709
        %v5742 = vpack.c.b16 %v5712, %v5711
        %v5743 = vpack.c.b16 %v5714, %v5713
        %v5744 = vpack.c.b16 %v5716, %v5715
        %v5745 = vpack.c.b16 %v5718, %v5717
        %v5746 = vpack.c.b16 %v5720, %v5719
        %v5747 = vpack.c.b16 %v5722, %v5721
        %v5748 = vpack.c.b16 %v5724, %v5723
        %5773 = vmatpush.bf16.msra.mxu0 %v5732
        %5774 = vmatpush.bf16.msra.mxu0 %v5731
        %5775 = vmatpush.bf16.msra.mxu0 %v5730
        %5776 = vmatpush.bf16.msra.mxu0 %v5729
        %5777 = vmatpush.bf16.msra.mxu0 %v5728
        %5778 = vmatpush.bf16.msra.mxu0 %v5727
        %5779 = vmatpush.bf16.msra.mxu0 %v5726
        %5780 = vmatpush.bf16.msra.mxu0 %v5725
        %5781 = vmatmul.bf16.gmra.mxu0 %v4123
        %v5782 = vpop.f32.mrf.mxu0
        %v5783 = vadd.f32 0.0, %v5782
        %v5784 = vpop.f32.mrf.mxu0
        %v5785 = vadd.f32 0.0, %v5784
        %5786 = vmatmul.bf16.gmra.mxu0 %v4124
        %v5787 = vpop.f32.mrf.mxu0
        %v5788 = vadd.f32 0.0, %v5787
        %v5789 = vpop.f32.mrf.mxu0
        %v5790 = vadd.f32 0.0, %v5789
        %5791 = vmatmul.bf16.gmra.mxu0 %v4125
        %v5792 = vpop.f32.mrf.mxu0
        %v5793 = vadd.f32 0.0, %v5792
        %v5794 = vpop.f32.mrf.mxu0
        %v5795 = vadd.f32 0.0, %v5794
        %5796 = vmatmul.bf16.gmra.mxu0 %v4126
        %v5797 = vpop.f32.mrf.mxu0
        %v5798 = vadd.f32 0.0, %v5797
        %v5799 = vpop.f32.mrf.mxu0
        %v5800 = vadd.f32 0.0, %v5799
        %5801 = vmatmul.bf16.gmra.mxu0 %v4127
        %v5802 = vpop.f32.mrf.mxu0
        %v5803 = vadd.f32 0.0, %v5802
        %v5804 = vpop.f32.mrf.mxu0
        %v5805 = vadd.f32 0.0, %v5804
        %5806 = vmatmul.bf16.gmra.mxu0 %v4128
        %v5807 = vpop.f32.mrf.mxu0
        %v5808 = vadd.f32 0.0, %v5807
        %v5809 = vpop.f32.mrf.mxu0
        %v5810 = vadd.f32 0.0, %v5809
        %5811 = vmatmul.bf16.gmra.mxu0 %v4129
        %v5812 = vpop.f32.mrf.mxu0
        %v5813 = vadd.f32 0.0, %v5812
        %v5814 = vpop.f32.mrf.mxu0
        %v5815 = vadd.f32 0.0, %v5814
        %5816 = vmatmul.bf16.gmra.mxu0 %v4130
        %v5817 = vpop.f32.mrf.mxu0
        %v5818 = vadd.f32 0.0, %v5817
        %v5819 = vpop.f32.mrf.mxu0
        %v5820 = vadd.f32 0.0, %v5819
        %5821 = vmatmul.bf16.gmra.mxu0 %v4131
        %v5822 = vpop.f32.mrf.mxu0
        %v5823 = vadd.f32 0.0, %v5822
        %v5824 = vpop.f32.mrf.mxu0
        %v5825 = vadd.f32 0.0, %v5824
        %5826 = vmatmul.bf16.gmra.mxu0 %v4132
        %v5827 = vpop.f32.mrf.mxu0
        %v5828 = vadd.f32 0.0, %v5827
        %v5829 = vpop.f32.mrf.mxu0
        %v5830 = vadd.f32 0.0, %v5829
        %5831 = vmatmul.bf16.gmra.mxu0 %v4133
        %v5832 = vpop.f32.mrf.mxu0
        %v5833 = vadd.f32 0.0, %v5832
        %v5834 = vpop.f32.mrf.mxu0
        %v5835 = vadd.f32 0.0, %v5834
        %5836 = vmatmul.bf16.gmra.mxu0 %v4134
        %v5837 = vpop.f32.mrf.mxu0
        %v5838 = vadd.f32 0.0, %v5837
        %v5839 = vpop.f32.mrf.mxu0
        %v5840 = vadd.f32 0.0, %v5839
        %5841 = vmatmul.bf16.gmra.mxu0 %v4135
        %v5842 = vpop.f32.mrf.mxu0
        %v5843 = vadd.f32 0.0, %v5842
        %v5844 = vpop.f32.mrf.mxu0
        %v5845 = vadd.f32 0.0, %v5844
        %5846 = vmatmul.bf16.gmra.mxu0 %v4136
        %v5847 = vpop.f32.mrf.mxu0
        %v5848 = vadd.f32 0.0, %v5847
        %v5849 = vpop.f32.mrf.mxu0
        %v5850 = vadd.f32 0.0, %v5849
        %5851 = vmatmul.bf16.gmra.mxu0 %v4137
        %v5852 = vpop.f32.mrf.mxu0
        %v5853 = vadd.f32 0.0, %v5852
        %v5854 = vpop.f32.mrf.mxu0
        %v5855 = vadd.f32 0.0, %v5854
        %5856 = vmatmul.bf16.gmra.mxu0 %v4138
        %v5857 = vpop.f32.mrf.mxu0
        %v5858 = vadd.f32 0.0, %v5857
        %v5859 = vpop.f32.mrf.mxu0
        %v5860 = vadd.f32 0.0, %v5859
        %5861 = vdwg.mxu0
        %5862 = vmatpush.bf16.msra.mxu0 %v5740
        %5863 = vmatpush.bf16.msra.mxu0 %v5739
        %5864 = vmatpush.bf16.msra.mxu0 %v5738
        %5865 = vmatpush.bf16.msra.mxu0 %v5737
        %5866 = vmatpush.bf16.msra.mxu0 %v5736
        %5867 = vmatpush.bf16.msra.mxu0 %v5735
        %5868 = vmatpush.bf16.msra.mxu0 %v5734
        %5869 = vmatpush.bf16.msra.mxu0 %v5733
        %5870 = vmatmul.bf16.gmra.mxu0 %v4336
        %v5871 = vpop.f32.mrf.mxu0
        %v5872 = vadd.f32 %v5783, %v5871
        %v5873 = vpop.f32.mrf.mxu0
        %v5874 = vadd.f32 %v5785, %v5873
        %5875 = vmatmul.bf16.gmra.mxu0 %v4348
        %v5876 = vpop.f32.mrf.mxu0
        %v5877 = vadd.f32 %v5788, %v5876
        %v5878 = vpop.f32.mrf.mxu0
        %v5879 = vadd.f32 %v5790, %v5878
        %5880 = vmatmul.bf16.gmra.mxu0 %v4360
        %v5881 = vpop.f32.mrf.mxu0
        %v5882 = vadd.f32 %v5793, %v5881
        %v5883 = vpop.f32.mrf.mxu0
        %v5884 = vadd.f32 %v5795, %v5883
        %5885 = vmatmul.bf16.gmra.mxu0 %v4372
        %v5886 = vpop.f32.mrf.mxu0
        %v5887 = vadd.f32 %v5798, %v5886
        %v5888 = vpop.f32.mrf.mxu0
        %v5889 = vadd.f32 %v5800, %v5888
        %5890 = vmatmul.bf16.gmra.mxu0 %v4384
        %v5891 = vpop.f32.mrf.mxu0
        %v5892 = vadd.f32 %v5803, %v5891
        %v5893 = vpop.f32.mrf.mxu0
        %v5894 = vadd.f32 %v5805, %v5893
        %5895 = vmatmul.bf16.gmra.mxu0 %v4396
        %v5896 = vpop.f32.mrf.mxu0
        %v5897 = vadd.f32 %v5808, %v5896
        %v5898 = vpop.f32.mrf.mxu0
        %v5899 = vadd.f32 %v5810, %v5898
        %5900 = vmatmul.bf16.gmra.mxu0 %v4408
        %v5901 = vpop.f32.mrf.mxu0
        %v5902 = vadd.f32 %v5813, %v5901
        %v5903 = vpop.f32.mrf.mxu0
        %v5904 = vadd.f32 %v5815, %v5903
        %5905 = vmatmul.bf16.gmra.mxu0 %v4420
        %v5906 = vpop.f32.mrf.mxu0
        %v5907 = vadd.f32 %v5818, %v5906
        %v5908 = vpop.f32.mrf.mxu0
        %v5909 = vadd.f32 %v5820, %v5908
        %5910 = vmatmul.bf16.gmra.mxu0 %v4432
        %v5911 = vpop.f32.mrf.mxu0
        %v5912 = vadd.f32 %v5823, %v5911
        %v5913 = vpop.f32.mrf.mxu0
        %v5914 = vadd.f32 %v5825, %v5913
        %5915 = vmatmul.bf16.gmra.mxu0 %v4444
        %v5916 = vpop.f32.mrf.mxu0
        %v5917 = vadd.f32 %v5828, %v5916
        %v5918 = vpop.f32.mrf.mxu0
        %v5919 = vadd.f32 %v5830, %v5918
        %5920 = vmatmul.bf16.gmra.mxu0 %v4456
        %v5921 = vpop.f32.mrf.mxu0
        %v5922 = vadd.f32 %v5833, %v5921
        %v5923 = vpop.f32.mrf.mxu0
        %v5924 = vadd.f32 %v5835, %v5923
        %5925 = vmatmul.bf16.gmra.mxu0 %v4468
        %v5926 = vpop.f32.mrf.mxu0
        %v5927 = vadd.f32 %v5838, %v5926
        %v5928 = vpop.f32.mrf.mxu0
        %v5929 = vadd.f32 %v5840, %v5928
        %5930 = vmatmul.bf16.gmra.mxu0 %v4480
        %v5931 = vpop.f32.mrf.mxu0
        %v5932 = vadd.f32 %v5843, %v5931
        %v5933 = vpop.f32.mrf.mxu0
        %v5934 = vadd.f32 %v5845, %v5933
        %5935 = vmatmul.bf16.gmra.mxu0 %v4492
        %v5936 = vpop.f32.mrf.mxu0
        %v5937 = vadd.f32 %v5848, %v5936
        %v5938 = vpop.f32.mrf.mxu0
        %v5939 = vadd.f32 %v5850, %v5938
        %5940 = vmatmul.bf16.gmra.mxu0 %v4504
        %v5941 = vpop.f32.mrf.mxu0
        %v5942 = vadd.f32 %v5853, %v5941
        %v5943 = vpop.f32.mrf.mxu0
        %v5944 = vadd.f32 %v5855, %v5943
        %5945 = vmatmul.bf16.gmra.mxu0 %v4516
        %v5946 = vpop.f32.mrf.mxu0
        %v5947 = vadd.f32 %v5858, %v5946
        %v5948 = vpop.f32.mrf.mxu0
        %v5949 = vadd.f32 %v5860, %v5948
        %5950 = vdwg.mxu0
        %5951 = vmatpush.bf16.msra.mxu0 %v5748
        %5952 = vmatpush.bf16.msra.mxu0 %v5747
        %5953 = vmatpush.bf16.msra.mxu0 %v5746
        %5954 = vmatpush.bf16.msra.mxu0 %v5745
        %5955 = vmatpush.bf16.msra.mxu0 %v5744
        %5956 = vmatpush.bf16.msra.mxu0 %v5743
        %5957 = vmatpush.bf16.msra.mxu0 %v5742
        %5958 = vmatpush.bf16.msra.mxu0 %v5741
        %5959 = vmatmul.bf16.gmra.mxu0 %v4597
        %v5960 = vpop.f32.mrf.mxu0
        %v5961 = vadd.f32 %v5872, %v5960
        %v5962 = vpop.f32.mrf.mxu0
        %v5963 = vadd.f32 %v5874, %v5962
        %5964 = vmatmul.bf16.gmra.mxu0 %v4600
        %v5965 = vpop.f32.mrf.mxu0
        %v5966 = vadd.f32 %v5877, %v5965
        %v5967 = vpop.f32.mrf.mxu0
        %v5968 = vadd.f32 %v5879, %v5967
        %5969 = vmatmul.bf16.gmra.mxu0 %v4603
        %v5970 = vpop.f32.mrf.mxu0
        %v5971 = vadd.f32 %v5882, %v5970
        %v5972 = vpop.f32.mrf.mxu0
        %v5973 = vadd.f32 %v5884, %v5972
        %5974 = vmatmul.bf16.gmra.mxu0 %v4606
        %v5975 = vpop.f32.mrf.mxu0
        %v5976 = vadd.f32 %v5887, %v5975
        %v5977 = vpop.f32.mrf.mxu0
        %v5978 = vadd.f32 %v5889, %v5977
        %5979 = vmatmul.bf16.gmra.mxu0 %v4609
        %v5980 = vpop.f32.mrf.mxu0
        %v5981 = vadd.f32 %v5892, %v5980
        %v5982 = vpop.f32.mrf.mxu0
        %v5983 = vadd.f32 %v5894, %v5982
        %5984 = vmatmul.bf16.gmra.mxu0 %v4612
        %v5985 = vpop.f32.mrf.mxu0
        %v5986 = vadd.f32 %v5897, %v5985
        %v5987 = vpop.f32.mrf.mxu0
        %v5988 = vadd.f32 %v5899, %v5987
        %5989 = vmatmul.bf16.gmra.mxu0 %v4615
        %v5990 = vpop.f32.mrf.mxu0
        %v5991 = vadd.f32 %v5902, %v5990
        %v5992 = vpop.f32.mrf.mxu0
        %v5993 = vadd.f32 %v5904, %v5992
        %5994 = vmatmul.bf16.gmra.mxu0 %v4618
        %v5995 = vpop.f32.mrf.mxu0
        %v5996 = vadd.f32 %v5907, %v5995
        %v5997 = vpop.f32.mrf.mxu0
        %v5998 = vadd.f32 %v5909, %v5997
        %5999 = vmatmul.bf16.gmra.mxu0 %v4621
        %v6000 = vpop.f32.mrf.mxu0
        %v6001 = vadd.f32 %v5912, %v6000
        %v6002 = vpop.f32.mrf.mxu0
        %v6003 = vadd.f32 %v5914, %v6002
        %6004 = vmatmul.bf16.gmra.mxu0 %v4624
        %v6005 = vpop.f32.mrf.mxu0
        %v6006 = vadd.f32 %v5917, %v6005
        %v6007 = vpop.f32.mrf.mxu0
        %v6008 = vadd.f32 %v5919, %v6007
        %6009 = vmatmul.bf16.gmra.mxu0 %v4627
        %v6010 = vpop.f32.mrf.mxu0
        %v6011 = vadd.f32 %v5922, %v6010
        %v6012 = vpop.f32.mrf.mxu0
        %v6013 = vadd.f32 %v5924, %v6012
        %6014 = vmatmul.bf16.gmra.mxu0 %v4630
        %v6015 = vpop.f32.mrf.mxu0
        %v6016 = vadd.f32 %v5927, %v6015
        %v6017 = vpop.f32.mrf.mxu0
        %v6018 = vadd.f32 %v5929, %v6017
        %6019 = vmatmul.bf16.gmra.mxu0 %v4633
        %v6020 = vpop.f32.mrf.mxu0
        %v6021 = vadd.f32 %v5932, %v6020
        %v6022 = vpop.f32.mrf.mxu0
        %v6023 = vadd.f32 %v5934, %v6022
        %6024 = vmatmul.bf16.gmra.mxu0 %v4636
        %v6025 = vpop.f32.mrf.mxu0
        %v6026 = vadd.f32 %v5937, %v6025
        %v6027 = vpop.f32.mrf.mxu0
        %v6028 = vadd.f32 %v5939, %v6027
        %6029 = vmatmul.bf16.gmra.mxu0 %v4639
        %v6030 = vpop.f32.mrf.mxu0
        %v6031 = vadd.f32 %v5942, %v6030
        %v6032 = vpop.f32.mrf.mxu0
        %v6033 = vadd.f32 %v5944, %v6032
        %6034 = vmatmul.bf16.gmra.mxu0 %v4642
        %v6035 = vpop.f32.mrf.mxu0
        %v6036 = vadd.f32 %v5947, %v6035
        %v6037 = vpop.f32.mrf.mxu0
        %v6038 = vadd.f32 %v5949, %v6037
        %6039 = vdwg.mxu0
        %v6040 = vadd.f32 %v5501, %v5961
        %v6041 = vadd.f32 %v5503, %v5963
        %v6042 = vadd.f32 %v5506, %v5966
        %v6043 = vadd.f32 %v5508, %v5968
        %v6044 = vadd.f32 %v5511, %v5971
        %v6045 = vadd.f32 %v5513, %v5973
        %v6046 = vadd.f32 %v5516, %v5976
        %v6047 = vadd.f32 %v5518, %v5978
        %v6048 = vadd.f32 %v5521, %v5981
        %v6049 = vadd.f32 %v5523, %v5983
        %v6050 = vadd.f32 %v5526, %v5986
        %v6051 = vadd.f32 %v5528, %v5988
        %v6052 = vadd.f32 %v5531, %v5991
        %v6053 = vadd.f32 %v5533, %v5993
        %v6054 = vadd.f32 %v5536, %v5996
        %v6055 = vadd.f32 %v5538, %v5998
        %v6056 = vadd.f32 %v5541, %v6001
        %v6057 = vadd.f32 %v5543, %v6003
        %v6058 = vadd.f32 %v5546, %v6006
        %v6059 = vadd.f32 %v5548, %v6008
        %v6060 = vadd.f32 %v5551, %v6011
        %v6061 = vadd.f32 %v5553, %v6013
        %v6062 = vadd.f32 %v5556, %v6016
        %v6063 = vadd.f32 %v5558, %v6018
        %v6064 = vadd.f32 %v5561, %v6021
        %v6065 = vadd.f32 %v5563, %v6023
        %v6066 = vadd.f32 %v5566, %v6026
        %v6067 = vadd.f32 %v5568, %v6028
        %v6068 = vadd.f32 %v5571, %v6031
        %v6069 = vadd.f32 %v5573, %v6033
        %v6070 = vadd.f32 %v5576, %v6036
        %v6071 = vadd.f32 %v5578, %v6038
        %v6072 = vld [vmem:[%s4] sm:$0x1]
        %v6074 = vperm.slane %v6072, 0
        %v6076 = vadd.f32 %v6040, %v6074
        %v6077 = vadd.f32 %v6041, %v6074
        %v6078 = vadd.f32 %v6042, %v6074
        %v6079 = vadd.f32 %v6043, %v6074
        %v6080 = vadd.f32 %v6044, %v6074
        %v6081 = vadd.f32 %v6045, %v6074
        %v6082 = vadd.f32 %v6046, %v6074
        %v6083 = vadd.f32 %v6047, %v6074
        %v6084 = vadd.f32 %v6048, %v6074
        %v6085 = vadd.f32 %v6049, %v6074
        %v6086 = vadd.f32 %v6050, %v6074
        %v6087 = vadd.f32 %v6051, %v6074
        %v6088 = vadd.f32 %v6052, %v6074
        %v6089 = vadd.f32 %v6053, %v6074
        %v6090 = vadd.f32 %v6054, %v6074
        %v6091 = vadd.f32 %v6055, %v6074
        %v6092 = vadd.f32 %v6056, %v6074
        %v6093 = vadd.f32 %v6057, %v6074
        %v6094 = vadd.f32 %v6058, %v6074
        %v6095 = vadd.f32 %v6059, %v6074
        %v6096 = vadd.f32 %v6060, %v6074
        %v6097 = vadd.f32 %v6061, %v6074
        %v6098 = vadd.f32 %v6062, %v6074
        %v6099 = vadd.f32 %v6063, %v6074
        %v6100 = vadd.f32 %v6064, %v6074
        %v6101 = vadd.f32 %v6065, %v6074
        %v6102 = vadd.f32 %v6066, %v6074
        %v6103 = vadd.f32 %v6067, %v6074
        %v6104 = vadd.f32 %v6068, %v6074
        %v6105 = vadd.f32 %v6069, %v6074
        %v6106 = vadd.f32 %v6070, %v6074
        %v6107 = vadd.f32 %v6071, %v6074
        %v6108 = vmul.f32 %v6076, 0.2
        %v6109 = vmul.f32 %v6077, 0.2
        %v6110 = vmul.f32 %v6078, 0.2
        %v6111 = vmul.f32 %v6079, 0.2
        %v6112 = vmul.f32 %v6080, 0.2
        %v6113 = vmul.f32 %v6081, 0.2
        %v6114 = vmul.f32 %v6082, 0.2
        %v6115 = vmul.f32 %v6083, 0.2
        %v6116 = vmul.f32 %v6084, 0.2
        %v6117 = vmul.f32 %v6085, 0.2
        %v6118 = vmul.f32 %v6086, 0.2
        %v6119 = vmul.f32 %v6087, 0.2
        %v6120 = vmul.f32 %v6088, 0.2
        %v6121 = vmul.f32 %v6089, 0.2
        %v6122 = vmul.f32 %v6090, 0.2
        %v6123 = vmul.f32 %v6091, 0.2
        %v6124 = vmul.f32 %v6092, 0.2
        %v6125 = vmul.f32 %v6093, 0.2
        %v6126 = vmul.f32 %v6094, 0.2
        %v6127 = vmul.f32 %v6095, 0.2
        %v6128 = vmul.f32 %v6096, 0.2
        %v6129 = vmul.f32 %v6097, 0.2
        %v6130 = vmul.f32 %v6098, 0.2
        %v6131 = vmul.f32 %v6099, 0.2
        %v6132 = vmul.f32 %v6100, 0.2
        %v6133 = vmul.f32 %v6101, 0.2
        %v6134 = vmul.f32 %v6102, 0.2
        %v6135 = vmul.f32 %v6103, 0.2
        %v6136 = vmul.f32 %v6104, 0.2
        %v6137 = vmul.f32 %v6105, 0.2
        %v6138 = vmul.f32 %v6106, 0.2
        %v6139 = vmul.f32 %v6107, 0.2
        %v6140 = vmax.f32 %v6076, %v6108
        %v6141 = vmax.f32 %v6077, %v6109
        %v6142 = vmax.f32 %v6078, %v6110
        %v6143 = vmax.f32 %v6079, %v6111
        %v6144 = vmax.f32 %v6080, %v6112
        %v6145 = vmax.f32 %v6081, %v6113
        %v6146 = vmax.f32 %v6082, %v6114
        %v6147 = vmax.f32 %v6083, %v6115
        %v6148 = vmax.f32 %v6084, %v6116
        %v6149 = vmax.f32 %v6085, %v6117
        %v6150 = vmax.f32 %v6086, %v6118
        %v6151 = vmax.f32 %v6087, %v6119
        %v6152 = vmax.f32 %v6088, %v6120
        %v6153 = vmax.f32 %v6089, %v6121
        %v6154 = vmax.f32 %v6090, %v6122
        %v6155 = vmax.f32 %v6091, %v6123
        %v6156 = vmax.f32 %v6092, %v6124
        %v6157 = vmax.f32 %v6093, %v6125
        %v6158 = vmax.f32 %v6094, %v6126
        %v6159 = vmax.f32 %v6095, %v6127
        %v6160 = vmax.f32 %v6096, %v6128
        %v6161 = vmax.f32 %v6097, %v6129
        %v6162 = vmax.f32 %v6098, %v6130
        %v6163 = vmax.f32 %v6099, %v6131
        %v6164 = vmax.f32 %v6100, %v6132
        %v6165 = vmax.f32 %v6101, %v6133
        %v6166 = vmax.f32 %v6102, %v6134
        %v6167 = vmax.f32 %v6103, %v6135
        %v6168 = vmax.f32 %v6104, %v6136
        %v6169 = vmax.f32 %v6105, %v6137
        %v6170 = vmax.f32 %v6106, %v6138
        %v6171 = vmax.f32 %v6107, %v6139
        %6172 = vst [vmem:[%s224] sm:$0xff] %v6140
        %6173 = vst [vmem:[%s224 + $0x8] sm:$0xff] %v6141
        %6174 = vst [vmem:[%s224 + $0x10] sm:$0xff] %v6142
        %6175 = vst [vmem:[%s224 + $0x18] sm:$0xff] %v6143
        %6176 = vst [vmem:[%s224 + $0x20] sm:$0xff] %v6144
        %6177 = vst [vmem:[%s224 + $0x28] sm:$0xff] %v6145
        %6178 = vst [vmem:[%s224 + $0x30] sm:$0xff] %v6146
        %6179 = vst [vmem:[%s224 + $0x38] sm:$0xff] %v6147
        %6180 = vst [vmem:[%s224 + $0x40] sm:$0xff] %v6148
        %6181 = vst [vmem:[%s224 + $0x48] sm:$0xff] %v6149
        %6182 = vst [vmem:[%s224 + $0x50] sm:$0xff] %v6150
        %6183 = vst [vmem:[%s224 + $0x58] sm:$0xff] %v6151
        %6184 = vst [vmem:[%s224 + $0x60] sm:$0xff] %v6152
        %6185 = vst [vmem:[%s224 + $0x68] sm:$0xff] %v6153
        %6186 = vst [vmem:[%s224 + $0x70] sm:$0xff] %v6154
        %6187 = vst [vmem:[%s224 + $0x78] sm:$0xff] %v6155
        %6188 = vst [vmem:[%s224 + $0x80] sm:$0xff] %v6156
        %6189 = vst [vmem:[%s224 + $0x88] sm:$0xff] %v6157
        %6190 = vst [vmem:[%s224 + $0x90] sm:$0xff] %v6158
        %6191 = vst [vmem:[%s224 + $0x98] sm:$0xff] %v6159
        %6192 = vst [vmem:[%s224 + $0xa0] sm:$0xff] %v6160
        %6193 = vst [vmem:[%s224 + $0xa8] sm:$0xff] %v6161
        %6194 = vst [vmem:[%s224 + $0xb0] sm:$0xff] %v6162
        %6195 = vst [vmem:[%s224 + $0xb8] sm:$0xff] %v6163
        %6196 = vst [vmem:[%s224 + $0xc0] sm:$0xff] %v6164
        %6197 = vst [vmem:[%s224 + $0xc8] sm:$0xff] %v6165
        %6198 = vst [vmem:[%s224 + $0xd0] sm:$0xff] %v6166
        %6199 = vst [vmem:[%s224 + $0xd8] sm:$0xff] %v6167
        %6200 = vst [vmem:[%s224 + $0xe0] sm:$0xff] %v6168
        %6201 = vst [vmem:[%s224 + $0xe8] sm:$0xff] %v6169
        %6202 = vst [vmem:[%s224 + $0xf0] sm:$0xff] %v6170
        %6203 = vst [vmem:[%s224 + $0xf8] sm:$0xff] %v6171
        %s6204 = sand.u32 %s127, 1
        %s6205 = scalar_lea.sflag [#allocation6], %s6204
        %s6206 = sand.u32 %s127, 1
        %s6207 = smul.addr %s6206, 256
        %s6208 = scalar_lea.vmem [#allocation9], %s6207
        // Predicated region
        $region54: #{tpu_custom_call.1} parent=35 // pred_check
          %p6209 = pneg %p137
        $region55: #{tpu_custom_call.1} parent=35 // pred_check_branch
          %6211 = sbr.rel (%p6209) target = $region57
        $region56: #{tpu_custom_call.1} parent=35 // pred_region
          %s6212 = smul.u32 16, %s26
          %6214 = vsyncadd %s6205, 0
          %s6215 = smul.addr %s6212, 2
          %s6216 = smul.addr %s25, 32
          %s6217 = sadd.s32 %s6215, %s6216
          %s6218 = smul.addr %s6217, 8
          %s6219 = scalar_lea.hbm %s5, %s6218
          %s6220 = sshll.u32 %s6208, 4
          %s6221 = int_to_ptr.vmem [resolvable:$true] %s6220
          %s6222 = sshll.u32 %s6219, 4
          %s6223 = int_to_ptr.hbm [resolvable:$true] %s6222
          %6228 = dma.vmem_to_hbm [thread:$0]  %s6221, 4096, %s6223, %s6205, 128, 128, 8
        $region57: #{tpu_custom_call.1} parent=35 // pred_fallthru
          _
      $region36: #{tpu_custom_call.1} parent=5 // pred_fallthru
        _
      %p6229 = scmp.le.s32.totalorder 2, %s16
      // Predicated region
      $region58: #{tpu_custom_call.1} parent=5 // pred_check
        %p6230 = pneg %p6229
      $region59: #{tpu_custom_call.1} parent=5 // pred_check_branch
        %6232 = sbr.rel (%p6230) target = $region61
      $region60: #{tpu_custom_call.1} parent=5 // pred_region
        %s6233 = ssub.s32 %s16, 2
        // Predicated region
        $region62: #{tpu_custom_call.1} parent=60 // pred_check
          %p6234 = pneg %p143
        $region63: #{tpu_custom_call.1} parent=60 // pred_check_branch
          %6236 = sbr.rel (%p6234) target = $region65
        $region64: #{tpu_custom_call.1} parent=60 // pred_region
          %s6237 = sand.u32 %s128, 1
          %s6238 = scalar_lea.sflag [#allocation6], %s6237
          %s6239 = sand.u32 %s128, 1
          %s6240 = smul.addr %s6239, 256
          %s6241 = scalar_lea.vmem [#allocation9], %s6240
          %6243 = dma.done %s6238, 4096
        $region65: #{tpu_custom_call.1} parent=60 // pred_fallthru
          _
      $region61: #{tpu_custom_call.1} parent=5 // pred_fallthru
        _
    $region6: #{tpu_custom_call.1} parent=1 // loop_footer
      %s20 = sadd.s32 1, %s16
    $region7: #{tpu_custom_call.1} parent=1 // loop_footer_branch
      %15 = sbr.rel target = $region3
    $region8: #{tpu_custom_call.1} parent=1 // loop_exit
      _
    %6244 = vsyncpa [#allocation5], 1
    %s6245 = scalar_lea.sflag [#allocation5], 1
    %6246 = vsyncpa %s6245, 1
    %6247 = vsyncpa [#allocation8], 1
    %6248 = vsyncpa [#allocation6], 1
    %s6249 = scalar_lea.sflag [#allocation6], 1
    %6250 = vsyncpa %s6249, 1

</llo_original>
